<compile_context>
chip_gen: v7x
topology: tpu7x:2x2x1
jax: 0.10.0
libtpu: 0.0.40
codegen_flags: <defaults>
</compile_context>

<pallas_src>
import functools

import jax
import jax.numpy as jnp
from jax.experimental import pallas as pl
from jax.experimental.pallas import tpu as pltpu  # noqa: F401  (TPU backend)

# --- small, module-consistent hyperparameters (original: 650/100/200/2048) ---
N_EMBD = 32
N_HEAD = 4
HEAD_SIZE = N_EMBD // N_HEAD
N_LAYER = 2
BLOCK_SIZE = 16
VOCAB_SIZE = 64
VOCAB_PAD = 128          # lane-dense padded vocab width for kernel stores
LN_EPS = 1e-5
NEG_INF = -1e30          # additive mask value (finite -> no exp(-inf) NaNs)


# ------------------------------- fused kernel ------------------------------ #

def _layer_norm(z, g, b):
    mean = jnp.mean(z, axis=-1, keepdims=True)
    var = jnp.mean((z - mean) ** 2, axis=-1, keepdims=True)
    return (z - mean) * jax.lax.rsqrt(var + LN_EPS) * g + b


def _gpt_kernel(x_ref, mask_ref,
                wqkv_ref, wo_ref, bo_ref,
                ln1g_ref, ln1b_ref,
                w1_ref, b1_ref, w2_ref, b2_ref,
                ln2g_ref, ln2b_ref,
                lnfg_ref, lnfb_ref, wlm_ref, blm_ref,
                o_ref):
    """Entire GPT forward (all layers + final LN + lm_head), VMEM-resident."""
    x = x_ref[...]          # (BT, C) f32
    mask = mask_ref[...]    # (BT, BT) additive block-diagonal causal mask
    scale = HEAD_SIZE ** (-0.5)

    for l in range(N_LAYER):                      # static unroll over layers
        # ---------------- multi-head causal self-attention ----------------
        qkv = jnp.dot(x, wqkv_ref[l], preferred_element_type=jnp.float32)  # (BT, 3C)
        q = qkv[:, :N_EMBD]
        k = qkv[:, N_EMBD:2 * N_EMBD]
        v = qkv[:, 2 * N_EMBD:]

        wo = wo_ref[l]
        y = jnp.zeros_like(x)
        for h in range(N_HEAD):                   # static unroll over heads
            s = slice(h * HEAD_SIZE, (h + 1) * HEAD_SIZE)
            qh, kh, vh = q[:, s], k[:, s], v[:, s]
            # q @ k^T with no materialized transpose (contract last dims).
            wei = jax.lax.dot_general(
                qh, kh, (((1,), (1,)), ((), ())),
                preferred_element_type=jnp.float32) * scale
            wei = wei + mask                      # hoisted additive mask
            m = jnp.max(wei, axis=-1, keepdims=True)
            e = jnp.exp(wei - m)
            denom = jnp.sum(e, axis=-1, keepdims=True)
            p = e * pl.reciprocal(denom, approx=True)   # EUP slot, off VALU path
            head_out = jnp.dot(p, vh, preferred_element_type=jnp.float32)
            # concat(heads) @ Wo == sum_h head_h @ Wo[h*hs:(h+1)*hs, :]
            y = y + jnp.dot(head_out, wo[s, :],
                            preferred_element_type=jnp.float32)
        y = y + bo_ref[l]

        x = _layer_norm(x + y, ln1g_ref[l], ln1b_ref[l])        # ln1(x + sa(x))

        # --------------------------- feed-forward --------------------------
        hdn = jnp.dot(x, w1_ref[l], preferred_element_type=jnp.float32) + b1_ref[l]
        hdn = jnp.maximum(hdn, 0.0)
        y = jnp.dot(hdn, w2_ref[l], preferred_element_type=jnp.float32) + b2_ref[l]

        x = _layer_norm(x + y, ln2g_ref[l], ln2b_ref[l])        # ln2(x + ffwd(x))

    # ----------------- final LayerNorm + lm_head (lane-dense) ----------------
    xn = _layer_norm(x, lnfg_ref[...], lnfb_ref[...])
    o_ref[...] = (jnp.dot(xn, wlm_ref[...], preferred_element_type=jnp.float32)
                  + blm_ref[...])


def _fused_forward(x_flat, mask, p):
    BT = x_flat.shape[0]
    # No grid: whole arrays are single VMEM-resident blocks (default BlockSpecs).
    return pl.pallas_call(
        _gpt_kernel,
        out_shape=jax.ShapeDtypeStruct((BT, VOCAB_PAD), jnp.float32),
    )(x_flat, mask,
      p["wqkv"], p["wo"], p["bo"],
      p["ln1_g"], p["ln1_b"],
      p["w1"], p["b1"], p["w2"], p["b2"],
      p["ln2_g"], p["ln2_b"],
      p["lnf_g"], p["lnf_b"], p["w_lm_p"], p["b_lm_p"])


# ------------------------------ model glue --------------------------------- #

def _causal_batch_mask(B, T):
    """Additive mask over the flattened (B*T) axis: causal within a batch row,
    fully masked across batch rows."""
    idx = jnp.arange(B * T)
    row_b, row_t = idx // T, idx % T
    allowed = (row_b[:, None] == row_b[None, :]) & (row_t[:, None] >= row_t[None, :])
    return jnp.where(allowed, 0.0, NEG_INF).astype(jnp.float32)


def init_params(key):
    keys = iter(jax.random.split(key, 8))
    nrm = lambda shape: 0.02 * jax.random.normal(next(keys), shape, jnp.float32)
    zeros = lambda shape: jnp.zeros(shape, jnp.float32)
    ones = lambda shape: jnp.ones(shape, jnp.float32)

    w_lm = nrm((N_EMBD, VOCAB_SIZE))
    b_lm = zeros((1, VOCAB_SIZE))
    params = {
        "tok_emb": nrm((VOCAB_SIZE, N_EMBD)),
        "pos_emb": nrm((BLOCK_SIZE, N_EMBD)),
        # per-layer weights stacked along a leading layer axis
        "wqkv": nrm((N_LAYER, N_EMBD, 3 * N_EMBD)),          # packed q|k|v, no bias
        "wo": nrm((N_LAYER, N_EMBD, N_EMBD)),
        "bo": zeros((N_LAYER, 1, N_EMBD)),
        "ln1_g": ones((N_LAYER, 1, N_EMBD)), "ln1_b": zeros((N_LAYER, 1, N_EMBD)),
        "w1": nrm((N_LAYER, N_EMBD, 4 * N_EMBD)), "b1": zeros((N_LAYER, 1, 4 * N_EMBD)),
        "w2": nrm((N_LAYER, 4 * N_EMBD, N_EMBD)), "b2": zeros((N_LAYER, 1, N_EMBD)),
        "ln2_g": ones((N_LAYER, 1, N_EMBD)), "ln2_b": zeros((N_LAYER, 1, N_EMBD)),
        # final LN + lane-dense (128-wide) zero-padded lm_head
        "lnf_g": ones((1, N_EMBD)), "lnf_b": zeros((1, N_EMBD)),
        "w_lm_p": jnp.zeros((N_EMBD, VOCAB_PAD), jnp.float32).at[:, :VOCAB_SIZE].set(w_lm),
        "b_lm_p": jnp.zeros((1, VOCAB_PAD), jnp.float32).at[:, :VOCAB_SIZE].set(b_lm),
    }
    return params


def gpt_forward(params, index, targets=None):
    B, T = index.shape
    # embedding gather + positional add in plain JAX (no clean Pallas tile form)
    tok = jnp.take(params["tok_emb"], index, axis=0)          # (B, T, C)
    pos = params["pos_emb"][:T]                                # (T, C)
    x = (tok + pos).reshape(B * T, N_EMBD).astype(jnp.float32)
    mask = _causal_batch_mask(B, T)                            # (BT, BT)

    logits_p = _fused_forward(x, mask, params)                 # (BT, 128)
    logits = logits_p[:, :VOCAB_SIZE].reshape(B, T, VOCAB_SIZE)

    loss = None
    if targets is not None:
        lv = logits.reshape(B * T, VOCAB_SIZE)
        tv = targets.reshape(B * T)
        logp = jax.nn.log_softmax(lv, axis=-1)
        loss = -jnp.mean(jnp.take_along_axis(logp, tv[:, None], axis=1))
    return logits, loss


if __name__ == "__main__":
    key = jax.random.PRNGKey(0)
    k_params, k_idx, k_tgt = jax.random.split(key, 3)

    params = init_params(k_params)

    B, T = 2, 8
    index = jax.random.randint(k_idx, (B, T), 0, VOCAB_SIZE, dtype=jnp.int32)
    targets = jax.random.randint(k_tgt, (B, T), 0, VOCAB_SIZE, dtype=jnp.int32)

    fwd = jax.jit(functools.partial(gpt_forward, params))
    logits, _ = fwd(index)                     # targets=None path (loss is None)
    logits = jax.block_until_ready(logits)

    # also exercise the loss branch (plain-JAX glue around the fused kernel)
    _, loss = gpt_forward(params, index, targets)
    jax.block_until_ready(loss)

    assert logits.shape == (B, T, VOCAB_SIZE)
    assert bool(jnp.all(jnp.isfinite(logits)))
    print("KERNEL_OK")
</pallas_src>

<mosaic_0001>
module attributes {stable_mosaic.version = 11 : i64} {
  func.func @_gpt_kernel(%arg0: memref<16x32xf32, #tpu.memory_space<vmem>>, %arg1: memref<16x16xf32, #tpu.memory_space<vmem>>, %arg2: memref<2x32x96xf32, #tpu.memory_space<vmem>>, %arg3: memref<2x32x32xf32, #tpu.memory_space<vmem>>, %arg4: memref<2x1x32xf32, #tpu.memory_space<vmem>>, %arg5: memref<2x1x32xf32, #tpu.memory_space<vmem>>, %arg6: memref<2x1x32xf32, #tpu.memory_space<vmem>>, %arg7: memref<2x32x128xf32, #tpu.memory_space<vmem>>, %arg8: memref<2x1x128xf32, #tpu.memory_space<vmem>>, %arg9: memref<2x128x32xf32, #tpu.memory_space<vmem>>, %arg10: memref<2x1x32xf32, #tpu.memory_space<vmem>>, %arg11: memref<2x1x32xf32, #tpu.memory_space<vmem>>, %arg12: memref<2x1x32xf32, #tpu.memory_space<vmem>>, %arg13: memref<1x32xf32, #tpu.memory_space<vmem>>, %arg14: memref<1x32xf32, #tpu.memory_space<vmem>>, %arg15: memref<32x128xf32, #tpu.memory_space<vmem>>, %arg16: memref<1x128xf32, #tpu.memory_space<vmem>>, %arg17: memref<16x128xf32, #tpu.memory_space<vmem>>) attributes {dimension_semantics = [], scalar_prefetch = 0 : i64, scratch_operands = 0 : i64, tpu.core_type = #tpu.core_type<tc>} {
    %c0 = arith.constant 0 : index
    %c0_0 = arith.constant 0 : index
    %0 = vector.load %arg0[%c0, %c0_0] : memref<16x32xf32, #tpu.memory_space<vmem>>, vector<16x32xf32>
    %c0_1 = arith.constant 0 : index
    %c0_2 = arith.constant 0 : index
    %1 = vector.load %arg1[%c0_1, %c0_2] : memref<16x16xf32, #tpu.memory_space<vmem>>, vector<16x16xf32>
    %c0_3 = arith.constant 0 : index
    %c0_4 = arith.constant 0 : index
    %c0_5 = arith.constant 0 : index
    %2 = vector.load %arg2[%c0_3, %c0_4, %c0_5] : memref<2x32x96xf32, #tpu.memory_space<vmem>>, vector<1x32x96xf32>
    %3 = vector.shape_cast %2 : vector<1x32x96xf32> to vector<32x96xf32>
    %cst = arith.constant dense<0.000000e+00> : vector<16x96xf32>
    %4 = tpu.matmul %0, %3, %cst {dimension_numbers = #tpu.dot_dimension_numbers<[1], [0], [0], [1], [0, 0, 1, 1], [], []>} : vector<16x32xf32>, vector<32x96xf32>, vector<16x96xf32> -> vector<16x96xf32>
    %5 = vector.extract_strided_slice %4 {offsets = [0, 0], sizes = [16, 32], strides = [1, 1]} : vector<16x96xf32> to vector<16x32xf32>
    %6 = vector.extract_strided_slice %4 {offsets = [0, 32], sizes = [16, 32], strides = [1, 1]} : vector<16x96xf32> to vector<16x32xf32>
    %7 = vector.extract_strided_slice %4 {offsets = [0, 64], sizes = [16, 32], strides = [1, 1]} : vector<16x96xf32> to vector<16x32xf32>
    %c0_6 = arith.constant 0 : index
    %c0_7 = arith.constant 0 : index
    %c0_8 = arith.constant 0 : index
    %8 = vector.load %arg3[%c0_6, %c0_7, %c0_8] : memref<2x32x32xf32, #tpu.memory_space<vmem>>, vector<1x32x32xf32>
    %9 = vector.shape_cast %8 : vector<1x32x32xf32> to vector<32x32xf32>
    %cst_9 = arith.constant 0.000000e+00 : f32
    %10 = vector.broadcast %cst_9 : f32 to vector<16x32xf32>
    %11 = vector.extract_strided_slice %5 {offsets = [0, 0], sizes = [16, 8], strides = [1, 1]} : vector<16x32xf32> to vector<16x8xf32>
    %12 = vector.extract_strided_slice %6 {offsets = [0, 0], sizes = [16, 8], strides = [1, 1]} : vector<16x32xf32> to vector<16x8xf32>
    %13 = vector.extract_strided_slice %7 {offsets = [0, 0], sizes = [16, 8], strides = [1, 1]} : vector<16x32xf32> to vector<16x8xf32>
    %cst_10 = arith.constant dense<0.000000e+00> : vector<16x16xf32>
    %14 = tpu.matmul %11, %12, %cst_10 {dimension_numbers = #tpu.dot_dimension_numbers<[1], [1], [0], [0], [0, 0, 1, 0], [], []>} : vector<16x8xf32>, vector<16x8xf32>, vector<16x16xf32> -> vector<16x16xf32>
    %cst_11 = arith.constant 0.353553385 : f32
    %15 = vector.broadcast %cst_11 : f32 to vector<16x16xf32>
    %16 = arith.mulf %14, %15 : vector<16x16xf32>
    %17 = arith.addf %16, %1 : vector<16x16xf32>
    %cst_12 = arith.constant dense<0xFF800000> : vector<16xf32>
    %18 = vector.multi_reduction <maximumf>, %17, %cst_12 [1] : vector<16x16xf32> to vector<16xf32>
    %19 = vector.shape_cast %18 : vector<16xf32> to vector<16x1xf32>
    %20 = vector.broadcast %19 : vector<16x1xf32> to vector<16x16xf32>
    %21 = arith.subf %17, %20 : vector<16x16xf32>
    %22 = math.exp %21 : vector<16x16xf32>
    %cst_13 = arith.constant dense<0.000000e+00> : vector<16xf32>
    %23 = vector.multi_reduction <add>, %22, %cst_13 [1] : vector<16x16xf32> to vector<16xf32>
    %24 = vector.shape_cast %23 : vector<16xf32> to vector<16x1xf32>
    %25 = tpu.reciprocal %24 {approx = true} : vector<16x1xf32> -> vector<16x1xf32>
    %26 = vector.broadcast %25 : vector<16x1xf32> to vector<16x16xf32>
    %27 = arith.mulf %22, %26 : vector<16x16xf32>
    %cst_14 = arith.constant dense<0.000000e+00> : vector<16x8xf32>
    %28 = tpu.matmul %27, %13, %cst_14 {dimension_numbers = #tpu.dot_dimension_numbers<[1], [0], [0], [1], [0, 0, 1, 1], [], []>} : vector<16x16xf32>, vector<16x8xf32>, vector<16x8xf32> -> vector<16x8xf32>
    %29 = vector.extract_strided_slice %9 {offsets = [0, 0], sizes = [8, 32], strides = [1, 1]} : vector<32x32xf32> to vector<8x32xf32>
    %cst_15 = arith.constant dense<0.000000e+00> : vector<16x32xf32>
    %30 = tpu.matmul %28, %29, %cst_15 {dimension_numbers = #tpu.dot_dimension_numbers<[1], [0], [0], [1], [0, 0, 1, 1], [], []>} : vector<16x8xf32>, vector<8x32xf32>, vector<16x32xf32> -> vector<16x32xf32>
    %31 = arith.addf %10, %30 : vector<16x32xf32>
    %32 = vector.extract_strided_slice %5 {offsets = [0, 8], sizes = [16, 8], strides = [1, 1]} : vector<16x32xf32> to vector<16x8xf32>
    %33 = vector.extract_strided_slice %6 {offsets = [0, 8], sizes = [16, 8], strides = [1, 1]} : vector<16x32xf32> to vector<16x8xf32>
    %34 = vector.extract_strided_slice %7 {offsets = [0, 8], sizes = [16, 8], strides = [1, 1]} : vector<16x32xf32> to vector<16x8xf32>
    %cst_16 = arith.constant dense<0.000000e+00> : vector<16x16xf32>
    %35 = tpu.matmul %32, %33, %cst_16 {dimension_numbers = #tpu.dot_dimension_numbers<[1], [1], [0], [0], [0, 0, 1, 0], [], []>} : vector<16x8xf32>, vector<16x8xf32>, vector<16x16xf32> -> vector<16x16xf32>
    %cst_17 = arith.constant 0.353553385 : f32
    %36 = vector.broadcast %cst_17 : f32 to vector<16x16xf32>
    %37 = arith.mulf %35, %36 : vector<16x16xf32>
    %38 = arith.addf %37, %1 : vector<16x16xf32>
    %cst_18 = arith.constant dense<0xFF800000> : vector<16xf32>
    %39 = vector.multi_reduction <maximumf>, %38, %cst_18 [1] : vector<16x16xf32> to vector<16xf32>
    %40 = vector.shape_cast %39 : vector<16xf32> to vector<16x1xf32>
    %41 = vector.broadcast %40 : vector<16x1xf32> to vector<16x16xf32>
    %42 = arith.subf %38, %41 : vector<16x16xf32>
    %43 = math.exp %42 : vector<16x16xf32>
    %cst_19 = arith.constant dense<0.000000e+00> : vector<16xf32>
    %44 = vector.multi_reduction <add>, %43, %cst_19 [1] : vector<16x16xf32> to vector<16xf32>
    %45 = vector.shape_cast %44 : vector<16xf32> to vector<16x1xf32>
    %46 = tpu.reciprocal %45 {approx = true} : vector<16x1xf32> -> vector<16x1xf32>
    %47 = vector.broadcast %46 : vector<16x1xf32> to vector<16x16xf32>
    %48 = arith.mulf %43, %47 : vector<16x16xf32>
    %cst_20 = arith.constant dense<0.000000e+00> : vector<16x8xf32>
    %49 = tpu.matmul %48, %34, %cst_20 {dimension_numbers = #tpu.dot_dimension_numbers<[1], [0], [0], [1], [0, 0, 1, 1], [], []>} : vector<16x16xf32>, vector<16x8xf32>, vector<16x8xf32> -> vector<16x8xf32>
    %50 = vector.extract_strided_slice %9 {offsets = [8, 0], sizes = [8, 32], strides = [1, 1]} : vector<32x32xf32> to vector<8x32xf32>
    %cst_21 = arith.constant dense<0.000000e+00> : vector<16x32xf32>
    %51 = tpu.matmul %49, %50, %cst_21 {dimension_numbers = #tpu.dot_dimension_numbers<[1], [0], [0], [1], [0, 0, 1, 1], [], []>} : vector<16x8xf32>, vector<8x32xf32>, vector<16x32xf32> -> vector<16x32xf32>
    %52 = arith.addf %31, %51 : vector<16x32xf32>
    %53 = vector.extract_strided_slice %5 {offsets = [0, 16], sizes = [16, 8], strides = [1, 1]} : vector<16x32xf32> to vector<16x8xf32>
    %54 = vector.extract_strided_slice %6 {offsets = [0, 16], sizes = [16, 8], strides = [1, 1]} : vector<16x32xf32> to vector<16x8xf32>
    %55 = vector.extract_strided_slice %7 {offsets = [0, 16], sizes = [16, 8], strides = [1, 1]} : vector<16x32xf32> to vector<16x8xf32>
    %cst_22 = arith.constant dense<0.000000e+00> : vector<16x16xf32>
    %56 = tpu.matmul %53, %54, %cst_22 {dimension_numbers = #tpu.dot_dimension_numbers<[1], [1], [0], [0], [0, 0, 1, 0], [], []>} : vector<16x8xf32>, vector<16x8xf32>, vector<16x16xf32> -> vector<16x16xf32>
    %cst_23 = arith.constant 0.353553385 : f32
    %57 = vector.broadcast %cst_23 : f32 to vector<16x16xf32>
    %58 = arith.mulf %56, %57 : vector<16x16xf32>
    %59 = arith.addf %58, %1 : vector<16x16xf32>
    %cst_24 = arith.constant dense<0xFF800000> : vector<16xf32>
    %60 = vector.multi_reduction <maximumf>, %59, %cst_24 [1] : vector<16x16xf32> to vector<16xf32>
    %61 = vector.shape_cast %60 : vector<16xf32> to vector<16x1xf32>
    %62 = vector.broadcast %61 : vector<16x1xf32> to vector<16x16xf32>
    %63 = arith.subf %59, %62 : vector<16x16xf32>
    %64 = math.exp %63 : vector<16x16xf32>
    %cst_25 = arith.constant dense<0.000000e+00> : vector<16xf32>
    %65 = vector.multi_reduction <add>, %64, %cst_25 [1] : vector<16x16xf32> to vector<16xf32>
    %66 = vector.shape_cast %65 : vector<16xf32> to vector<16x1xf32>
    %67 = tpu.reciprocal %66 {approx = true} : vector<16x1xf32> -> vector<16x1xf32>
    %68 = vector.broadcast %67 : vector<16x1xf32> to vector<16x16xf32>
    %69 = arith.mulf %64, %68 : vector<16x16xf32>
    %cst_26 = arith.constant dense<0.000000e+00> : vector<16x8xf32>
    %70 = tpu.matmul %69, %55, %cst_26 {dimension_numbers = #tpu.dot_dimension_numbers<[1], [0], [0], [1], [0, 0, 1, 1], [], []>} : vector<16x16xf32>, vector<16x8xf32>, vector<16x8xf32> -> vector<16x8xf32>
    %71 = vector.extract_strided_slice %9 {offsets = [16, 0], sizes = [8, 32], strides = [1, 1]} : vector<32x32xf32> to vector<8x32xf32>
    %cst_27 = arith.constant dense<0.000000e+00> : vector<16x32xf32>
    %72 = tpu.matmul %70, %71, %cst_27 {dimension_numbers = #tpu.dot_dimension_numbers<[1], [0], [0], [1], [0, 0, 1, 1], [], []>} : vector<16x8xf32>, vector<8x32xf32>, vector<16x32xf32> -> vector<16x32xf32>
    %73 = arith.addf %52, %72 : vector<16x32xf32>
    %74 = vector.extract_strided_slice %5 {offsets = [0, 24], sizes = [16, 8], strides = [1, 1]} : vector<16x32xf32> to vector<16x8xf32>
    %75 = vector.extract_strided_slice %6 {offsets = [0, 24], sizes = [16, 8], strides = [1, 1]} : vector<16x32xf32> to vector<16x8xf32>
    %76 = vector.extract_strided_slice %7 {offsets = [0, 24], sizes = [16, 8], strides = [1, 1]} : vector<16x32xf32> to vector<16x8xf32>
    %cst_28 = arith.constant dense<0.000000e+00> : vector<16x16xf32>
    %77 = tpu.matmul %74, %75, %cst_28 {dimension_numbers = #tpu.dot_dimension_numbers<[1], [1], [0], [0], [0, 0, 1, 0], [], []>} : vector<16x8xf32>, vector<16x8xf32>, vector<16x16xf32> -> vector<16x16xf32>
    %cst_29 = arith.constant 0.353553385 : f32
    %78 = vector.broadcast %cst_29 : f32 to vector<16x16xf32>
    %79 = arith.mulf %77, %78 : vector<16x16xf32>
    %80 = arith.addf %79, %1 : vector<16x16xf32>
    %cst_30 = arith.constant dense<0xFF800000> : vector<16xf32>
    %81 = vector.multi_reduction <maximumf>, %80, %cst_30 [1] : vector<16x16xf32> to vector<16xf32>
    %82 = vector.shape_cast %81 : vector<16xf32> to vector<16x1xf32>
    %83 = vector.broadcast %82 : vector<16x1xf32> to vector<16x16xf32>
    %84 = arith.subf %80, %83 : vector<16x16xf32>
    %85 = math.exp %84 : vector<16x16xf32>
    %cst_31 = arith.constant dense<0.000000e+00> : vector<16xf32>
    %86 = vector.multi_reduction <add>, %85, %cst_31 [1] : vector<16x16xf32> to vector<16xf32>
    %87 = vector.shape_cast %86 : vector<16xf32> to vector<16x1xf32>
    %88 = tpu.reciprocal %87 {approx = true} : vector<16x1xf32> -> vector<16x1xf32>
    %89 = vector.broadcast %88 : vector<16x1xf32> to vector<16x16xf32>
    %90 = arith.mulf %85, %89 : vector<16x16xf32>
    %cst_32 = arith.constant dense<0.000000e+00> : vector<16x8xf32>
    %91 = tpu.matmul %90, %76, %cst_32 {dimension_numbers = #tpu.dot_dimension_numbers<[1], [0], [0], [1], [0, 0, 1, 1], [], []>} : vector<16x16xf32>, vector<16x8xf32>, vector<16x8xf32> -> vector<16x8xf32>
    %92 = vector.extract_strided_slice %9 {offsets = [24, 0], sizes = [8, 32], strides = [1, 1]} : vector<32x32xf32> to vector<8x32xf32>
    %cst_33 = arith.constant dense<0.000000e+00> : vector<16x32xf32>
    %93 = tpu.matmul %91, %92, %cst_33 {dimension_numbers = #tpu.dot_dimension_numbers<[1], [0], [0], [1], [0, 0, 1, 1], [], []>} : vector<16x8xf32>, vector<8x32xf32>, vector<16x32xf32> -> vector<16x32xf32>
    %94 = arith.addf %73, %93 : vector<16x32xf32>
    %c0_34 = arith.constant 0 : index
    %c0_35 = arith.constant 0 : index
    %c0_36 = arith.constant 0 : index
    %95 = vector.load %arg4[%c0_34, %c0_35, %c0_36] : memref<2x1x32xf32, #tpu.memory_space<vmem>>, vector<1x1x32xf32>
    %96 = vector.shape_cast %95 : vector<1x1x32xf32> to vector<1x32xf32>
    %97 = vector.broadcast %96 : vector<1x32xf32> to vector<16x32xf32>
    %98 = arith.addf %94, %97 : vector<16x32xf32>
    %99 = arith.addf %0, %98 : vector<16x32xf32>
    %c0_37 = arith.constant 0 : index
    %c0_38 = arith.constant 0 : index
    %c0_39 = arith.constant 0 : index
    %100 = vector.load %arg5[%c0_37, %c0_38, %c0_39] : memref<2x1x32xf32, #tpu.memory_space<vmem>>, vector<1x1x32xf32>
    %101 = vector.shape_cast %100 : vector<1x1x32xf32> to vector<1x32xf32>
    %c0_40 = arith.constant 0 : index
    %c0_41 = arith.constant 0 : index
    %c0_42 = arith.constant 0 : index
    %102 = vector.load %arg6[%c0_40, %c0_41, %c0_42] : memref<2x1x32xf32, #tpu.memory_space<vmem>>, vector<1x1x32xf32>
    %103 = vector.shape_cast %102 : vector<1x1x32xf32> to vector<1x32xf32>
    %cst_43 = arith.constant dense<0.000000e+00> : vector<16xf32>
    %104 = vector.multi_reduction <add>, %99, %cst_43 [1] : vector<16x32xf32> to vector<16xf32>
    %105 = vector.shape_cast %104 : vector<16xf32> to vector<16x1xf32>
    %cst_44 = arith.constant 3.200000e+01 : f32
    %106 = vector.broadcast %cst_44 : f32 to vector<16x1xf32>
    %107 = arith.divf %105, %106 : vector<16x1xf32>
    %108 = vector.broadcast %107 : vector<16x1xf32> to vector<16x32xf32>
    %109 = arith.subf %99, %108 : vector<16x32xf32>
    %110 = arith.mulf %109, %109 : vector<16x32xf32>
    %cst_45 = arith.constant dense<0.000000e+00> : vector<16xf32>
    %111 = vector.multi_reduction <add>, %110, %cst_45 [1] : vector<16x32xf32> to vector<16xf32>
    %112 = vector.shape_cast %111 : vector<16xf32> to vector<16x1xf32>
    %cst_46 = arith.constant 3.200000e+01 : f32
    %113 = vector.broadcast %cst_46 : f32 to vector<16x1xf32>
    %114 = arith.divf %112, %113 : vector<16x1xf32>
    %115 = vector.broadcast %107 : vector<16x1xf32> to vector<16x32xf32>
    %116 = arith.subf %99, %115 : vector<16x32xf32>
    %cst_47 = arith.constant 9.99999974E-6 : f32
    %117 = vector.broadcast %cst_47 : f32 to vector<16x1xf32>
    %118 = arith.addf %114, %117 : vector<16x1xf32>
    %119 = math.rsqrt %118 : vector<16x1xf32>
    %120 = vector.broadcast %119 : vector<16x1xf32> to vector<16x32xf32>
    %121 = arith.mulf %116, %120 : vector<16x32xf32>
    %122 = vector.broadcast %101 : vector<1x32xf32> to vector<16x32xf32>
    %123 = arith.mulf %121, %122 : vector<16x32xf32>
    %124 = vector.broadcast %103 : vector<1x32xf32> to vector<16x32xf32>
    %125 = arith.addf %123, %124 : vector<16x32xf32>
    %c0_48 = arith.constant 0 : index
    %c0_49 = arith.constant 0 : index
    %c0_50 = arith.constant 0 : index
    %126 = vector.load %arg7[%c0_48, %c0_49, %c0_50] : memref<2x32x128xf32, #tpu.memory_space<vmem>>, vector<1x32x128xf32>
    %127 = vector.shape_cast %126 : vector<1x32x128xf32> to vector<32x128xf32>
    %cst_51 = arith.constant dense<0.000000e+00> : vector<16x128xf32>
    %128 = tpu.matmul %125, %127, %cst_51 {dimension_numbers = #tpu.dot_dimension_numbers<[1], [0], [0], [1], [0, 0, 1, 1], [], []>} : vector<16x32xf32>, vector<32x128xf32>, vector<16x128xf32> -> vector<16x128xf32>
    %c0_52 = arith.constant 0 : index
    %c0_53 = arith.constant 0 : index
    %c0_54 = arith.constant 0 : index
    %129 = vector.load %arg8[%c0_52, %c0_53, %c0_54] : memref<2x1x128xf32, #tpu.memory_space<vmem>>, vector<1x1x128xf32>
    %130 = vector.shape_cast %129 : vector<1x1x128xf32> to vector<1x128xf32>
    %131 = vector.broadcast %130 : vector<1x128xf32> to vector<16x128xf32>
    %132 = arith.addf %128, %131 : vector<16x128xf32>
    %cst_55 = arith.constant 0.000000e+00 : f32
    %133 = vector.broadcast %cst_55 : f32 to vector<16x128xf32>
    %134 = arith.maximumf %132, %133 : vector<16x128xf32>
    %c0_56 = arith.constant 0 : index
    %c0_57 = arith.constant 0 : index
    %c0_58 = arith.constant 0 : index
    %135 = vector.load %arg9[%c0_56, %c0_57, %c0_58] : memref<2x128x32xf32, #tpu.memory_space<vmem>>, vector<1x128x32xf32>
    %136 = vector.shape_cast %135 : vector<1x128x32xf32> to vector<128x32xf32>
    %cst_59 = arith.constant dense<0.000000e+00> : vector<16x32xf32>
    %137 = tpu.matmul %134, %136, %cst_59 {dimension_numbers = #tpu.dot_dimension_numbers<[1], [0], [0], [1], [0, 0, 1, 1], [], []>} : vector<16x128xf32>, vector<128x32xf32>, vector<16x32xf32> -> vector<16x32xf32>
    %c0_60 = arith.constant 0 : index
    %c0_61 = arith.constant 0 : index
    %c0_62 = arith.constant 0 : index
    %138 = vector.load %arg10[%c0_60, %c0_61, %c0_62] : memref<2x1x32xf32, #tpu.memory_space<vmem>>, vector<1x1x32xf32>
    %139 = vector.shape_cast %138 : vector<1x1x32xf32> to vector<1x32xf32>
    %140 = vector.broadcast %139 : vector<1x32xf32> to vector<16x32xf32>
    %141 = arith.addf %137, %140 : vector<16x32xf32>
    %142 = arith.addf %125, %141 : vector<16x32xf32>
    %c0_63 = arith.constant 0 : index
    %c0_64 = arith.constant 0 : index
    %c0_65 = arith.constant 0 : index
    %143 = vector.load %arg11[%c0_63, %c0_64, %c0_65] : memref<2x1x32xf32, #tpu.memory_space<vmem>>, vector<1x1x32xf32>
    %144 = vector.shape_cast %143 : vector<1x1x32xf32> to vector<1x32xf32>
    %c0_66 = arith.constant 0 : index
    %c0_67 = arith.constant 0 : index
    %c0_68 = arith.constant 0 : index
    %145 = vector.load %arg12[%c0_66, %c0_67, %c0_68] : memref<2x1x32xf32, #tpu.memory_space<vmem>>, vector<1x1x32xf32>
    %146 = vector.shape_cast %145 : vector<1x1x32xf32> to vector<1x32xf32>
    %cst_69 = arith.constant dense<0.000000e+00> : vector<16xf32>
    %147 = vector.multi_reduction <add>, %142, %cst_69 [1] : vector<16x32xf32> to vector<16xf32>
    %148 = vector.shape_cast %147 : vector<16xf32> to vector<16x1xf32>
    %cst_70 = arith.constant 3.200000e+01 : f32
    %149 = vector.broadcast %cst_70 : f32 to vector<16x1xf32>
    %150 = arith.divf %148, %149 : vector<16x1xf32>
    %151 = vector.broadcast %150 : vector<16x1xf32> to vector<16x32xf32>
    %152 = arith.subf %142, %151 : vector<16x32xf32>
    %153 = arith.mulf %152, %152 : vector<16x32xf32>
    %cst_71 = arith.constant dense<0.000000e+00> : vector<16xf32>
    %154 = vector.multi_reduction <add>, %153, %cst_71 [1] : vector<16x32xf32> to vector<16xf32>
    %155 = vector.shape_cast %154 : vector<16xf32> to vector<16x1xf32>
    %cst_72 = arith.constant 3.200000e+01 : f32
    %156 = vector.broadcast %cst_72 : f32 to vector<16x1xf32>
    %157 = arith.divf %155, %156 : vector<16x1xf32>
    %158 = vector.broadcast %150 : vector<16x1xf32> to vector<16x32xf32>
    %159 = arith.subf %142, %158 : vector<16x32xf32>
    %cst_73 = arith.constant 9.99999974E-6 : f32
    %160 = vector.broadcast %cst_73 : f32 to vector<16x1xf32>
    %161 = arith.addf %157, %160 : vector<16x1xf32>
    %162 = math.rsqrt %161 : vector<16x1xf32>
    %163 = vector.broadcast %162 : vector<16x1xf32> to vector<16x32xf32>
    %164 = arith.mulf %159, %163 : vector<16x32xf32>
    %165 = vector.broadcast %144 : vector<1x32xf32> to vector<16x32xf32>
    %166 = arith.mulf %164, %165 : vector<16x32xf32>
    %167 = vector.broadcast %146 : vector<1x32xf32> to vector<16x32xf32>
    %168 = arith.addf %166, %167 : vector<16x32xf32>
    %c1 = arith.constant 1 : index
    %c0_74 = arith.constant 0 : index
    %c0_75 = arith.constant 0 : index
    %169 = vector.load %arg2[%c1, %c0_74, %c0_75] : memref<2x32x96xf32, #tpu.memory_space<vmem>>, vector<1x32x96xf32>
    %170 = vector.shape_cast %169 : vector<1x32x96xf32> to vector<32x96xf32>
    %cst_76 = arith.constant dense<0.000000e+00> : vector<16x96xf32>
    %171 = tpu.matmul %168, %170, %cst_76 {dimension_numbers = #tpu.dot_dimension_numbers<[1], [0], [0], [1], [0, 0, 1, 1], [], []>} : vector<16x32xf32>, vector<32x96xf32>, vector<16x96xf32> -> vector<16x96xf32>
    %172 = vector.extract_strided_slice %171 {offsets = [0, 0], sizes = [16, 32], strides = [1, 1]} : vector<16x96xf32> to vector<16x32xf32>
    %173 = vector.extract_strided_slice %171 {offsets = [0, 32], sizes = [16, 32], strides = [1, 1]} : vector<16x96xf32> to vector<16x32xf32>
    %174 = vector.extract_strided_slice %171 {offsets = [0, 64], sizes = [16, 32], strides = [1, 1]} : vector<16x96xf32> to vector<16x32xf32>
    %c1_77 = arith.constant 1 : index
    %c0_78 = arith.constant 0 : index
    %c0_79 = arith.constant 0 : index
    %175 = vector.load %arg3[%c1_77, %c0_78, %c0_79] : memref<2x32x32xf32, #tpu.memory_space<vmem>>, vector<1x32x32xf32>
    %176 = vector.shape_cast %175 : vector<1x32x32xf32> to vector<32x32xf32>
    %cst_80 = arith.constant 0.000000e+00 : f32
    %177 = vector.broadcast %cst_80 : f32 to vector<16x32xf32>
    %178 = vector.extract_strided_slice %172 {offsets = [0, 0], sizes = [16, 8], strides = [1, 1]} : vector<16x32xf32> to vector<16x8xf32>
    %179 = vector.extract_strided_slice %173 {offsets = [0, 0], sizes = [16, 8], strides = [1, 1]} : vector<16x32xf32> to vector<16x8xf32>
    %180 = vector.extract_strided_slice %174 {offsets = [0, 0], sizes = [16, 8], strides = [1, 1]} : vector<16x32xf32> to vector<16x8xf32>
    %cst_81 = arith.constant dense<0.000000e+00> : vector<16x16xf32>
    %181 = tpu.matmul %178, %179, %cst_81 {dimension_numbers = #tpu.dot_dimension_numbers<[1], [1], [0], [0], [0, 0, 1, 0], [], []>} : vector<16x8xf32>, vector<16x8xf32>, vector<16x16xf32> -> vector<16x16xf32>
    %cst_82 = arith.constant 0.353553385 : f32
    %182 = vector.broadcast %cst_82 : f32 to vector<16x16xf32>
    %183 = arith.mulf %181, %182 : vector<16x16xf32>
    %184 = arith.addf %183, %1 : vector<16x16xf32>
    %cst_83 = arith.constant dense<0xFF800000> : vector<16xf32>
    %185 = vector.multi_reduction <maximumf>, %184, %cst_83 [1] : vector<16x16xf32> to vector<16xf32>
    %186 = vector.shape_cast %185 : vector<16xf32> to vector<16x1xf32>
    %187 = vector.broadcast %186 : vector<16x1xf32> to vector<16x16xf32>
    %188 = arith.subf %184, %187 : vector<16x16xf32>
    %189 = math.exp %188 : vector<16x16xf32>
    %cst_84 = arith.constant dense<0.000000e+00> : vector<16xf32>
    %190 = vector.multi_reduction <add>, %189, %cst_84 [1] : vector<16x16xf32> to vector<16xf32>
    %191 = vector.shape_cast %190 : vector<16xf32> to vector<16x1xf32>
    %192 = tpu.reciprocal %191 {approx = true} : vector<16x1xf32> -> vector<16x1xf32>
    %193 = vector.broadcast %192 : vector<16x1xf32> to vector<16x16xf32>
    %194 = arith.mulf %189, %193 : vector<16x16xf32>
    %cst_85 = arith.constant dense<0.000000e+00> : vector<16x8xf32>
    %195 = tpu.matmul %194, %180, %cst_85 {dimension_numbers = #tpu.dot_dimension_numbers<[1], [0], [0], [1], [0, 0, 1, 1], [], []>} : vector<16x16xf32>, vector<16x8xf32>, vector<16x8xf32> -> vector<16x8xf32>
    %196 = vector.extract_strided_slice %176 {offsets = [0, 0], sizes = [8, 32], strides = [1, 1]} : vector<32x32xf32> to vector<8x32xf32>
    %cst_86 = arith.constant dense<0.000000e+00> : vector<16x32xf32>
    %197 = tpu.matmul %195, %196, %cst_86 {dimension_numbers = #tpu.dot_dimension_numbers<[1], [0], [0], [1], [0, 0, 1, 1], [], []>} : vector<16x8xf32>, vector<8x32xf32>, vector<16x32xf32> -> vector<16x32xf32>
    %198 = arith.addf %177, %197 : vector<16x32xf32>
    %199 = vector.extract_strided_slice %172 {offsets = [0, 8], sizes = [16, 8], strides = [1, 1]} : vector<16x32xf32> to vector<16x8xf32>
    %200 = vector.extract_strided_slice %173 {offsets = [0, 8], sizes = [16, 8], strides = [1, 1]} : vector<16x32xf32> to vector<16x8xf32>
    %201 = vector.extract_strided_slice %174 {offsets = [0, 8], sizes = [16, 8], strides = [1, 1]} : vector<16x32xf32> to vector<16x8xf32>
    %cst_87 = arith.constant dense<0.000000e+00> : vector<16x16xf32>
    %202 = tpu.matmul %199, %200, %cst_87 {dimension_numbers = #tpu.dot_dimension_numbers<[1], [1], [0], [0], [0, 0, 1, 0], [], []>} : vector<16x8xf32>, vector<16x8xf32>, vector<16x16xf32> -> vector<16x16xf32>
    %cst_88 = arith.constant 0.353553385 : f32
    %203 = vector.broadcast %cst_88 : f32 to vector<16x16xf32>
    %204 = arith.mulf %202, %203 : vector<16x16xf32>
    %205 = arith.addf %204, %1 : vector<16x16xf32>
    %cst_89 = arith.constant dense<0xFF800000> : vector<16xf32>
    %206 = vector.multi_reduction <maximumf>, %205, %cst_89 [1] : vector<16x16xf32> to vector<16xf32>
    %207 = vector.shape_cast %206 : vector<16xf32> to vector<16x1xf32>
    %208 = vector.broadcast %207 : vector<16x1xf32> to vector<16x16xf32>
    %209 = arith.subf %205, %208 : vector<16x16xf32>
    %210 = math.exp %209 : vector<16x16xf32>
    %cst_90 = arith.constant dense<0.000000e+00> : vector<16xf32>
    %211 = vector.multi_reduction <add>, %210, %cst_90 [1] : vector<16x16xf32> to vector<16xf32>
    %212 = vector.shape_cast %211 : vector<16xf32> to vector<16x1xf32>
    %213 = tpu.reciprocal %212 {approx = true} : vector<16x1xf32> -> vector<16x1xf32>
    %214 = vector.broadcast %213 : vector<16x1xf32> to vector<16x16xf32>
    %215 = arith.mulf %210, %214 : vector<16x16xf32>
    %cst_91 = arith.constant dense<0.000000e+00> : vector<16x8xf32>
    %216 = tpu.matmul %215, %201, %cst_91 {dimension_numbers = #tpu.dot_dimension_numbers<[1], [0], [0], [1], [0, 0, 1, 1], [], []>} : vector<16x16xf32>, vector<16x8xf32>, vector<16x8xf32> -> vector<16x8xf32>
    %217 = vector.extract_strided_slice %176 {offsets = [8, 0], sizes = [8, 32], strides = [1, 1]} : vector<32x32xf32> to vector<8x32xf32>
    %cst_92 = arith.constant dense<0.000000e+00> : vector<16x32xf32>
    %218 = tpu.matmul %216, %217, %cst_92 {dimension_numbers = #tpu.dot_dimension_numbers<[1], [0], [0], [1], [0, 0, 1, 1], [], []>} : vector<16x8xf32>, vector<8x32xf32>, vector<16x32xf32> -> vector<16x32xf32>
    %219 = arith.addf %198, %218 : vector<16x32xf32>
    %220 = vector.extract_strided_slice %172 {offsets = [0, 16], sizes = [16, 8], strides = [1, 1]} : vector<16x32xf32> to vector<16x8xf32>
    %221 = vector.extract_strided_slice %173 {offsets = [0, 16], sizes = [16, 8], strides = [1, 1]} : vector<16x32xf32> to vector<16x8xf32>
    %222 = vector.extract_strided_slice %174 {offsets = [0, 16], sizes = [16, 8], strides = [1, 1]} : vector<16x32xf32> to vector<16x8xf32>
    %cst_93 = arith.constant dense<0.000000e+00> : vector<16x16xf32>
    %223 = tpu.matmul %220, %221, %cst_93 {dimension_numbers = #tpu.dot_dimension_numbers<[1], [1], [0], [0], [0, 0, 1, 0], [], []>} : vector<16x8xf32>, vector<16x8xf32>, vector<16x16xf32> -> vector<16x16xf32>
    %cst_94 = arith.constant 0.353553385 : f32
    %224 = vector.broadcast %cst_94 : f32 to vector<16x16xf32>
    %225 = arith.mulf %223, %224 : vector<16x16xf32>
    %226 = arith.addf %225, %1 : vector<16x16xf32>
    %cst_95 = arith.constant dense<0xFF800000> : vector<16xf32>
    %227 = vector.multi_reduction <maximumf>, %226, %cst_95 [1] : vector<16x16xf32> to vector<16xf32>
    %228 = vector.shape_cast %227 : vector<16xf32> to vector<16x1xf32>
    %229 = vector.broadcast %228 : vector<16x1xf32> to vector<16x16xf32>
    %230 = arith.subf %226, %229 : vector<16x16xf32>
    %231 = math.exp %230 : vector<16x16xf32>
    %cst_96 = arith.constant dense<0.000000e+00> : vector<16xf32>
    %232 = vector.multi_reduction <add>, %231, %cst_96 [1] : vector<16x16xf32> to vector<16xf32>
    %233 = vector.shape_cast %232 : vector<16xf32> to vector<16x1xf32>
    %234 = tpu.reciprocal %233 {approx = true} : vector<16x1xf32> -> vector<16x1xf32>
    %235 = vector.broadcast %234 : vector<16x1xf32> to vector<16x16xf32>
    %236 = arith.mulf %231, %235 : vector<16x16xf32>
    %cst_97 = arith.constant dense<0.000000e+00> : vector<16x8xf32>
    %237 = tpu.matmul %236, %222, %cst_97 {dimension_numbers = #tpu.dot_dimension_numbers<[1], [0], [0], [1], [0, 0, 1, 1], [], []>} : vector<16x16xf32>, vector<16x8xf32>, vector<16x8xf32> -> vector<16x8xf32>
    %238 = vector.extract_strided_slice %176 {offsets = [16, 0], sizes = [8, 32], strides = [1, 1]} : vector<32x32xf32> to vector<8x32xf32>
    %cst_98 = arith.constant dense<0.000000e+00> : vector<16x32xf32>
    %239 = tpu.matmul %237, %238, %cst_98 {dimension_numbers = #tpu.dot_dimension_numbers<[1], [0], [0], [1], [0, 0, 1, 1], [], []>} : vector<16x8xf32>, vector<8x32xf32>, vector<16x32xf32> -> vector<16x32xf32>
    %240 = arith.addf %219, %239 : vector<16x32xf32>
    %241 = vector.extract_strided_slice %172 {offsets = [0, 24], sizes = [16, 8], strides = [1, 1]} : vector<16x32xf32> to vector<16x8xf32>
    %242 = vector.extract_strided_slice %173 {offsets = [0, 24], sizes = [16, 8], strides = [1, 1]} : vector<16x32xf32> to vector<16x8xf32>
    %243 = vector.extract_strided_slice %174 {offsets = [0, 24], sizes = [16, 8], strides = [1, 1]} : vector<16x32xf32> to vector<16x8xf32>
    %cst_99 = arith.constant dense<0.000000e+00> : vector<16x16xf32>
    %244 = tpu.matmul %241, %242, %cst_99 {dimension_numbers = #tpu.dot_dimension_numbers<[1], [1], [0], [0], [0, 0, 1, 0], [], []>} : vector<16x8xf32>, vector<16x8xf32>, vector<16x16xf32> -> vector<16x16xf32>
    %cst_100 = arith.constant 0.353553385 : f32
    %245 = vector.broadcast %cst_100 : f32 to vector<16x16xf32>
    %246 = arith.mulf %244, %245 : vector<16x16xf32>
    %247 = arith.addf %246, %1 : vector<16x16xf32>
    %cst_101 = arith.constant dense<0xFF800000> : vector<16xf32>
    %248 = vector.multi_reduction <maximumf>, %247, %cst_101 [1] : vector<16x16xf32> to vector<16xf32>
    %249 = vector.shape_cast %248 : vector<16xf32> to vector<16x1xf32>
    %250 = vector.broadcast %249 : vector<16x1xf32> to vector<16x16xf32>
    %251 = arith.subf %247, %250 : vector<16x16xf32>
    %252 = math.exp %251 : vector<16x16xf32>
    %cst_102 = arith.constant dense<0.000000e+00> : vector<16xf32>
    %253 = vector.multi_reduction <add>, %252, %cst_102 [1] : vector<16x16xf32> to vector<16xf32>
    %254 = vector.shape_cast %253 : vector<16xf32> to vector<16x1xf32>
    %255 = tpu.reciprocal %254 {approx = true} : vector<16x1xf32> -> vector<16x1xf32>
    %256 = vector.broadcast %255 : vector<16x1xf32> to vector<16x16xf32>
    %257 = arith.mulf %252, %256 : vector<16x16xf32>
    %cst_103 = arith.constant dense<0.000000e+00> : vector<16x8xf32>
    %258 = tpu.matmul %257, %243, %cst_103 {dimension_numbers = #tpu.dot_dimension_numbers<[1], [0], [0], [1], [0, 0, 1, 1], [], []>} : vector<16x16xf32>, vector<16x8xf32>, vector<16x8xf32> -> vector<16x8xf32>
    %259 = vector.extract_strided_slice %176 {offsets = [24, 0], sizes = [8, 32], strides = [1, 1]} : vector<32x32xf32> to vector<8x32xf32>
    %cst_104 = arith.constant dense<0.000000e+00> : vector<16x32xf32>
    %260 = tpu.matmul %258, %259, %cst_104 {dimension_numbers = #tpu.dot_dimension_numbers<[1], [0], [0], [1], [0, 0, 1, 1], [], []>} : vector<16x8xf32>, vector<8x32xf32>, vector<16x32xf32> -> vector<16x32xf32>
    %261 = arith.addf %240, %260 : vector<16x32xf32>
    %c1_105 = arith.constant 1 : index
    %c0_106 = arith.constant 0 : index
    %c0_107 = arith.constant 0 : index
    %262 = vector.load %arg4[%c1_105, %c0_106, %c0_107] : memref<2x1x32xf32, #tpu.memory_space<vmem>>, vector<1x1x32xf32>
    %263 = vector.shape_cast %262 : vector<1x1x32xf32> to vector<1x32xf32>
    %264 = vector.broadcast %263 : vector<1x32xf32> to vector<16x32xf32>
    %265 = arith.addf %261, %264 : vector<16x32xf32>
    %266 = arith.addf %168, %265 : vector<16x32xf32>
    %c1_108 = arith.constant 1 : index
    %c0_109 = arith.constant 0 : index
    %c0_110 = arith.constant 0 : index
    %267 = vector.load %arg5[%c1_108, %c0_109, %c0_110] : memref<2x1x32xf32, #tpu.memory_space<vmem>>, vector<1x1x32xf32>
    %268 = vector.shape_cast %267 : vector<1x1x32xf32> to vector<1x32xf32>
    %c1_111 = arith.constant 1 : index
    %c0_112 = arith.constant 0 : index
    %c0_113 = arith.constant 0 : index
    %269 = vector.load %arg6[%c1_111, %c0_112, %c0_113] : memref<2x1x32xf32, #tpu.memory_space<vmem>>, vector<1x1x32xf32>
    %270 = vector.shape_cast %269 : vector<1x1x32xf32> to vector<1x32xf32>
    %cst_114 = arith.constant dense<0.000000e+00> : vector<16xf32>
    %271 = vector.multi_reduction <add>, %266, %cst_114 [1] : vector<16x32xf32> to vector<16xf32>
    %272 = vector.shape_cast %271 : vector<16xf32> to vector<16x1xf32>
    %cst_115 = arith.constant 3.200000e+01 : f32
    %273 = vector.broadcast %cst_115 : f32 to vector<16x1xf32>
    %274 = arith.divf %272, %273 : vector<16x1xf32>
    %275 = vector.broadcast %274 : vector<16x1xf32> to vector<16x32xf32>
    %276 = arith.subf %266, %275 : vector<16x32xf32>
    %277 = arith.mulf %276, %276 : vector<16x32xf32>
    %cst_116 = arith.constant dense<0.000000e+00> : vector<16xf32>
    %278 = vector.multi_reduction <add>, %277, %cst_116 [1] : vector<16x32xf32> to vector<16xf32>
    %279 = vector.shape_cast %278 : vector<16xf32> to vector<16x1xf32>
    %cst_117 = arith.constant 3.200000e+01 : f32
    %280 = vector.broadcast %cst_117 : f32 to vector<16x1xf32>
    %281 = arith.divf %279, %280 : vector<16x1xf32>
    %282 = vector.broadcast %274 : vector<16x1xf32> to vector<16x32xf32>
    %283 = arith.subf %266, %282 : vector<16x32xf32>
    %cst_118 = arith.constant 9.99999974E-6 : f32
    %284 = vector.broadcast %cst_118 : f32 to vector<16x1xf32>
    %285 = arith.addf %281, %284 : vector<16x1xf32>
    %286 = math.rsqrt %285 : vector<16x1xf32>
    %287 = vector.broadcast %286 : vector<16x1xf32> to vector<16x32xf32>
    %288 = arith.mulf %283, %287 : vector<16x32xf32>
    %289 = vector.broadcast %268 : vector<1x32xf32> to vector<16x32xf32>
    %290 = arith.mulf %288, %289 : vector<16x32xf32>
    %291 = vector.broadcast %270 : vector<1x32xf32> to vector<16x32xf32>
    %292 = arith.addf %290, %291 : vector<16x32xf32>
    %c1_119 = arith.constant 1 : index
    %c0_120 = arith.constant 0 : index
    %c0_121 = arith.constant 0 : index
    %293 = vector.load %arg7[%c1_119, %c0_120, %c0_121] : memref<2x32x128xf32, #tpu.memory_space<vmem>>, vector<1x32x128xf32>
    %294 = vector.shape_cast %293 : vector<1x32x128xf32> to vector<32x128xf32>
    %cst_122 = arith.constant dense<0.000000e+00> : vector<16x128xf32>
    %295 = tpu.matmul %292, %294, %cst_122 {dimension_numbers = #tpu.dot_dimension_numbers<[1], [0], [0], [1], [0, 0, 1, 1], [], []>} : vector<16x32xf32>, vector<32x128xf32>, vector<16x128xf32> -> vector<16x128xf32>
    %c1_123 = arith.constant 1 : index
    %c0_124 = arith.constant 0 : index
    %c0_125 = arith.constant 0 : index
    %296 = vector.load %arg8[%c1_123, %c0_124, %c0_125] : memref<2x1x128xf32, #tpu.memory_space<vmem>>, vector<1x1x128xf32>
    %297 = vector.shape_cast %296 : vector<1x1x128xf32> to vector<1x128xf32>
    %298 = vector.broadcast %297 : vector<1x128xf32> to vector<16x128xf32>
    %299 = arith.addf %295, %298 : vector<16x128xf32>
    %cst_126 = arith.constant 0.000000e+00 : f32
    %300 = vector.broadcast %cst_126 : f32 to vector<16x128xf32>
    %301 = arith.maximumf %299, %300 : vector<16x128xf32>
    %c1_127 = arith.constant 1 : index
    %c0_128 = arith.constant 0 : index
    %c0_129 = arith.constant 0 : index
    %302 = vector.load %arg9[%c1_127, %c0_128, %c0_129] : memref<2x128x32xf32, #tpu.memory_space<vmem>>, vector<1x128x32xf32>
    %303 = vector.shape_cast %302 : vector<1x128x32xf32> to vector<128x32xf32>
    %cst_130 = arith.constant dense<0.000000e+00> : vector<16x32xf32>
    %304 = tpu.matmul %301, %303, %cst_130 {dimension_numbers = #tpu.dot_dimension_numbers<[1], [0], [0], [1], [0, 0, 1, 1], [], []>} : vector<16x128xf32>, vector<128x32xf32>, vector<16x32xf32> -> vector<16x32xf32>
    %c1_131 = arith.constant 1 : index
    %c0_132 = arith.constant 0 : index
    %c0_133 = arith.constant 0 : index
    %305 = vector.load %arg10[%c1_131, %c0_132, %c0_133] : memref<2x1x32xf32, #tpu.memory_space<vmem>>, vector<1x1x32xf32>
    %306 = vector.shape_cast %305 : vector<1x1x32xf32> to vector<1x32xf32>
    %307 = vector.broadcast %306 : vector<1x32xf32> to vector<16x32xf32>
    %308 = arith.addf %304, %307 : vector<16x32xf32>
    %309 = arith.addf %292, %308 : vector<16x32xf32>
    %c1_134 = arith.constant 1 : index
    %c0_135 = arith.constant 0 : index
    %c0_136 = arith.constant 0 : index
    %310 = vector.load %arg11[%c1_134, %c0_135, %c0_136] : memref<2x1x32xf32, #tpu.memory_space<vmem>>, vector<1x1x32xf32>
    %311 = vector.shape_cast %310 : vector<1x1x32xf32> to vector<1x32xf32>
    %c1_137 = arith.constant 1 : index
    %c0_138 = arith.constant 0 : index
    %c0_139 = arith.constant 0 : index
    %312 = vector.load %arg12[%c1_137, %c0_138, %c0_139] : memref<2x1x32xf32, #tpu.memory_space<vmem>>, vector<1x1x32xf32>
    %313 = vector.shape_cast %312 : vector<1x1x32xf32> to vector<1x32xf32>
    %cst_140 = arith.constant dense<0.000000e+00> : vector<16xf32>
    %314 = vector.multi_reduction <add>, %309, %cst_140 [1] : vector<16x32xf32> to vector<16xf32>
    %315 = vector.shape_cast %314 : vector<16xf32> to vector<16x1xf32>
    %cst_141 = arith.constant 3.200000e+01 : f32
    %316 = vector.broadcast %cst_141 : f32 to vector<16x1xf32>
    %317 = arith.divf %315, %316 : vector<16x1xf32>
    %318 = vector.broadcast %317 : vector<16x1xf32> to vector<16x32xf32>
    %319 = arith.subf %309, %318 : vector<16x32xf32>
    %320 = arith.mulf %319, %319 : vector<16x32xf32>
    %cst_142 = arith.constant dense<0.000000e+00> : vector<16xf32>
    %321 = vector.multi_reduction <add>, %320, %cst_142 [1] : vector<16x32xf32> to vector<16xf32>
    %322 = vector.shape_cast %321 : vector<16xf32> to vector<16x1xf32>
    %cst_143 = arith.constant 3.200000e+01 : f32
    %323 = vector.broadcast %cst_143 : f32 to vector<16x1xf32>
    %324 = arith.divf %322, %323 : vector<16x1xf32>
    %325 = vector.broadcast %317 : vector<16x1xf32> to vector<16x32xf32>
    %326 = arith.subf %309, %325 : vector<16x32xf32>
    %cst_144 = arith.constant 9.99999974E-6 : f32
    %327 = vector.broadcast %cst_144 : f32 to vector<16x1xf32>
    %328 = arith.addf %324, %327 : vector<16x1xf32>
    %329 = math.rsqrt %328 : vector<16x1xf32>
    %330 = vector.broadcast %329 : vector<16x1xf32> to vector<16x32xf32>
    %331 = arith.mulf %326, %330 : vector<16x32xf32>
    %332 = vector.broadcast %311 : vector<1x32xf32> to vector<16x32xf32>
    %333 = arith.mulf %331, %332 : vector<16x32xf32>
    %334 = vector.broadcast %313 : vector<1x32xf32> to vector<16x32xf32>
    %335 = arith.addf %333, %334 : vector<16x32xf32>
    %c0_145 = arith.constant 0 : index
    %c0_146 = arith.constant 0 : index
    %336 = vector.load %arg13[%c0_145, %c0_146] : memref<1x32xf32, #tpu.memory_space<vmem>>, vector<1x32xf32>
    %c0_147 = arith.constant 0 : index
    %c0_148 = arith.constant 0 : index
    %337 = vector.load %arg14[%c0_147, %c0_148] : memref<1x32xf32, #tpu.memory_space<vmem>>, vector<1x32xf32>
    %cst_149 = arith.constant dense<0.000000e+00> : vector<16xf32>
    %338 = vector.multi_reduction <add>, %335, %cst_149 [1] : vector<16x32xf32> to vector<16xf32>
    %339 = vector.shape_cast %338 : vector<16xf32> to vector<16x1xf32>
    %cst_150 = arith.constant 3.200000e+01 : f32
    %340 = vector.broadcast %cst_150 : f32 to vector<16x1xf32>
    %341 = arith.divf %339, %340 : vector<16x1xf32>
    %342 = vector.broadcast %341 : vector<16x1xf32> to vector<16x32xf32>
    %343 = arith.subf %335, %342 : vector<16x32xf32>
    %344 = arith.mulf %343, %343 : vector<16x32xf32>
    %cst_151 = arith.constant dense<0.000000e+00> : vector<16xf32>
    %345 = vector.multi_reduction <add>, %344, %cst_151 [1] : vector<16x32xf32> to vector<16xf32>
    %346 = vector.shape_cast %345 : vector<16xf32> to vector<16x1xf32>
    %cst_152 = arith.constant 3.200000e+01 : f32
    %347 = vector.broadcast %cst_152 : f32 to vector<16x1xf32>
    %348 = arith.divf %346, %347 : vector<16x1xf32>
    %349 = vector.broadcast %341 : vector<16x1xf32> to vector<16x32xf32>
    %350 = arith.subf %335, %349 : vector<16x32xf32>
    %cst_153 = arith.constant 9.99999974E-6 : f32
    %351 = vector.broadcast %cst_153 : f32 to vector<16x1xf32>
    %352 = arith.addf %348, %351 : vector<16x1xf32>
    %353 = math.rsqrt %352 : vector<16x1xf32>
    %354 = vector.broadcast %353 : vector<16x1xf32> to vector<16x32xf32>
    %355 = arith.mulf %350, %354 : vector<16x32xf32>
    %356 = vector.broadcast %336 : vector<1x32xf32> to vector<16x32xf32>
    %357 = arith.mulf %355, %356 : vector<16x32xf32>
    %358 = vector.broadcast %337 : vector<1x32xf32> to vector<16x32xf32>
    %359 = arith.addf %357, %358 : vector<16x32xf32>
    %c0_154 = arith.constant 0 : index
    %c0_155 = arith.constant 0 : index
    %360 = vector.load %arg15[%c0_154, %c0_155] : memref<32x128xf32, #tpu.memory_space<vmem>>, vector<32x128xf32>
    %cst_156 = arith.constant dense<0.000000e+00> : vector<16x128xf32>
    %361 = tpu.matmul %359, %360, %cst_156 {dimension_numbers = #tpu.dot_dimension_numbers<[1], [0], [0], [1], [0, 0, 1, 1], [], []>} : vector<16x32xf32>, vector<32x128xf32>, vector<16x128xf32> -> vector<16x128xf32>
    %c0_157 = arith.constant 0 : index
    %c0_158 = arith.constant 0 : index
    %362 = vector.load %arg16[%c0_157, %c0_158] : memref<1x128xf32, #tpu.memory_space<vmem>>, vector<1x128xf32>
    %363 = vector.broadcast %362 : vector<1x128xf32> to vector<16x128xf32>
    %364 = arith.addf %361, %363 : vector<16x128xf32>
    %c0_159 = arith.constant 0 : index
    %c0_160 = arith.constant 0 : index
    %365 = vector.load %arg17[%c0_159, %c0_160] : memref<16x128xf32, #tpu.memory_space<vmem>>, vector<16x128xf32>
    tpu.vector_store %arg17[%c0_159, %c0_160], %364 {strides = array<i32>} : memref<16x128xf32, #tpu.memory_space<vmem>>, vector<16x128xf32>,
    return
  }
}

</mosaic_0001>

<llo_original>
// kernel: gpt_forward.1
$region0: #{gpt_forward.1}
  #allocation0 [shape = 'u32[]', space=smem, size = 0x4, offset = 0x4, fixed_abs, tag = 'smem constant byte address 0x4 - core index']
  #allocation1 [shape = 'u32[144,128]{1,0:T(1,128)}', space=vmem, size = 0x12000, scoped, tag = 'internal scratch']
  %s0 = inlined_call_operand.vmem [shape: f32[16,32], index: 0, kind: input, shape index: {}]
  %s1 = inlined_call_operand.vmem [shape: f32[16,16], index: 1, kind: input, shape index: {}]
  %s2 = inlined_call_operand.vmem [shape: f32[2,32,96], index: 2, kind: input, shape index: {}]
  %s3 = inlined_call_operand.vmem [shape: f32[2,32,32], index: 3, kind: input, shape index: {}]
  %s4 = inlined_call_operand.vmem [shape: f32[2,1,32], index: 4, kind: input, shape index: {}, may-alias: {4,6,10,12}]
  %s5 = inlined_call_operand.vmem [shape: f32[2,1,32], index: 5, kind: input, shape index: {}, may-alias: {5,11}]
  %s6 = inlined_call_operand.vmem [shape: f32[2,1,32], index: 6, kind: input, shape index: {}, may-alias: {4,6,10,12}]
  %s7 = inlined_call_operand.vmem [shape: f32[2,32,128], index: 7, kind: input, shape index: {}]
  %s8 = inlined_call_operand.vmem [shape: f32[2,1,128], index: 8, kind: input, shape index: {}]
  %s9 = inlined_call_operand.hbm [shape: f32[2,128,32], index: 9, kind: input, shape index: {}]
  %s10 = inlined_call_operand.vmem [shape: f32[2,1,32], index: 10, kind: input, shape index: {}, may-alias: {4,6,10,12}]
  %s11 = inlined_call_operand.vmem [shape: f32[2,1,32], index: 11, kind: input, shape index: {}, may-alias: {5,11}]
  %s12 = inlined_call_operand.vmem [shape: f32[2,1,32], index: 12, kind: input, shape index: {}, may-alias: {4,6,10,12}]
  %s13 = inlined_call_operand.vmem [shape: f32[1,32], index: 13, kind: input, shape index: {}]
  %s14 = inlined_call_operand.vmem [shape: f32[1,32], index: 14, kind: input, shape index: {}]
  %s15 = inlined_call_operand.vmem [shape: f32[32,128], index: 15, kind: input, shape index: {}]
  %s16 = inlined_call_operand.vmem [shape: f32[1,128], index: 16, kind: input, shape index: {}]
  %s17 = inlined_call_operand.vmem [shape: f32[16,128], index: 17, kind: output, shape index: {}]
  %s18 = sld [smem:[#allocation0]]
  $region82: #{gpt_forward.1} parent=0
    _
  %s20 = ssub.s32 1, %s18
  %s21 = scalar_select 0, %s20, %s18
  $region1: #{gpt_forward.1} parent=0
    #allocation2 [shape = 'u8[131072]{0}', space=vmem, size = 0x20000, scoped, tag = 'input window, operand 9, single buffered']
    #allocation3 [shape = 's32[1]{0}', space=sflag, size = 0x4, scoped, tag = 'scoped memory for gpt_forward.1']
    %22 = vsyncpa [#allocation3], 0
    // Predicated region
    $region2: #{gpt_forward.1} parent=1 // pred_check
      _
    $region3: #{gpt_forward.1} parent=1 // pred_check_branch
      %24 = sbr.rel (0) target = $region5
    $region4: #{gpt_forward.1} parent=1 // pred_region
      _
    $region5: #{gpt_forward.1} parent=1 // pred_fallthru
      _
    // Predicated region
    $region6: #{gpt_forward.1} parent=1 // pred_check
      _
    $region7: #{gpt_forward.1} parent=1 // pred_check_branch
      %26 = sbr.rel (0) target = $region9
    $region8: #{gpt_forward.1} parent=1 // pred_region
      _
    $region9: #{gpt_forward.1} parent=1 // pred_fallthru
      _
    // Predicated region
    $region10: #{gpt_forward.1} parent=1 // pred_check
      _
    $region11: #{gpt_forward.1} parent=1 // pred_check_branch
      %28 = sbr.rel (0) target = $region13
    $region12: #{gpt_forward.1} parent=1 // pred_region
      _
    $region13: #{gpt_forward.1} parent=1 // pred_fallthru
      _
    // Predicated region
    $region14: #{gpt_forward.1} parent=1 // pred_check
      _
    $region15: #{gpt_forward.1} parent=1 // pred_check_branch
      %30 = sbr.rel (0) target = $region17
    $region16: #{gpt_forward.1} parent=1 // pred_region
      _
    $region17: #{gpt_forward.1} parent=1 // pred_fallthru
      _
    // Predicated region
    $region18: #{gpt_forward.1} parent=1 // pred_check
      _
    $region19: #{gpt_forward.1} parent=1 // pred_check_branch
      %32 = sbr.rel (0) target = $region21
    $region20: #{gpt_forward.1} parent=1 // pred_region
      _
    $region21: #{gpt_forward.1} parent=1 // pred_fallthru
      _
    // Predicated region
    $region22: #{gpt_forward.1} parent=1 // pred_check
      _
    $region23: #{gpt_forward.1} parent=1 // pred_check_branch
      %34 = sbr.rel (0) target = $region25
    $region24: #{gpt_forward.1} parent=1 // pred_region
      _
    $region25: #{gpt_forward.1} parent=1 // pred_fallthru
      _
    // Predicated region
    $region26: #{gpt_forward.1} parent=1 // pred_check
      _
    $region27: #{gpt_forward.1} parent=1 // pred_check_branch
      %36 = sbr.rel (0) target = $region29
    $region28: #{gpt_forward.1} parent=1 // pred_region
      _
    $region29: #{gpt_forward.1} parent=1 // pred_fallthru
      _
    // Predicated region
    $region30: #{gpt_forward.1} parent=1 // pred_check
      _
    $region31: #{gpt_forward.1} parent=1 // pred_check_branch
      %38 = sbr.rel (0) target = $region33
    $region32: #{gpt_forward.1} parent=1 // pred_region
      _
    $region33: #{gpt_forward.1} parent=1 // pred_fallthru
      _
    // Predicated region
    $region34: #{gpt_forward.1} parent=1 // pred_check
      _
    $region35: #{gpt_forward.1} parent=1 // pred_check_branch
      %40 = sbr.rel (0) target = $region37
    $region36: #{gpt_forward.1} parent=1 // pred_region
      _
    $region37: #{gpt_forward.1} parent=1 // pred_fallthru
      _
    // Predicated region
    $region38: #{gpt_forward.1} parent=1 // pred_check
      _
    $region39: #{gpt_forward.1} parent=1 // pred_check_branch
      %42 = sbr.rel (0) target = $region41
    $region40: #{gpt_forward.1} parent=1 // pred_region
      %s44 = ssub.s32 4096, 4096
      %45 = vsyncadd [#allocation3], %s44
      %s46 = sshll.u32 [#allocation2], 4
      %s47 = int_to_ptr.vmem [resolvable:$true] %s46
      %52 = dma.hbm_to_vmem [thread:$0]  %s9, 4096, %s47, [#allocation3], 128, 128, 8
    $region41: #{gpt_forward.1} parent=1 // pred_fallthru
      _
    // Predicated region
    $region42: #{gpt_forward.1} parent=1 // pred_check
      _
    $region43: #{gpt_forward.1} parent=1 // pred_check_branch
      %54 = sbr.rel (0) target = $region45
    $region44: #{gpt_forward.1} parent=1 // pred_region
      _
    $region45: #{gpt_forward.1} parent=1 // pred_fallthru
      _
    // Predicated region
    $region46: #{gpt_forward.1} parent=1 // pred_check
      _
    $region47: #{gpt_forward.1} parent=1 // pred_check_branch
      %56 = sbr.rel (0) target = $region49
    $region48: #{gpt_forward.1} parent=1 // pred_region
      _
    $region49: #{gpt_forward.1} parent=1 // pred_fallthru
      _
    // Predicated region
    $region50: #{gpt_forward.1} parent=1 // pred_check
      _
    $region51: #{gpt_forward.1} parent=1 // pred_check_branch
      %58 = sbr.rel (0) target = $region53
    $region52: #{gpt_forward.1} parent=1 // pred_region
      _
    $region53: #{gpt_forward.1} parent=1 // pred_fallthru
      _
    // Predicated region
    $region54: #{gpt_forward.1} parent=1 // pred_check
      _
    $region55: #{gpt_forward.1} parent=1 // pred_check_branch
      %60 = sbr.rel (0) target = $region57
    $region56: #{gpt_forward.1} parent=1 // pred_region
      _
    $region57: #{gpt_forward.1} parent=1 // pred_fallthru
      _
    // Predicated region
    $region58: #{gpt_forward.1} parent=1 // pred_check
      _
    $region59: #{gpt_forward.1} parent=1 // pred_check_branch
      %62 = sbr.rel (0) target = $region61
    $region60: #{gpt_forward.1} parent=1 // pred_region
      _
    $region61: #{gpt_forward.1} parent=1 // pred_fallthru
      _
    // Predicated region
    $region62: #{gpt_forward.1} parent=1 // pred_check
      _
    $region63: #{gpt_forward.1} parent=1 // pred_check_branch
      %64 = sbr.rel (0) target = $region65
    $region64: #{gpt_forward.1} parent=1 // pred_region
      _
    $region65: #{gpt_forward.1} parent=1 // pred_fallthru
      _
    // Predicated region
    $region66: #{gpt_forward.1} parent=1 // pred_check
      _
    $region67: #{gpt_forward.1} parent=1 // pred_check_branch
      %66 = sbr.rel (0) target = $region69
    $region68: #{gpt_forward.1} parent=1 // pred_region
      _
    $region69: #{gpt_forward.1} parent=1 // pred_fallthru
      _
    // Predicated region
    $region70: #{gpt_forward.1} parent=1 // pred_check
      _
    $region71: #{gpt_forward.1} parent=1 // pred_check_branch
      %68 = sbr.rel (0) target = $region73
    $region72: #{gpt_forward.1} parent=1 // pred_region
      %69 = dma.done [#allocation3], 4096
    $region73: #{gpt_forward.1} parent=1 // pred_fallthru
      _
    %v70 = vld [vmem:[%s0] sm:$0xff]
    %v71 = vld [vmem:[%s0 + $0x8] sm:$0xff]
    %v72 = vld [vmem:[%s1] sm:$0xff]
    %v73 = vld [vmem:[%s1 + $0x8] sm:$0xff]
    %v74 = vld [vmem:[%s2] sm:$0xff]
    %v75 = vld [vmem:[%s2 + $0x8] sm:$0xff]
    %v76 = vld [vmem:[%s2 + $0x10] sm:$0xff]
    %v77 = vld [vmem:[%s2 + $0x18] sm:$0xff]
    %vm78 = vcmask 261120
    %v80 = vsel %vm78, %v70, 0
    %v83 = vsel %vm78, %v71, 0
    %85 = vmatprep.subr.mxu0 0.0
    %86 = vmatpush1.msra.mxu0 %v74
    %87 = vmatprep.subr.mxu0 0.0
    %88 = vmatpush1.msra.mxu0 %v75
    %89 = vmatprep.subr.mxu0 0.0
    %90 = vmatpush1.msra.mxu0 %v76
    %91 = vmatprep.subr.mxu0 0.0
    %92 = vmatpush1.msra.mxu0 %v77
    %93 = vmatprep.subr.mxu0 0.0
    %94 = vmatpush1.msra.mxu0 0.0
    %95 = vmatprep.subr.mxu0 0.0
    %96 = vmatpush1.msra.mxu0 0.0
    %97 = vmatprep.subr.mxu0 0.0
    %98 = vmatpush1.msra.mxu0 0.0
    %99 = vmatprep.subr.mxu0 0.0
    %100 = vmatpush1.msra.mxu0 0.0
    %101 = vmatprep.subr.mxu0 0.0
    %102 = vmatpush1.msra.mxu0 0.0
    %103 = vmatprep.subr.mxu0 0.0
    %104 = vmatpush1.msra.mxu0 0.0
    %105 = vmatprep.subr.mxu0 0.0
    %106 = vmatpush1.msra.mxu0 0.0
    %107 = vmatprep.subr.mxu0 0.0
    %108 = vmatpush1.msra.mxu0 0.0
    %109 = vmatprep.subr.mxu0 0.0
    %110 = vmatpush1.msra.mxu0 0.0
    %111 = vmatprep.subr.mxu0 0.0
    %112 = vmatpush1.msra.mxu0 0.0
    %113 = vmatprep.subr.mxu0 0.0
    %114 = vmatpush1.msra.mxu0 0.0
    %115 = vmatprep.subr.mxu0 0.0
    %116 = vmatpush1.msra.mxu0 0.0
    %117 = vmatprep.subr.mxu0 0.0
    %118 = vmatpush1.msra.mxu0 0.0
    %119 = vmatprep.subr.mxu0 0.0
    %120 = vmatpush1.msra.mxu0 0.0
    %121 = vmatprep.subr.mxu0 0.0
    %122 = vmatpush1.msra.mxu0 0.0
    %123 = vmatprep.subr.mxu0 0.0
    %124 = vmatpush1.msra.mxu0 0.0
    %125 = vmatprep.subr.mxu0 0.0
    %126 = vmatpush1.msra.mxu0 0.0
    %127 = vmatprep.subr.mxu0 0.0
    %128 = vmatpush1.msra.mxu0 0.0
    %129 = vmatprep.subr.mxu0 0.0
    %130 = vmatpush1.msra.mxu0 0.0
    %131 = vmatprep.subr.mxu0 0.0
    %132 = vmatpush1.msra.mxu0 0.0
    %133 = vmatprep.subr.mxu0 0.0
    %134 = vmatpush1.msra.mxu0 0.0
    %135 = vmatprep.subr.mxu0 0.0
    %136 = vmatpush1.msra.mxu0 0.0
    %137 = vmatprep.subr.mxu0 0.0
    %138 = vmatpush1.msra.mxu0 0.0
    %139 = vmatprep.subr.mxu0 0.0
    %140 = vmatpush1.msra.mxu0 0.0
    %141 = vmatprep.subr.mxu0 0.0
    %142 = vmatpush1.msra.mxu0 0.0
    %143 = vmatprep.subr.mxu0 0.0
    %144 = vmatpush1.msra.mxu0 0.0
    %145 = vmatprep.subr.mxu0 0.0
    %146 = vmatpush1.msra.mxu0 0.0
    %147 = vmatprep.subr.mxu0 0.0
    %148 = vmatpush1.msra.mxu0 0.0
    %149 = vmatprep.mubr.f32.mxu0 0.0
    %150 = vmatmul.mubr.f32.gmra.mrb[0].mxu0 %v80
    %v151 = vpop.f32.mrb[0].mxu0
    %v152 = vadd.f32 0.0, %v151
    %v153 = vpop.f32.mrb[0].mxu0
    %154 = vmatprep.mubr.f32.mxu0 0.0
    %155 = vmatmul.mubr.f32.gmra.mrb[0].mxu0 %v83
    %v156 = vpop.f32.mrb[0].mxu0
    %v157 = vadd.f32 0.0, %v156
    %v158 = vpop.f32.mrb[0].mxu0
    %159 = vdwg.mxu0
    %v160 = vld [vmem:[%s3] sm:$0xff]
    %v161 = vld [vmem:[%s3 + $0x8] sm:$0xff]
    %v162 = vld [vmem:[%s3 + $0x10] sm:$0xff]
    %v163 = vld [vmem:[%s3 + $0x18] sm:$0xff]
    %166 = vrot.lane.b32.xlu0 %v152, 96
    %v167 = vpop.permute.xlu0 %166
    %168 = vrot.lane.b32.xlu0 %v157, 96
    %v169 = vpop.permute.xlu0 %168
    %vm170 = vcmask 64512
    %v171 = vsel %vm170, %v152, 0
    %v173 = vsel %vm170, %v157, 0
    %v175 = vsel %vm170, %v167, 0
    %v177 = vsel %vm170, %v169, 0
    %179 = vmatprep.subr.mxu0 0.0
    %180 = vmatpush1.xpose.msra.mxu0 %v175
    %181 = vmatprep.subr.mxu0 0.0
    %182 = vmatpush1.xpose.msra.mxu0 %v177
    %183 = vmatprep.subr.mxu0 0.0
    %184 = vmatpush1.xpose.msra.mxu0 0.0
    %185 = vmatprep.subr.mxu0 0.0
    %186 = vmatpush1.xpose.msra.mxu0 0.0
    %187 = vmatprep.subr.mxu0 0.0
    %188 = vmatpush1.xpose.msra.mxu0 0.0
    %189 = vmatprep.subr.mxu0 0.0
    %190 = vmatpush1.xpose.msra.mxu0 0.0
    %191 = vmatprep.subr.mxu0 0.0
    %192 = vmatpush1.xpose.msra.mxu0 0.0
    %193 = vmatprep.subr.mxu0 0.0
    %194 = vmatpush1.xpose.msra.mxu0 0.0
    %195 = vmatprep.subr.mxu0 0.0
    %196 = vmatpush1.xpose.msra.mxu0 0.0
    %197 = vmatprep.subr.mxu0 0.0
    %198 = vmatpush1.xpose.msra.mxu0 0.0
    %199 = vmatprep.subr.mxu0 0.0
    %200 = vmatpush1.xpose.msra.mxu0 0.0
    %201 = vmatprep.subr.mxu0 0.0
    %202 = vmatpush1.xpose.msra.mxu0 0.0
    %203 = vmatprep.subr.mxu0 0.0
    %204 = vmatpush1.xpose.msra.mxu0 0.0
    %205 = vmatprep.subr.mxu0 0.0
    %206 = vmatpush1.xpose.msra.mxu0 0.0
    %207 = vmatprep.subr.mxu0 0.0
    %208 = vmatpush1.xpose.msra.mxu0 0.0
    %209 = vmatprep.subr.mxu0 0.0
    %210 = vmatpush1.xpose.msra.mxu0 0.0
    %211 = vmatprep.subr.mxu0 0.0
    %212 = vmatpush1.xpose.msra.mxu0 0.0
    %213 = vmatprep.subr.mxu0 0.0
    %214 = vmatpush1.xpose.msra.mxu0 0.0
    %215 = vmatprep.subr.mxu0 0.0
    %216 = vmatpush1.xpose.msra.mxu0 0.0
    %217 = vmatprep.subr.mxu0 0.0
    %218 = vmatpush1.xpose.msra.mxu0 0.0
    %219 = vmatprep.subr.mxu0 0.0
    %220 = vmatpush1.xpose.msra.mxu0 0.0
    %221 = vmatprep.subr.mxu0 0.0
    %222 = vmatpush1.xpose.msra.mxu0 0.0
    %223 = vmatprep.subr.mxu0 0.0
    %224 = vmatpush1.xpose.msra.mxu0 0.0
    %225 = vmatprep.subr.mxu0 0.0
    %226 = vmatpush1.xpose.msra.mxu0 0.0
    %227 = vmatprep.subr.mxu0 0.0
    %228 = vmatpush1.xpose.msra.mxu0 0.0
    %229 = vmatprep.subr.mxu0 0.0
    %230 = vmatpush1.xpose.msra.mxu0 0.0
    %231 = vmatprep.subr.mxu0 0.0
    %232 = vmatpush1.xpose.msra.mxu0 0.0
    %233 = vmatprep.subr.mxu0 0.0
    %234 = vmatpush1.xpose.msra.mxu0 0.0
    %235 = vmatprep.subr.mxu0 0.0
    %236 = vmatpush1.xpose.msra.mxu0 0.0
    %237 = vmatprep.subr.mxu0 0.0
    %238 = vmatpush1.xpose.msra.mxu0 0.0
    %239 = vmatprep.subr.mxu0 0.0
    %240 = vmatpush1.xpose.msra.mxu0 0.0
    %241 = vmatprep.subr.mxu0 0.0
    %242 = vmatpush1.xpose.msra.mxu0 0.0
    %243 = vmatprep.mubr.f32.mxu0 0.0
    %244 = vmatmul.mubr.f32.gmra.mrb[0].mxu0 %v171
    %v245 = vpop.f32.mrb[0].mxu0
    %v246 = vadd.f32 0.0, %v245
    %v247 = vpop.f32.mrb[0].mxu0
    %248 = vmatprep.mubr.f32.mxu0 0.0
    %249 = vmatmul.mubr.f32.gmra.mrb[0].mxu0 %v173
    %v250 = vpop.f32.mrb[0].mxu0
    %v251 = vadd.f32 0.0, %v250
    %v252 = vpop.f32.mrb[0].mxu0
    %253 = vdwg.mxu0
    %v254 = vmul.f32 %v246, 0.35355338
    %v255 = vmul.f32 %v251, 0.35355338
    %v256 = vadd.f32 %v254, %v72
    %v257 = vadd.f32 %v255, %v73
    %vm258 = vcmask 130048
    %v259 = vsel %vm258, %v256, -inf
    %260 = vmax.xlane.f32.xlu0 %v259
    %v261 = vpop.xlane.xlu0 %260
    %v262 = vsel %vm258, %v257, -inf
    %263 = vmax.xlane.f32.xlu0 %v262
    %v264 = vpop.xlane.xlu0 %263
    %v265 = vsub.f32 %v256, %v261
    %v266 = vsub.f32 %v257, %v264
    %v267 = vmul.f32 %v265, 1.442695
    %v268 = vpow.pop %v267
    %v269 = vmul.f32 %v266, 1.442695
    %v270 = vpow.pop %v269
    %v271 = vsel %vm258, %v268, 0.0
    %272 = vadd.xlane.f32.xlu0 %v271
    %v273 = vpop.xlane.xlu0 %272
    %v274 = vsel %vm258, %v270, 0.0
    %275 = vadd.xlane.f32.xlu0 %v274
    %v276 = vpop.xlane.xlu0 %275
    %v277 = vrcp.pop %v273
    %v278 = vrcp.pop %v276
    %v279 = vmul.f32 %v268, %v277
    %v280 = vmul.f32 %v270, %v278
    %281 = vrot.lane.b32.xlu0 %v152, 64
    %v282 = vpop.permute.xlu0 %281
    %283 = vrot.lane.b32.xlu0 %v157, 64
    %v284 = vpop.permute.xlu0 %283
    %v288 = vsel %vm258, %v279, 0
    %v291 = vsel %vm258, %v280, 0
    %293 = vmatprep.subr.mxu0 0.0
    %294 = vmatpush1.msra.mxu0 %v282
    %295 = vmatprep.subr.mxu0 0.0
    %296 = vmatpush1.msra.mxu0 %v284
    %297 = vmatprep.subr.mxu0 0.0
    %298 = vmatpush1.msra.mxu0 0.0
    %299 = vmatprep.subr.mxu0 0.0
    %300 = vmatpush1.msra.mxu0 0.0
    %301 = vmatprep.subr.mxu0 0.0
    %302 = vmatpush1.msra.mxu0 0.0
    %303 = vmatprep.subr.mxu0 0.0
    %304 = vmatpush1.msra.mxu0 0.0
    %305 = vmatprep.subr.mxu0 0.0
    %306 = vmatpush1.msra.mxu0 0.0
    %307 = vmatprep.subr.mxu0 0.0
    %308 = vmatpush1.msra.mxu0 0.0
    %309 = vmatprep.subr.mxu0 0.0
    %310 = vmatpush1.msra.mxu0 0.0
    %311 = vmatprep.subr.mxu0 0.0
    %312 = vmatpush1.msra.mxu0 0.0
    %313 = vmatprep.subr.mxu0 0.0
    %314 = vmatpush1.msra.mxu0 0.0
    %315 = vmatprep.subr.mxu0 0.0
    %316 = vmatpush1.msra.mxu0 0.0
    %317 = vmatprep.subr.mxu0 0.0
    %318 = vmatpush1.msra.mxu0 0.0
    %319 = vmatprep.subr.mxu0 0.0
    %320 = vmatpush1.msra.mxu0 0.0
    %321 = vmatprep.subr.mxu0 0.0
    %322 = vmatpush1.msra.mxu0 0.0
    %323 = vmatprep.subr.mxu0 0.0
    %324 = vmatpush1.msra.mxu0 0.0
    %325 = vmatprep.subr.mxu0 0.0
    %326 = vmatpush1.msra.mxu0 0.0
    %327 = vmatprep.subr.mxu0 0.0
    %328 = vmatpush1.msra.mxu0 0.0
    %329 = vmatprep.subr.mxu0 0.0
    %330 = vmatpush1.msra.mxu0 0.0
    %331 = vmatprep.subr.mxu0 0.0
    %332 = vmatpush1.msra.mxu0 0.0
    %333 = vmatprep.subr.mxu0 0.0
    %334 = vmatpush1.msra.mxu0 0.0
    %335 = vmatprep.subr.mxu0 0.0
    %336 = vmatpush1.msra.mxu0 0.0
    %337 = vmatprep.subr.mxu0 0.0
    %338 = vmatpush1.msra.mxu0 0.0
    %339 = vmatprep.subr.mxu0 0.0
    %340 = vmatpush1.msra.mxu0 0.0
    %341 = vmatprep.subr.mxu0 0.0
    %342 = vmatpush1.msra.mxu0 0.0
    %343 = vmatprep.subr.mxu0 0.0
    %344 = vmatpush1.msra.mxu0 0.0
    %345 = vmatprep.subr.mxu0 0.0
    %346 = vmatpush1.msra.mxu0 0.0
    %347 = vmatprep.subr.mxu0 0.0
    %348 = vmatpush1.msra.mxu0 0.0
    %349 = vmatprep.subr.mxu0 0.0
    %350 = vmatpush1.msra.mxu0 0.0
    %351 = vmatprep.subr.mxu0 0.0
    %352 = vmatpush1.msra.mxu0 0.0
    %353 = vmatprep.subr.mxu0 0.0
    %354 = vmatpush1.msra.mxu0 0.0
    %355 = vmatprep.subr.mxu0 0.0
    %356 = vmatpush1.msra.mxu0 0.0
    %357 = vmatprep.mubr.f32.mxu0 0.0
    %358 = vmatmul.mubr.f32.gmra.mrb[0].mxu0 %v288
    %v359 = vpop.f32.mrb[0].mxu0
    %v360 = vadd.f32 0.0, %v359
    %v361 = vpop.f32.mrb[0].mxu0
    %362 = vmatprep.mubr.f32.mxu0 0.0
    %363 = vmatmul.mubr.f32.gmra.mrb[0].mxu0 %v291
    %v364 = vpop.f32.mrb[0].mxu0
    %v365 = vadd.f32 0.0, %v364
    %v366 = vpop.f32.mrb[0].mxu0
    %367 = vdwg.mxu0
    %368 = vrot.lane.b32.xlu0 %v152, 120
    %v369 = vpop.permute.xlu0 %368
    %370 = vrot.lane.b32.xlu0 %v157, 120
    %v371 = vpop.permute.xlu0 %370
    %372 = vrot.lane.b32.xlu0 %v152, 88
    %v373 = vpop.permute.xlu0 %372
    %374 = vrot.lane.b32.xlu0 %v157, 88
    %v375 = vpop.permute.xlu0 %374
    %v376 = vsel %vm170, %v369, 0
    %v378 = vsel %vm170, %v371, 0
    %v380 = vsel %vm170, %v373, 0
    %v382 = vsel %vm170, %v375, 0
    %384 = vmatprep.subr.mxu0 0.0
    %385 = vmatpush1.xpose.msra.mxu0 %v380
    %386 = vmatprep.subr.mxu0 0.0
    %387 = vmatpush1.xpose.msra.mxu0 %v382
    %388 = vmatprep.subr.mxu0 0.0
    %389 = vmatpush1.xpose.msra.mxu0 0.0
    %390 = vmatprep.subr.mxu0 0.0
    %391 = vmatpush1.xpose.msra.mxu0 0.0
    %392 = vmatprep.subr.mxu0 0.0
    %393 = vmatpush1.xpose.msra.mxu0 0.0
    %394 = vmatprep.subr.mxu0 0.0
    %395 = vmatpush1.xpose.msra.mxu0 0.0
    %396 = vmatprep.subr.mxu0 0.0
    %397 = vmatpush1.xpose.msra.mxu0 0.0
    %398 = vmatprep.subr.mxu0 0.0
    %399 = vmatpush1.xpose.msra.mxu0 0.0
    %400 = vmatprep.subr.mxu0 0.0
    %401 = vmatpush1.xpose.msra.mxu0 0.0
    %402 = vmatprep.subr.mxu0 0.0
    %403 = vmatpush1.xpose.msra.mxu0 0.0
    %404 = vmatprep.subr.mxu0 0.0
    %405 = vmatpush1.xpose.msra.mxu0 0.0
    %406 = vmatprep.subr.mxu0 0.0
    %407 = vmatpush1.xpose.msra.mxu0 0.0
    %408 = vmatprep.subr.mxu0 0.0
    %409 = vmatpush1.xpose.msra.mxu0 0.0
    %410 = vmatprep.subr.mxu0 0.0
    %411 = vmatpush1.xpose.msra.mxu0 0.0
    %412 = vmatprep.subr.mxu0 0.0
    %413 = vmatpush1.xpose.msra.mxu0 0.0
    %414 = vmatprep.subr.mxu0 0.0
    %415 = vmatpush1.xpose.msra.mxu0 0.0
    %416 = vmatprep.subr.mxu0 0.0
    %417 = vmatpush1.xpose.msra.mxu0 0.0
    %418 = vmatprep.subr.mxu0 0.0
    %419 = vmatpush1.xpose.msra.mxu0 0.0
    %420 = vmatprep.subr.mxu0 0.0
    %421 = vmatpush1.xpose.msra.mxu0 0.0
    %422 = vmatprep.subr.mxu0 0.0
    %423 = vmatpush1.xpose.msra.mxu0 0.0
    %424 = vmatprep.subr.mxu0 0.0
    %425 = vmatpush1.xpose.msra.mxu0 0.0
    %426 = vmatprep.subr.mxu0 0.0
    %427 = vmatpush1.xpose.msra.mxu0 0.0
    %428 = vmatprep.subr.mxu0 0.0
    %429 = vmatpush1.xpose.msra.mxu0 0.0
    %430 = vmatprep.subr.mxu0 0.0
    %431 = vmatpush1.xpose.msra.mxu0 0.0
    %432 = vmatprep.subr.mxu0 0.0
    %433 = vmatpush1.xpose.msra.mxu0 0.0
    %434 = vmatprep.subr.mxu0 0.0
    %435 = vmatpush1.xpose.msra.mxu0 0.0
    %436 = vmatprep.subr.mxu0 0.0
    %437 = vmatpush1.xpose.msra.mxu0 0.0
    %438 = vmatprep.subr.mxu0 0.0
    %439 = vmatpush1.xpose.msra.mxu0 0.0
    %440 = vmatprep.subr.mxu0 0.0
    %441 = vmatpush1.xpose.msra.mxu0 0.0
    %442 = vmatprep.subr.mxu0 0.0
    %443 = vmatpush1.xpose.msra.mxu0 0.0
    %444 = vmatprep.subr.mxu0 0.0
    %445 = vmatpush1.xpose.msra.mxu0 0.0
    %446 = vmatprep.subr.mxu0 0.0
    %447 = vmatpush1.xpose.msra.mxu0 0.0
    %448 = vmatprep.mubr.f32.mxu0 0.0
    %449 = vmatmul.mubr.f32.gmra.mrb[0].mxu0 %v376
    %v450 = vpop.f32.mrb[0].mxu0
    %v451 = vadd.f32 0.0, %v450
    %v452 = vpop.f32.mrb[0].mxu0
    %453 = vmatprep.mubr.f32.mxu0 0.0
    %454 = vmatmul.mubr.f32.gmra.mrb[0].mxu0 %v378
    %v455 = vpop.f32.mrb[0].mxu0
    %v456 = vadd.f32 0.0, %v455
    %v457 = vpop.f32.mrb[0].mxu0
    %458 = vdwg.mxu0
    %v459 = vmul.f32 %v451, 0.35355338
    %v460 = vmul.f32 %v456, 0.35355338
    %v461 = vadd.f32 %v459, %v72
    %v462 = vadd.f32 %v460, %v73
    %v463 = vsel %vm258, %v461, -inf
    %464 = vmax.xlane.f32.xlu0 %v463
    %v465 = vpop.xlane.xlu0 %464
    %v466 = vsel %vm258, %v462, -inf
    %467 = vmax.xlane.f32.xlu0 %v466
    %v468 = vpop.xlane.xlu0 %467
    %v469 = vsub.f32 %v461, %v465
    %v470 = vsub.f32 %v462, %v468
    %v471 = vmul.f32 %v469, 1.442695
    %v472 = vpow.pop %v471
    %v473 = vmul.f32 %v470, 1.442695
    %v474 = vpow.pop %v473
    %v475 = vsel %vm258, %v472, 0.0
    %476 = vadd.xlane.f32.xlu0 %v475
    %v477 = vpop.xlane.xlu0 %476
    %v478 = vsel %vm258, %v474, 0.0
    %479 = vadd.xlane.f32.xlu0 %v478
    %v480 = vpop.xlane.xlu0 %479
    %v481 = vrcp.pop %v477
    %v482 = vrcp.pop %v480
    %v483 = vmul.f32 %v472, %v481
    %v484 = vmul.f32 %v474, %v482
    %485 = vrot.lane.b32.xlu0 %v152, 56
    %v486 = vpop.permute.xlu0 %485
    %487 = vrot.lane.b32.xlu0 %v157, 56
    %v488 = vpop.permute.xlu0 %487
    %v492 = vsel %vm258, %v483, 0
    %v495 = vsel %vm258, %v484, 0
    %497 = vmatprep.subr.mxu0 0.0
    %498 = vmatpush1.msra.mxu0 %v486
    %499 = vmatprep.subr.mxu0 0.0
    %500 = vmatpush1.msra.mxu0 %v488
    %501 = vmatprep.subr.mxu0 0.0
    %502 = vmatpush1.msra.mxu0 0.0
    %503 = vmatprep.subr.mxu0 0.0
    %504 = vmatpush1.msra.mxu0 0.0
    %505 = vmatprep.subr.mxu0 0.0
    %506 = vmatpush1.msra.mxu0 0.0
    %507 = vmatprep.subr.mxu0 0.0
    %508 = vmatpush1.msra.mxu0 0.0
    %509 = vmatprep.subr.mxu0 0.0
    %510 = vmatpush1.msra.mxu0 0.0
    %511 = vmatprep.subr.mxu0 0.0
    %512 = vmatpush1.msra.mxu0 0.0
    %513 = vmatprep.subr.mxu0 0.0
    %514 = vmatpush1.msra.mxu0 0.0
    %515 = vmatprep.subr.mxu0 0.0
    %516 = vmatpush1.msra.mxu0 0.0
    %517 = vmatprep.subr.mxu0 0.0
    %518 = vmatpush1.msra.mxu0 0.0
    %519 = vmatprep.subr.mxu0 0.0
    %520 = vmatpush1.msra.mxu0 0.0
    %521 = vmatprep.subr.mxu0 0.0
    %522 = vmatpush1.msra.mxu0 0.0
    %523 = vmatprep.subr.mxu0 0.0
    %524 = vmatpush1.msra.mxu0 0.0
    %525 = vmatprep.subr.mxu0 0.0
    %526 = vmatpush1.msra.mxu0 0.0
    %527 = vmatprep.subr.mxu0 0.0
    %528 = vmatpush1.msra.mxu0 0.0
    %529 = vmatprep.subr.mxu0 0.0
    %530 = vmatpush1.msra.mxu0 0.0
    %531 = vmatprep.subr.mxu0 0.0
    %532 = vmatpush1.msra.mxu0 0.0
    %533 = vmatprep.subr.mxu0 0.0
    %534 = vmatpush1.msra.mxu0 0.0
    %535 = vmatprep.subr.mxu0 0.0
    %536 = vmatpush1.msra.mxu0 0.0
    %537 = vmatprep.subr.mxu0 0.0
    %538 = vmatpush1.msra.mxu0 0.0
    %539 = vmatprep.subr.mxu0 0.0
    %540 = vmatpush1.msra.mxu0 0.0
    %541 = vmatprep.subr.mxu0 0.0
    %542 = vmatpush1.msra.mxu0 0.0
    %543 = vmatprep.subr.mxu0 0.0
    %544 = vmatpush1.msra.mxu0 0.0
    %545 = vmatprep.subr.mxu0 0.0
    %546 = vmatpush1.msra.mxu0 0.0
    %547 = vmatprep.subr.mxu0 0.0
    %548 = vmatpush1.msra.mxu0 0.0
    %549 = vmatprep.subr.mxu0 0.0
    %550 = vmatpush1.msra.mxu0 0.0
    %551 = vmatprep.subr.mxu0 0.0
    %552 = vmatpush1.msra.mxu0 0.0
    %553 = vmatprep.subr.mxu0 0.0
    %554 = vmatpush1.msra.mxu0 0.0
    %555 = vmatprep.subr.mxu0 0.0
    %556 = vmatpush1.msra.mxu0 0.0
    %557 = vmatprep.subr.mxu0 0.0
    %558 = vmatpush1.msra.mxu0 0.0
    %559 = vmatprep.subr.mxu0 0.0
    %560 = vmatpush1.msra.mxu0 0.0
    %561 = vmatprep.mubr.f32.mxu0 0.0
    %562 = vmatmul.mubr.f32.gmra.mrb[0].mxu0 %v492
    %v563 = vpop.f32.mrb[0].mxu0
    %v564 = vadd.f32 0.0, %v563
    %v565 = vpop.f32.mrb[0].mxu0
    %566 = vmatprep.mubr.f32.mxu0 0.0
    %567 = vmatmul.mubr.f32.gmra.mrb[0].mxu0 %v495
    %v568 = vpop.f32.mrb[0].mxu0
    %v569 = vadd.f32 0.0, %v568
    %v570 = vpop.f32.mrb[0].mxu0
    %571 = vdwg.mxu0
    %v573 = vsel %vm170, %v564, 0
    %v576 = vsel %vm170, %v569, 0
    %578 = vmatprep.subr.mxu0 0.0
    %579 = vmatpush1.msra.mxu0 %v161
    %580 = vmatprep.subr.mxu0 0.0
    %581 = vmatpush1.msra.mxu0 0.0
    %582 = vmatprep.subr.mxu0 0.0
    %583 = vmatpush1.msra.mxu0 0.0
    %584 = vmatprep.subr.mxu0 0.0
    %585 = vmatpush1.msra.mxu0 0.0
    %586 = vmatprep.subr.mxu0 0.0
    %587 = vmatpush1.msra.mxu0 0.0
    %588 = vmatprep.subr.mxu0 0.0
    %589 = vmatpush1.msra.mxu0 0.0
    %590 = vmatprep.subr.mxu0 0.0
    %591 = vmatpush1.msra.mxu0 0.0
    %592 = vmatprep.subr.mxu0 0.0
    %593 = vmatpush1.msra.mxu0 0.0
    %594 = vmatprep.subr.mxu0 0.0
    %595 = vmatpush1.msra.mxu0 0.0
    %596 = vmatprep.subr.mxu0 0.0
    %597 = vmatpush1.msra.mxu0 0.0
    %598 = vmatprep.subr.mxu0 0.0
    %599 = vmatpush1.msra.mxu0 0.0
    %600 = vmatprep.subr.mxu0 0.0
    %601 = vmatpush1.msra.mxu0 0.0
    %602 = vmatprep.subr.mxu0 0.0
    %603 = vmatpush1.msra.mxu0 0.0
    %604 = vmatprep.subr.mxu0 0.0
    %605 = vmatpush1.msra.mxu0 0.0
    %606 = vmatprep.subr.mxu0 0.0
    %607 = vmatpush1.msra.mxu0 0.0
    %608 = vmatprep.subr.mxu0 0.0
    %609 = vmatpush1.msra.mxu0 0.0
    %610 = vmatprep.subr.mxu0 0.0
    %611 = vmatpush1.msra.mxu0 0.0
    %612 = vmatprep.subr.mxu0 0.0
    %613 = vmatpush1.msra.mxu0 0.0
    %614 = vmatprep.subr.mxu0 0.0
    %615 = vmatpush1.msra.mxu0 0.0
    %616 = vmatprep.subr.mxu0 0.0
    %617 = vmatpush1.msra.mxu0 0.0
    %618 = vmatprep.subr.mxu0 0.0
    %619 = vmatpush1.msra.mxu0 0.0
    %620 = vmatprep.subr.mxu0 0.0
    %621 = vmatpush1.msra.mxu0 0.0
    %622 = vmatprep.subr.mxu0 0.0
    %623 = vmatpush1.msra.mxu0 0.0
    %624 = vmatprep.subr.mxu0 0.0
    %625 = vmatpush1.msra.mxu0 0.0
    %626 = vmatprep.subr.mxu0 0.0
    %627 = vmatpush1.msra.mxu0 0.0
    %628 = vmatprep.subr.mxu0 0.0
    %629 = vmatpush1.msra.mxu0 0.0
    %630 = vmatprep.subr.mxu0 0.0
    %631 = vmatpush1.msra.mxu0 0.0
    %632 = vmatprep.subr.mxu0 0.0
    %633 = vmatpush1.msra.mxu0 0.0
    %634 = vmatprep.subr.mxu0 0.0
    %635 = vmatpush1.msra.mxu0 0.0
    %636 = vmatprep.subr.mxu0 0.0
    %637 = vmatpush1.msra.mxu0 0.0
    %638 = vmatprep.subr.mxu0 0.0
    %639 = vmatpush1.msra.mxu0 0.0
    %640 = vmatprep.subr.mxu0 0.0
    %641 = vmatpush1.msra.mxu0 0.0
    %642 = vmatprep.mubr.f32.mxu0 0.0
    %643 = vmatmul.mubr.f32.gmra.mrb[0].mxu0 %v573
    %v644 = vpop.f32.mrb[0].mxu0
    %v645 = vadd.f32 0.0, %v644
    %v646 = vpop.f32.mrb[0].mxu0
    %647 = vmatprep.mubr.f32.mxu0 0.0
    %648 = vmatmul.mubr.f32.gmra.mrb[0].mxu0 %v576
    %v649 = vpop.f32.mrb[0].mxu0
    %v650 = vadd.f32 0.0, %v649
    %v651 = vpop.f32.mrb[0].mxu0
    %652 = vdwg.mxu0
    %v654 = vsel %vm170, %v360, 0
    %v657 = vsel %vm170, %v365, 0
    %659 = vmatprep.subr.mxu0 0.0
    %660 = vmatpush1.msra.mxu0 %v160
    %661 = vmatprep.subr.mxu0 0.0
    %662 = vmatpush1.msra.mxu0 0.0
    %663 = vmatprep.subr.mxu0 0.0
    %664 = vmatpush1.msra.mxu0 0.0
    %665 = vmatprep.subr.mxu0 0.0
    %666 = vmatpush1.msra.mxu0 0.0
    %667 = vmatprep.subr.mxu0 0.0
    %668 = vmatpush1.msra.mxu0 0.0
    %669 = vmatprep.subr.mxu0 0.0
    %670 = vmatpush1.msra.mxu0 0.0
    %671 = vmatprep.subr.mxu0 0.0
    %672 = vmatpush1.msra.mxu0 0.0
    %673 = vmatprep.subr.mxu0 0.0
    %674 = vmatpush1.msra.mxu0 0.0
    %675 = vmatprep.subr.mxu0 0.0
    %676 = vmatpush1.msra.mxu0 0.0
    %677 = vmatprep.subr.mxu0 0.0
    %678 = vmatpush1.msra.mxu0 0.0
    %679 = vmatprep.subr.mxu0 0.0
    %680 = vmatpush1.msra.mxu0 0.0
    %681 = vmatprep.subr.mxu0 0.0
    %682 = vmatpush1.msra.mxu0 0.0
    %683 = vmatprep.subr.mxu0 0.0
    %684 = vmatpush1.msra.mxu0 0.0
    %685 = vmatprep.subr.mxu0 0.0
    %686 = vmatpush1.msra.mxu0 0.0
    %687 = vmatprep.subr.mxu0 0.0
    %688 = vmatpush1.msra.mxu0 0.0
    %689 = vmatprep.subr.mxu0 0.0
    %690 = vmatpush1.msra.mxu0 0.0
    %691 = vmatprep.subr.mxu0 0.0
    %692 = vmatpush1.msra.mxu0 0.0
    %693 = vmatprep.subr.mxu0 0.0
    %694 = vmatpush1.msra.mxu0 0.0
    %695 = vmatprep.subr.mxu0 0.0
    %696 = vmatpush1.msra.mxu0 0.0
    %697 = vmatprep.subr.mxu0 0.0
    %698 = vmatpush1.msra.mxu0 0.0
    %699 = vmatprep.subr.mxu0 0.0
    %700 = vmatpush1.msra.mxu0 0.0
    %701 = vmatprep.subr.mxu0 0.0
    %702 = vmatpush1.msra.mxu0 0.0
    %703 = vmatprep.subr.mxu0 0.0
    %704 = vmatpush1.msra.mxu0 0.0
    %705 = vmatprep.subr.mxu0 0.0
    %706 = vmatpush1.msra.mxu0 0.0
    %707 = vmatprep.subr.mxu0 0.0
    %708 = vmatpush1.msra.mxu0 0.0
    %709 = vmatprep.subr.mxu0 0.0
    %710 = vmatpush1.msra.mxu0 0.0
    %711 = vmatprep.subr.mxu0 0.0
    %712 = vmatpush1.msra.mxu0 0.0
    %713 = vmatprep.subr.mxu0 0.0
    %714 = vmatpush1.msra.mxu0 0.0
    %715 = vmatprep.subr.mxu0 0.0
    %716 = vmatpush1.msra.mxu0 0.0
    %717 = vmatprep.subr.mxu0 0.0
    %718 = vmatpush1.msra.mxu0 0.0
    %719 = vmatprep.subr.mxu0 0.0
    %720 = vmatpush1.msra.mxu0 0.0
    %721 = vmatprep.subr.mxu0 0.0
    %722 = vmatpush1.msra.mxu0 0.0
    %723 = vmatprep.mubr.f32.mxu0 0.0
    %724 = vmatmul.mubr.f32.gmra.mrb[0].mxu0 %v654
    %v725 = vpop.f32.mrb[0].mxu0
    %v726 = vadd.f32 %v645, %v725
    %v727 = vpop.f32.mrb[0].mxu0
    %728 = vmatprep.mubr.f32.mxu0 0.0
    %729 = vmatmul.mubr.f32.gmra.mrb[0].mxu0 %v657
    %v730 = vpop.f32.mrb[0].mxu0
    %v731 = vadd.f32 %v650, %v730
    %v732 = vpop.f32.mrb[0].mxu0
    %733 = vdwg.mxu0
    %734 = vrot.lane.b32.xlu0 %v152, 112
    %v735 = vpop.permute.xlu0 %734
    %736 = vrot.lane.b32.xlu0 %v157, 112
    %v737 = vpop.permute.xlu0 %736
    %738 = vrot.lane.b32.xlu0 %v152, 80
    %v739 = vpop.permute.xlu0 %738
    %740 = vrot.lane.b32.xlu0 %v157, 80
    %v741 = vpop.permute.xlu0 %740
    %v742 = vsel %vm170, %v735, 0
    %v744 = vsel %vm170, %v737, 0
    %v746 = vsel %vm170, %v739, 0
    %v748 = vsel %vm170, %v741, 0
    %750 = vmatprep.subr.mxu0 0.0
    %751 = vmatpush1.xpose.msra.mxu0 %v746
    %752 = vmatprep.subr.mxu0 0.0
    %753 = vmatpush1.xpose.msra.mxu0 %v748
    %754 = vmatprep.subr.mxu0 0.0
    %755 = vmatpush1.xpose.msra.mxu0 0.0
    %756 = vmatprep.subr.mxu0 0.0
    %757 = vmatpush1.xpose.msra.mxu0 0.0
    %758 = vmatprep.subr.mxu0 0.0
    %759 = vmatpush1.xpose.msra.mxu0 0.0
    %760 = vmatprep.subr.mxu0 0.0
    %761 = vmatpush1.xpose.msra.mxu0 0.0
    %762 = vmatprep.subr.mxu0 0.0
    %763 = vmatpush1.xpose.msra.mxu0 0.0
    %764 = vmatprep.subr.mxu0 0.0
    %765 = vmatpush1.xpose.msra.mxu0 0.0
    %766 = vmatprep.subr.mxu0 0.0
    %767 = vmatpush1.xpose.msra.mxu0 0.0
    %768 = vmatprep.subr.mxu0 0.0
    %769 = vmatpush1.xpose.msra.mxu0 0.0
    %770 = vmatprep.subr.mxu0 0.0
    %771 = vmatpush1.xpose.msra.mxu0 0.0
    %772 = vmatprep.subr.mxu0 0.0
    %773 = vmatpush1.xpose.msra.mxu0 0.0
    %774 = vmatprep.subr.mxu0 0.0
    %775 = vmatpush1.xpose.msra.mxu0 0.0
    %776 = vmatprep.subr.mxu0 0.0
    %777 = vmatpush1.xpose.msra.mxu0 0.0
    %778 = vmatprep.subr.mxu0 0.0
    %779 = vmatpush1.xpose.msra.mxu0 0.0
    %780 = vmatprep.subr.mxu0 0.0
    %781 = vmatpush1.xpose.msra.mxu0 0.0
    %782 = vmatprep.subr.mxu0 0.0
    %783 = vmatpush1.xpose.msra.mxu0 0.0
    %784 = vmatprep.subr.mxu0 0.0
    %785 = vmatpush1.xpose.msra.mxu0 0.0
    %786 = vmatprep.subr.mxu0 0.0
    %787 = vmatpush1.xpose.msra.mxu0 0.0
    %788 = vmatprep.subr.mxu0 0.0
    %789 = vmatpush1.xpose.msra.mxu0 0.0
    %790 = vmatprep.subr.mxu0 0.0
    %791 = vmatpush1.xpose.msra.mxu0 0.0
    %792 = vmatprep.subr.mxu0 0.0
    %793 = vmatpush1.xpose.msra.mxu0 0.0
    %794 = vmatprep.subr.mxu0 0.0
    %795 = vmatpush1.xpose.msra.mxu0 0.0
    %796 = vmatprep.subr.mxu0 0.0
    %797 = vmatpush1.xpose.msra.mxu0 0.0
    %798 = vmatprep.subr.mxu0 0.0
    %799 = vmatpush1.xpose.msra.mxu0 0.0
    %800 = vmatprep.subr.mxu0 0.0
    %801 = vmatpush1.xpose.msra.mxu0 0.0
    %802 = vmatprep.subr.mxu0 0.0
    %803 = vmatpush1.xpose.msra.mxu0 0.0
    %804 = vmatprep.subr.mxu0 0.0
    %805 = vmatpush1.xpose.msra.mxu0 0.0
    %806 = vmatprep.subr.mxu0 0.0
    %807 = vmatpush1.xpose.msra.mxu0 0.0
    %808 = vmatprep.subr.mxu0 0.0
    %809 = vmatpush1.xpose.msra.mxu0 0.0
    %810 = vmatprep.subr.mxu0 0.0
    %811 = vmatpush1.xpose.msra.mxu0 0.0
    %812 = vmatprep.subr.mxu0 0.0
    %813 = vmatpush1.xpose.msra.mxu0 0.0
    %814 = vmatprep.mubr.f32.mxu0 0.0
    %815 = vmatmul.mubr.f32.gmra.mrb[0].mxu0 %v742
    %v816 = vpop.f32.mrb[0].mxu0
    %v817 = vadd.f32 0.0, %v816
    %v818 = vpop.f32.mrb[0].mxu0
    %819 = vmatprep.mubr.f32.mxu0 0.0
    %820 = vmatmul.mubr.f32.gmra.mrb[0].mxu0 %v744
    %v821 = vpop.f32.mrb[0].mxu0
    %v822 = vadd.f32 0.0, %v821
    %v823 = vpop.f32.mrb[0].mxu0
    %824 = vdwg.mxu0
    %v825 = vmul.f32 %v817, 0.35355338
    %v826 = vmul.f32 %v822, 0.35355338
    %v827 = vadd.f32 %v825, %v72
    %v828 = vadd.f32 %v826, %v73
    %v829 = vsel %vm258, %v827, -inf
    %830 = vmax.xlane.f32.xlu0 %v829
    %v831 = vpop.xlane.xlu0 %830
    %v832 = vsel %vm258, %v828, -inf
    %833 = vmax.xlane.f32.xlu0 %v832
    %v834 = vpop.xlane.xlu0 %833
    %v835 = vsub.f32 %v827, %v831
    %v836 = vsub.f32 %v828, %v834
    %v837 = vmul.f32 %v835, 1.442695
    %v838 = vpow.pop %v837
    %v839 = vmul.f32 %v836, 1.442695
    %v840 = vpow.pop %v839
    %v841 = vsel %vm258, %v838, 0.0
    %842 = vadd.xlane.f32.xlu0 %v841
    %v843 = vpop.xlane.xlu0 %842
    %v844 = vsel %vm258, %v840, 0.0
    %845 = vadd.xlane.f32.xlu0 %v844
    %v846 = vpop.xlane.xlu0 %845
    %v847 = vrcp.pop %v843
    %v848 = vrcp.pop %v846
    %v849 = vmul.f32 %v838, %v847
    %v850 = vmul.f32 %v840, %v848
    %851 = vrot.lane.b32.xlu0 %v152, 48
    %v852 = vpop.permute.xlu0 %851
    %853 = vrot.lane.b32.xlu0 %v157, 48
    %v854 = vpop.permute.xlu0 %853
    %v858 = vsel %vm258, %v849, 0
    %v861 = vsel %vm258, %v850, 0
    %863 = vmatprep.subr.mxu0 0.0
    %864 = vmatpush1.msra.mxu0 %v852
    %865 = vmatprep.subr.mxu0 0.0
    %866 = vmatpush1.msra.mxu0 %v854
    %867 = vmatprep.subr.mxu0 0.0
    %868 = vmatpush1.msra.mxu0 0.0
    %869 = vmatprep.subr.mxu0 0.0
    %870 = vmatpush1.msra.mxu0 0.0
    %871 = vmatprep.subr.mxu0 0.0
    %872 = vmatpush1.msra.mxu0 0.0
    %873 = vmatprep.subr.mxu0 0.0
    %874 = vmatpush1.msra.mxu0 0.0
    %875 = vmatprep.subr.mxu0 0.0
    %876 = vmatpush1.msra.mxu0 0.0
    %877 = vmatprep.subr.mxu0 0.0
    %878 = vmatpush1.msra.mxu0 0.0
    %879 = vmatprep.subr.mxu0 0.0
    %880 = vmatpush1.msra.mxu0 0.0
    %881 = vmatprep.subr.mxu0 0.0
    %882 = vmatpush1.msra.mxu0 0.0
    %883 = vmatprep.subr.mxu0 0.0
    %884 = vmatpush1.msra.mxu0 0.0
    %885 = vmatprep.subr.mxu0 0.0
    %886 = vmatpush1.msra.mxu0 0.0
    %887 = vmatprep.subr.mxu0 0.0
    %888 = vmatpush1.msra.mxu0 0.0
    %889 = vmatprep.subr.mxu0 0.0
    %890 = vmatpush1.msra.mxu0 0.0
    %891 = vmatprep.subr.mxu0 0.0
    %892 = vmatpush1.msra.mxu0 0.0
    %893 = vmatprep.subr.mxu0 0.0
    %894 = vmatpush1.msra.mxu0 0.0
    %895 = vmatprep.subr.mxu0 0.0
    %896 = vmatpush1.msra.mxu0 0.0
    %897 = vmatprep.subr.mxu0 0.0
    %898 = vmatpush1.msra.mxu0 0.0
    %899 = vmatprep.subr.mxu0 0.0
    %900 = vmatpush1.msra.mxu0 0.0
    %901 = vmatprep.subr.mxu0 0.0
    %902 = vmatpush1.msra.mxu0 0.0
    %903 = vmatprep.subr.mxu0 0.0
    %904 = vmatpush1.msra.mxu0 0.0
    %905 = vmatprep.subr.mxu0 0.0
    %906 = vmatpush1.msra.mxu0 0.0
    %907 = vmatprep.subr.mxu0 0.0
    %908 = vmatpush1.msra.mxu0 0.0
    %909 = vmatprep.subr.mxu0 0.0
    %910 = vmatpush1.msra.mxu0 0.0
    %911 = vmatprep.subr.mxu0 0.0
    %912 = vmatpush1.msra.mxu0 0.0
    %913 = vmatprep.subr.mxu0 0.0
    %914 = vmatpush1.msra.mxu0 0.0
    %915 = vmatprep.subr.mxu0 0.0
    %916 = vmatpush1.msra.mxu0 0.0
    %917 = vmatprep.subr.mxu0 0.0
    %918 = vmatpush1.msra.mxu0 0.0
    %919 = vmatprep.subr.mxu0 0.0
    %920 = vmatpush1.msra.mxu0 0.0
    %921 = vmatprep.subr.mxu0 0.0
    %922 = vmatpush1.msra.mxu0 0.0
    %923 = vmatprep.subr.mxu0 0.0
    %924 = vmatpush1.msra.mxu0 0.0
    %925 = vmatprep.subr.mxu0 0.0
    %926 = vmatpush1.msra.mxu0 0.0
    %927 = vmatprep.mubr.f32.mxu0 0.0
    %928 = vmatmul.mubr.f32.gmra.mrb[0].mxu0 %v858
    %v929 = vpop.f32.mrb[0].mxu0
    %v930 = vadd.f32 0.0, %v929
    %v931 = vpop.f32.mrb[0].mxu0
    %932 = vmatprep.mubr.f32.mxu0 0.0
    %933 = vmatmul.mubr.f32.gmra.mrb[0].mxu0 %v861
    %v934 = vpop.f32.mrb[0].mxu0
    %v935 = vadd.f32 0.0, %v934
    %v936 = vpop.f32.mrb[0].mxu0
    %937 = vdwg.mxu0
    %v939 = vsel %vm170, %v930, 0
    %v942 = vsel %vm170, %v935, 0
    %944 = vmatprep.subr.mxu0 0.0
    %945 = vmatpush1.msra.mxu0 %v162
    %946 = vmatprep.subr.mxu0 0.0
    %947 = vmatpush1.msra.mxu0 0.0
    %948 = vmatprep.subr.mxu0 0.0
    %949 = vmatpush1.msra.mxu0 0.0
    %950 = vmatprep.subr.mxu0 0.0
    %951 = vmatpush1.msra.mxu0 0.0
    %952 = vmatprep.subr.mxu0 0.0
    %953 = vmatpush1.msra.mxu0 0.0
    %954 = vmatprep.subr.mxu0 0.0
    %955 = vmatpush1.msra.mxu0 0.0
    %956 = vmatprep.subr.mxu0 0.0
    %957 = vmatpush1.msra.mxu0 0.0
    %958 = vmatprep.subr.mxu0 0.0
    %959 = vmatpush1.msra.mxu0 0.0
    %960 = vmatprep.subr.mxu0 0.0
    %961 = vmatpush1.msra.mxu0 0.0
    %962 = vmatprep.subr.mxu0 0.0
    %963 = vmatpush1.msra.mxu0 0.0
    %964 = vmatprep.subr.mxu0 0.0
    %965 = vmatpush1.msra.mxu0 0.0
    %966 = vmatprep.subr.mxu0 0.0
    %967 = vmatpush1.msra.mxu0 0.0
    %968 = vmatprep.subr.mxu0 0.0
    %969 = vmatpush1.msra.mxu0 0.0
    %970 = vmatprep.subr.mxu0 0.0
    %971 = vmatpush1.msra.mxu0 0.0
    %972 = vmatprep.subr.mxu0 0.0
    %973 = vmatpush1.msra.mxu0 0.0
    %974 = vmatprep.subr.mxu0 0.0
    %975 = vmatpush1.msra.mxu0 0.0
    %976 = vmatprep.subr.mxu0 0.0
    %977 = vmatpush1.msra.mxu0 0.0
    %978 = vmatprep.subr.mxu0 0.0
    %979 = vmatpush1.msra.mxu0 0.0
    %980 = vmatprep.subr.mxu0 0.0
    %981 = vmatpush1.msra.mxu0 0.0
    %982 = vmatprep.subr.mxu0 0.0
    %983 = vmatpush1.msra.mxu0 0.0
    %984 = vmatprep.subr.mxu0 0.0
    %985 = vmatpush1.msra.mxu0 0.0
    %986 = vmatprep.subr.mxu0 0.0
    %987 = vmatpush1.msra.mxu0 0.0
    %988 = vmatprep.subr.mxu0 0.0
    %989 = vmatpush1.msra.mxu0 0.0
    %990 = vmatprep.subr.mxu0 0.0
    %991 = vmatpush1.msra.mxu0 0.0
    %992 = vmatprep.subr.mxu0 0.0
    %993 = vmatpush1.msra.mxu0 0.0
    %994 = vmatprep.subr.mxu0 0.0
    %995 = vmatpush1.msra.mxu0 0.0
    %996 = vmatprep.subr.mxu0 0.0
    %997 = vmatpush1.msra.mxu0 0.0
    %998 = vmatprep.subr.mxu0 0.0
    %999 = vmatpush1.msra.mxu0 0.0
    %1000 = vmatprep.subr.mxu0 0.0
    %1001 = vmatpush1.msra.mxu0 0.0
    %1002 = vmatprep.subr.mxu0 0.0
    %1003 = vmatpush1.msra.mxu0 0.0
    %1004 = vmatprep.subr.mxu0 0.0
    %1005 = vmatpush1.msra.mxu0 0.0
    %1006 = vmatprep.subr.mxu0 0.0
    %1007 = vmatpush1.msra.mxu0 0.0
    %1008 = vmatprep.mubr.f32.mxu0 0.0
    %1009 = vmatmul.mubr.f32.gmra.mrb[0].mxu0 %v939
    %v1010 = vpop.f32.mrb[0].mxu0
    %v1011 = vadd.f32 0.0, %v1010
    %v1012 = vpop.f32.mrb[0].mxu0
    %1013 = vmatprep.mubr.f32.mxu0 0.0
    %1014 = vmatmul.mubr.f32.gmra.mrb[0].mxu0 %v942
    %v1015 = vpop.f32.mrb[0].mxu0
    %v1016 = vadd.f32 0.0, %v1015
    %v1017 = vpop.f32.mrb[0].mxu0
    %1018 = vdwg.mxu0
    %v1019 = vadd.f32 %v726, %v1011
    %v1020 = vadd.f32 %v731, %v1016
    %1021 = vrot.lane.b32.xlu0 %v152, 104
    %v1022 = vpop.permute.xlu0 %1021
    %1023 = vrot.lane.b32.xlu0 %v157, 104
    %v1024 = vpop.permute.xlu0 %1023
    %1025 = vrot.lane.b32.xlu0 %v152, 72
    %v1026 = vpop.permute.xlu0 %1025
    %1027 = vrot.lane.b32.xlu0 %v157, 72
    %v1028 = vpop.permute.xlu0 %1027
    %v1029 = vsel %vm170, %v1022, 0
    %v1031 = vsel %vm170, %v1024, 0
    %v1033 = vsel %vm170, %v1026, 0
    %v1035 = vsel %vm170, %v1028, 0
    %1037 = vmatprep.subr.mxu0 0.0
    %1038 = vmatpush1.xpose.msra.mxu0 %v1033
    %1039 = vmatprep.subr.mxu0 0.0
    %1040 = vmatpush1.xpose.msra.mxu0 %v1035
    %1041 = vmatprep.subr.mxu0 0.0
    %1042 = vmatpush1.xpose.msra.mxu0 0.0
    %1043 = vmatprep.subr.mxu0 0.0
    %1044 = vmatpush1.xpose.msra.mxu0 0.0
    %1045 = vmatprep.subr.mxu0 0.0
    %1046 = vmatpush1.xpose.msra.mxu0 0.0
    %1047 = vmatprep.subr.mxu0 0.0
    %1048 = vmatpush1.xpose.msra.mxu0 0.0
    %1049 = vmatprep.subr.mxu0 0.0
    %1050 = vmatpush1.xpose.msra.mxu0 0.0
    %1051 = vmatprep.subr.mxu0 0.0
    %1052 = vmatpush1.xpose.msra.mxu0 0.0
    %1053 = vmatprep.subr.mxu0 0.0
    %1054 = vmatpush1.xpose.msra.mxu0 0.0
    %1055 = vmatprep.subr.mxu0 0.0
    %1056 = vmatpush1.xpose.msra.mxu0 0.0
    %1057 = vmatprep.subr.mxu0 0.0
    %1058 = vmatpush1.xpose.msra.mxu0 0.0
    %1059 = vmatprep.subr.mxu0 0.0
    %1060 = vmatpush1.xpose.msra.mxu0 0.0
    %1061 = vmatprep.subr.mxu0 0.0
    %1062 = vmatpush1.xpose.msra.mxu0 0.0
    %1063 = vmatprep.subr.mxu0 0.0
    %1064 = vmatpush1.xpose.msra.mxu0 0.0
    %1065 = vmatprep.subr.mxu0 0.0
    %1066 = vmatpush1.xpose.msra.mxu0 0.0
    %1067 = vmatprep.subr.mxu0 0.0
    %1068 = vmatpush1.xpose.msra.mxu0 0.0
    %1069 = vmatprep.subr.mxu0 0.0
    %1070 = vmatpush1.xpose.msra.mxu0 0.0
    %1071 = vmatprep.subr.mxu0 0.0
    %1072 = vmatpush1.xpose.msra.mxu0 0.0
    %1073 = vmatprep.subr.mxu0 0.0
    %1074 = vmatpush1.xpose.msra.mxu0 0.0
    %1075 = vmatprep.subr.mxu0 0.0
    %1076 = vmatpush1.xpose.msra.mxu0 0.0
    %1077 = vmatprep.subr.mxu0 0.0
    %1078 = vmatpush1.xpose.msra.mxu0 0.0
    %1079 = vmatprep.subr.mxu0 0.0
    %1080 = vmatpush1.xpose.msra.mxu0 0.0
    %1081 = vmatprep.subr.mxu0 0.0
    %1082 = vmatpush1.xpose.msra.mxu0 0.0
    %1083 = vmatprep.subr.mxu0 0.0
    %1084 = vmatpush1.xpose.msra.mxu0 0.0
    %1085 = vmatprep.subr.mxu0 0.0
    %1086 = vmatpush1.xpose.msra.mxu0 0.0
    %1087 = vmatprep.subr.mxu0 0.0
    %1088 = vmatpush1.xpose.msra.mxu0 0.0
    %1089 = vmatprep.subr.mxu0 0.0
    %1090 = vmatpush1.xpose.msra.mxu0 0.0
    %1091 = vmatprep.subr.mxu0 0.0
    %1092 = vmatpush1.xpose.msra.mxu0 0.0
    %1093 = vmatprep.subr.mxu0 0.0
    %1094 = vmatpush1.xpose.msra.mxu0 0.0
    %1095 = vmatprep.subr.mxu0 0.0
    %1096 = vmatpush1.xpose.msra.mxu0 0.0
    %1097 = vmatprep.subr.mxu0 0.0
    %1098 = vmatpush1.xpose.msra.mxu0 0.0
    %1099 = vmatprep.subr.mxu0 0.0
    %1100 = vmatpush1.xpose.msra.mxu0 0.0
    %1101 = vmatprep.mubr.f32.mxu0 0.0
    %1102 = vmatmul.mubr.f32.gmra.mrb[0].mxu0 %v1029
    %v1103 = vpop.f32.mrb[0].mxu0
    %v1104 = vadd.f32 0.0, %v1103
    %v1105 = vpop.f32.mrb[0].mxu0
    %1106 = vmatprep.mubr.f32.mxu0 0.0
    %1107 = vmatmul.mubr.f32.gmra.mrb[0].mxu0 %v1031
    %v1108 = vpop.f32.mrb[0].mxu0
    %v1109 = vadd.f32 0.0, %v1108
    %v1110 = vpop.f32.mrb[0].mxu0
    %1111 = vdwg.mxu0
    %v1112 = vmul.f32 %v1104, 0.35355338
    %v1113 = vmul.f32 %v1109, 0.35355338
    %v1114 = vadd.f32 %v1112, %v72
    %v1115 = vadd.f32 %v1113, %v73
    %v1116 = vsel %vm258, %v1114, -inf
    %1117 = vmax.xlane.f32.xlu0 %v1116
    %v1118 = vpop.xlane.xlu0 %1117
    %v1119 = vsel %vm258, %v1115, -inf
    %1120 = vmax.xlane.f32.xlu0 %v1119
    %v1121 = vpop.xlane.xlu0 %1120
    %v1122 = vsub.f32 %v1114, %v1118
    %v1123 = vsub.f32 %v1115, %v1121
    %v1124 = vmul.f32 %v1122, 1.442695
    %v1125 = vpow.pop %v1124
    %v1126 = vmul.f32 %v1123, 1.442695
    %v1127 = vpow.pop %v1126
    %v1128 = vsel %vm258, %v1125, 0.0
    %1129 = vadd.xlane.f32.xlu0 %v1128
    %v1130 = vpop.xlane.xlu0 %1129
    %v1131 = vsel %vm258, %v1127, 0.0
    %1132 = vadd.xlane.f32.xlu0 %v1131
    %v1133 = vpop.xlane.xlu0 %1132
    %v1134 = vrcp.pop %v1130
    %v1135 = vrcp.pop %v1133
    %v1136 = vmul.f32 %v1125, %v1134
    %v1137 = vmul.f32 %v1127, %v1135
    %1138 = vrot.lane.b32.xlu0 %v152, 40
    %v1139 = vpop.permute.xlu0 %1138
    %1140 = vrot.lane.b32.xlu0 %v157, 40
    %v1141 = vpop.permute.xlu0 %1140
    %v1145 = vsel %vm258, %v1136, 0
    %v1148 = vsel %vm258, %v1137, 0
    %1150 = vmatprep.subr.mxu0 0.0
    %1151 = vmatpush1.msra.mxu0 %v1139
    %1152 = vmatprep.subr.mxu0 0.0
    %1153 = vmatpush1.msra.mxu0 %v1141
    %1154 = vmatprep.subr.mxu0 0.0
    %1155 = vmatpush1.msra.mxu0 0.0
    %1156 = vmatprep.subr.mxu0 0.0
    %1157 = vmatpush1.msra.mxu0 0.0
    %1158 = vmatprep.subr.mxu0 0.0
    %1159 = vmatpush1.msra.mxu0 0.0
    %1160 = vmatprep.subr.mxu0 0.0
    %1161 = vmatpush1.msra.mxu0 0.0
    %1162 = vmatprep.subr.mxu0 0.0
    %1163 = vmatpush1.msra.mxu0 0.0
    %1164 = vmatprep.subr.mxu0 0.0
    %1165 = vmatpush1.msra.mxu0 0.0
    %1166 = vmatprep.subr.mxu0 0.0
    %1167 = vmatpush1.msra.mxu0 0.0
    %1168 = vmatprep.subr.mxu0 0.0
    %1169 = vmatpush1.msra.mxu0 0.0
    %1170 = vmatprep.subr.mxu0 0.0
    %1171 = vmatpush1.msra.mxu0 0.0
    %1172 = vmatprep.subr.mxu0 0.0
    %1173 = vmatpush1.msra.mxu0 0.0
    %1174 = vmatprep.subr.mxu0 0.0
    %1175 = vmatpush1.msra.mxu0 0.0
    %1176 = vmatprep.subr.mxu0 0.0
    %1177 = vmatpush1.msra.mxu0 0.0
    %1178 = vmatprep.subr.mxu0 0.0
    %1179 = vmatpush1.msra.mxu0 0.0
    %1180 = vmatprep.subr.mxu0 0.0
    %1181 = vmatpush1.msra.mxu0 0.0
    %1182 = vmatprep.subr.mxu0 0.0
    %1183 = vmatpush1.msra.mxu0 0.0
    %1184 = vmatprep.subr.mxu0 0.0
    %1185 = vmatpush1.msra.mxu0 0.0
    %1186 = vmatprep.subr.mxu0 0.0
    %1187 = vmatpush1.msra.mxu0 0.0
    %1188 = vmatprep.subr.mxu0 0.0
    %1189 = vmatpush1.msra.mxu0 0.0
    %1190 = vmatprep.subr.mxu0 0.0
    %1191 = vmatpush1.msra.mxu0 0.0
    %1192 = vmatprep.subr.mxu0 0.0
    %1193 = vmatpush1.msra.mxu0 0.0
    %1194 = vmatprep.subr.mxu0 0.0
    %1195 = vmatpush1.msra.mxu0 0.0
    %1196 = vmatprep.subr.mxu0 0.0
    %1197 = vmatpush1.msra.mxu0 0.0
    %1198 = vmatprep.subr.mxu0 0.0
    %1199 = vmatpush1.msra.mxu0 0.0
    %1200 = vmatprep.subr.mxu0 0.0
    %1201 = vmatpush1.msra.mxu0 0.0
    %1202 = vmatprep.subr.mxu0 0.0
    %1203 = vmatpush1.msra.mxu0 0.0
    %1204 = vmatprep.subr.mxu0 0.0
    %1205 = vmatpush1.msra.mxu0 0.0
    %1206 = vmatprep.subr.mxu0 0.0
    %1207 = vmatpush1.msra.mxu0 0.0
    %1208 = vmatprep.subr.mxu0 0.0
    %1209 = vmatpush1.msra.mxu0 0.0
    %1210 = vmatprep.subr.mxu0 0.0
    %1211 = vmatpush1.msra.mxu0 0.0
    %1212 = vmatprep.subr.mxu0 0.0
    %1213 = vmatpush1.msra.mxu0 0.0
    %1214 = vmatprep.mubr.f32.mxu0 0.0
    %1215 = vmatmul.mubr.f32.gmra.mrb[0].mxu0 %v1145
    %v1216 = vpop.f32.mrb[0].mxu0
    %v1217 = vadd.f32 0.0, %v1216
    %v1218 = vpop.f32.mrb[0].mxu0
    %1219 = vmatprep.mubr.f32.mxu0 0.0
    %1220 = vmatmul.mubr.f32.gmra.mrb[0].mxu0 %v1148
    %v1221 = vpop.f32.mrb[0].mxu0
    %v1222 = vadd.f32 0.0, %v1221
    %v1223 = vpop.f32.mrb[0].mxu0
    %1224 = vdwg.mxu0
    %v1226 = vsel %vm170, %v1217, 0
    %v1229 = vsel %vm170, %v1222, 0
    %1231 = vmatprep.subr.mxu0 0.0
    %1232 = vmatpush1.msra.mxu0 %v163
    %1233 = vmatprep.subr.mxu0 0.0
    %1234 = vmatpush1.msra.mxu0 0.0
    %1235 = vmatprep.subr.mxu0 0.0
    %1236 = vmatpush1.msra.mxu0 0.0
    %1237 = vmatprep.subr.mxu0 0.0
    %1238 = vmatpush1.msra.mxu0 0.0
    %1239 = vmatprep.subr.mxu0 0.0
    %1240 = vmatpush1.msra.mxu0 0.0
    %1241 = vmatprep.subr.mxu0 0.0
    %1242 = vmatpush1.msra.mxu0 0.0
    %1243 = vmatprep.subr.mxu0 0.0
    %1244 = vmatpush1.msra.mxu0 0.0
    %1245 = vmatprep.subr.mxu0 0.0
    %1246 = vmatpush1.msra.mxu0 0.0
    %1247 = vmatprep.subr.mxu0 0.0
    %1248 = vmatpush1.msra.mxu0 0.0
    %1249 = vmatprep.subr.mxu0 0.0
    %1250 = vmatpush1.msra.mxu0 0.0
    %1251 = vmatprep.subr.mxu0 0.0
    %1252 = vmatpush1.msra.mxu0 0.0
    %1253 = vmatprep.subr.mxu0 0.0
    %1254 = vmatpush1.msra.mxu0 0.0
    %1255 = vmatprep.subr.mxu0 0.0
    %1256 = vmatpush1.msra.mxu0 0.0
    %1257 = vmatprep.subr.mxu0 0.0
    %1258 = vmatpush1.msra.mxu0 0.0
    %1259 = vmatprep.subr.mxu0 0.0
    %1260 = vmatpush1.msra.mxu0 0.0
    %1261 = vmatprep.subr.mxu0 0.0
    %1262 = vmatpush1.msra.mxu0 0.0
    %1263 = vmatprep.subr.mxu0 0.0
    %1264 = vmatpush1.msra.mxu0 0.0
    %1265 = vmatprep.subr.mxu0 0.0
    %1266 = vmatpush1.msra.mxu0 0.0
    %1267 = vmatprep.subr.mxu0 0.0
    %1268 = vmatpush1.msra.mxu0 0.0
    %1269 = vmatprep.subr.mxu0 0.0
    %1270 = vmatpush1.msra.mxu0 0.0
    %1271 = vmatprep.subr.mxu0 0.0
    %1272 = vmatpush1.msra.mxu0 0.0
    %1273 = vmatprep.subr.mxu0 0.0
    %1274 = vmatpush1.msra.mxu0 0.0
    %1275 = vmatprep.subr.mxu0 0.0
    %1276 = vmatpush1.msra.mxu0 0.0
    %1277 = vmatprep.subr.mxu0 0.0
    %1278 = vmatpush1.msra.mxu0 0.0
    %1279 = vmatprep.subr.mxu0 0.0
    %1280 = vmatpush1.msra.mxu0 0.0
    %1281 = vmatprep.subr.mxu0 0.0
    %1282 = vmatpush1.msra.mxu0 0.0
    %1283 = vmatprep.subr.mxu0 0.0
    %1284 = vmatpush1.msra.mxu0 0.0
    %1285 = vmatprep.subr.mxu0 0.0
    %1286 = vmatpush1.msra.mxu0 0.0
    %1287 = vmatprep.subr.mxu0 0.0
    %1288 = vmatpush1.msra.mxu0 0.0
    %1289 = vmatprep.subr.mxu0 0.0
    %1290 = vmatpush1.msra.mxu0 0.0
    %1291 = vmatprep.subr.mxu0 0.0
    %1292 = vmatpush1.msra.mxu0 0.0
    %1293 = vmatprep.subr.mxu0 0.0
    %1294 = vmatpush1.msra.mxu0 0.0
    %1295 = vmatprep.mubr.f32.mxu0 0.0
    %1296 = vmatmul.mubr.f32.gmra.mrb[0].mxu0 %v1226
    %v1297 = vpop.f32.mrb[0].mxu0
    %v1298 = vadd.f32 0.0, %v1297
    %v1299 = vpop.f32.mrb[0].mxu0
    %1300 = vmatprep.mubr.f32.mxu0 0.0
    %1301 = vmatmul.mubr.f32.gmra.mrb[0].mxu0 %v1229
    %v1302 = vpop.f32.mrb[0].mxu0
    %v1303 = vadd.f32 0.0, %v1302
    %v1304 = vpop.f32.mrb[0].mxu0
    %1305 = vdwg.mxu0
    %v1306 = vadd.f32 %v1019, %v1298
    %v1307 = vadd.f32 %v1020, %v1303
    %v1308 = vld [vmem:[%s4] sm:$0x1]
    %v1310 = vlaneseq
    %v1311 = vshrl.u32 %v1310, 7
    %v1312 = vsub.s32 0, %v1311
    %v1313 = vrot.slane %v1308, %v1312
    %v1315 = vadd.f32 %v1306, %v1313
    %v1316 = vadd.f32 %v1307, %v1313
    %v1317 = vadd.f32 %v70, %v1315
    %v1318 = vadd.f32 %v71, %v1316
    %v1319 = vld [vmem:[%s5] sm:$0x1]
    %v1320 = vld [vmem:[%s6] sm:$0x1]
    %v1321 = vsel %vm78, %v1317, 0.0
    %1322 = vadd.xlane.f32.xlu0 %v1321
    %v1323 = vpop.xlane.xlu0 %1322
    %v1324 = vsel %vm78, %v1318, 0.0
    %1325 = vadd.xlane.f32.xlu0 %v1324
    %v1326 = vpop.xlane.xlu0 %1325
    %v1327 = vrcp.pop 32.0
    %v1328 = vmul.f32 %v1323, %v1327
    %v1329 = vmul.f32 %v1326, %v1327
    %v1330 = vsub.f32 %v1317, %v1328
    %v1331 = vsub.f32 %v1318, %v1329
    %v1332 = vmul.f32 %v1330, %v1330
    %v1333 = vmul.f32 %v1331, %v1331
    %v1334 = vsel %vm78, %v1332, 0.0
    %1335 = vadd.xlane.f32.xlu0 %v1334
    %v1336 = vpop.xlane.xlu0 %1335
    %v1337 = vsel %vm78, %v1333, 0.0
    %1338 = vadd.xlane.f32.xlu0 %v1337
    %v1339 = vpop.xlane.xlu0 %1338
    %v1340 = vmul.f32 %v1336, %v1327
    %v1341 = vmul.f32 %v1339, %v1327
    %v1342 = vadd.f32 %v1340, 1e-05
    %v1343 = vadd.f32 %v1341, 1e-05
    %v1344 = vrsqrt.pop %v1342
    %v1345 = vrsqrt.pop %v1343
    %v1346 = vmul.f32 %v1330, %v1344
    %v1347 = vmul.f32 %v1331, %v1345
    %v1349 = vlaneseq
    %v1350 = vshrl.u32 %v1349, 7
    %v1351 = vsub.s32 0, %v1350
    %v1352 = vrot.slane %v1319, %v1351
    %v1354 = vmul.f32 %v1346, %v1352
    %v1355 = vmul.f32 %v1347, %v1352
    %v1357 = vlaneseq
    %v1358 = vshrl.u32 %v1357, 7
    %v1359 = vsub.s32 0, %v1358
    %v1360 = vrot.slane %v1320, %v1359
    %v1362 = vadd.f32 %v1354, %v1360
    %v1363 = vadd.f32 %v1355, %v1360
    %v1364 = vld [vmem:[%s7] sm:$0xff]
    %v1365 = vld [vmem:[%s7 + $0x8] sm:$0xff]
    %v1366 = vld [vmem:[%s7 + $0x10] sm:$0xff]
    %v1367 = vld [vmem:[%s7 + $0x18] sm:$0xff]
    %v1368 = vld [vmem:[%s8] sm:$0x1]
    %v1370 = vlaneseq
    %v1371 = vshrl.u32 %v1370, 7
    %v1372 = vsub.s32 0, %v1371
    %v1373 = vrot.slane %v1368, %v1372
    %v1376 = vsel %vm78, %v1362, 0
    %v1379 = vsel %vm78, %v1363, 0
    %1381 = vmatprep.subr.mxu0 0.0
    %1382 = vmatpush1.msra.mxu0 %v1364
    %1383 = vmatprep.subr.mxu0 0.0
    %1384 = vmatpush1.msra.mxu0 %v1365
    %1385 = vmatprep.subr.mxu0 0.0
    %1386 = vmatpush1.msra.mxu0 %v1366
    %1387 = vmatprep.subr.mxu0 0.0
    %1388 = vmatpush1.msra.mxu0 %v1367
    %1389 = vmatprep.subr.mxu0 0.0
    %1390 = vmatpush1.msra.mxu0 0.0
    %1391 = vmatprep.subr.mxu0 0.0
    %1392 = vmatpush1.msra.mxu0 0.0
    %1393 = vmatprep.subr.mxu0 0.0
    %1394 = vmatpush1.msra.mxu0 0.0
    %1395 = vmatprep.subr.mxu0 0.0
    %1396 = vmatpush1.msra.mxu0 0.0
    %1397 = vmatprep.subr.mxu0 0.0
    %1398 = vmatpush1.msra.mxu0 0.0
    %1399 = vmatprep.subr.mxu0 0.0
    %1400 = vmatpush1.msra.mxu0 0.0
    %1401 = vmatprep.subr.mxu0 0.0
    %1402 = vmatpush1.msra.mxu0 0.0
    %1403 = vmatprep.subr.mxu0 0.0
    %1404 = vmatpush1.msra.mxu0 0.0
    %1405 = vmatprep.subr.mxu0 0.0
    %1406 = vmatpush1.msra.mxu0 0.0
    %1407 = vmatprep.subr.mxu0 0.0
    %1408 = vmatpush1.msra.mxu0 0.0
    %1409 = vmatprep.subr.mxu0 0.0
    %1410 = vmatpush1.msra.mxu0 0.0
    %1411 = vmatprep.subr.mxu0 0.0
    %1412 = vmatpush1.msra.mxu0 0.0
    %1413 = vmatprep.subr.mxu0 0.0
    %1414 = vmatpush1.msra.mxu0 0.0
    %1415 = vmatprep.subr.mxu0 0.0
    %1416 = vmatpush1.msra.mxu0 0.0
    %1417 = vmatprep.subr.mxu0 0.0
    %1418 = vmatpush1.msra.mxu0 0.0
    %1419 = vmatprep.subr.mxu0 0.0
    %1420 = vmatpush1.msra.mxu0 0.0
    %1421 = vmatprep.subr.mxu0 0.0
    %1422 = vmatpush1.msra.mxu0 0.0
    %1423 = vmatprep.subr.mxu0 0.0
    %1424 = vmatpush1.msra.mxu0 0.0
    %1425 = vmatprep.subr.mxu0 0.0
    %1426 = vmatpush1.msra.mxu0 0.0
    %1427 = vmatprep.subr.mxu0 0.0
    %1428 = vmatpush1.msra.mxu0 0.0
    %1429 = vmatprep.subr.mxu0 0.0
    %1430 = vmatpush1.msra.mxu0 0.0
    %1431 = vmatprep.subr.mxu0 0.0
    %1432 = vmatpush1.msra.mxu0 0.0
    %1433 = vmatprep.subr.mxu0 0.0
    %1434 = vmatpush1.msra.mxu0 0.0
    %1435 = vmatprep.subr.mxu0 0.0
    %1436 = vmatpush1.msra.mxu0 0.0
    %1437 = vmatprep.subr.mxu0 0.0
    %1438 = vmatpush1.msra.mxu0 0.0
    %1439 = vmatprep.subr.mxu0 0.0
    %1440 = vmatpush1.msra.mxu0 0.0
    %1441 = vmatprep.subr.mxu0 0.0
    %1442 = vmatpush1.msra.mxu0 0.0
    %1443 = vmatprep.subr.mxu0 0.0
    %1444 = vmatpush1.msra.mxu0 0.0
    %1445 = vmatprep.mubr.f32.mxu0 0.0
    %1446 = vmatmul.mubr.f32.gmra.mrb[0].mxu0 %v1376
    %v1447 = vpop.f32.mrb[0].mxu0
    %v1448 = vadd.f32 %v1373, %v1447
    %v1449 = vpop.f32.mrb[0].mxu0
    %1450 = vmatprep.mubr.f32.mxu0 0.0
    %1451 = vmatmul.mubr.f32.gmra.mrb[0].mxu0 %v1379
    %v1452 = vpop.f32.mrb[0].mxu0
    %v1453 = vadd.f32 %v1373, %v1452
    %v1454 = vpop.f32.mrb[0].mxu0
    %1455 = vdwg.mxu0
    %v1456 = vmax.f32 %v1448, 0.0
    %v1457 = vmax.f32 %v1453, 0.0
    %v1458 = vld [vmem:[#allocation2] sm:$0xff]
    %v1459 = vld [vmem:[#allocation2 + $0x8] sm:$0xff]
    %v1460 = vld [vmem:[#allocation2 + $0x10] sm:$0xff]
    %v1461 = vld [vmem:[#allocation2 + $0x18] sm:$0xff]
    %v1462 = vld [vmem:[#allocation2 + $0x20] sm:$0xff]
    %v1463 = vld [vmem:[#allocation2 + $0x28] sm:$0xff]
    %v1464 = vld [vmem:[#allocation2 + $0x30] sm:$0xff]
    %v1465 = vld [vmem:[#allocation2 + $0x38] sm:$0xff]
    %v1466 = vld [vmem:[#allocation2 + $0x40] sm:$0xff]
    %v1467 = vld [vmem:[#allocation2 + $0x48] sm:$0xff]
    %v1468 = vld [vmem:[#allocation2 + $0x50] sm:$0xff]
    %v1469 = vld [vmem:[#allocation2 + $0x58] sm:$0xff]
    %v1470 = vld [vmem:[#allocation2 + $0x60] sm:$0xff]
    %v1471 = vld [vmem:[#allocation2 + $0x68] sm:$0xff]
    %v1472 = vld [vmem:[#allocation2 + $0x70] sm:$0xff]
    %v1473 = vld [vmem:[#allocation2 + $0x78] sm:$0xff]
    %v1474 = vld [vmem:[%s10] sm:$0x1]
    %v1476 = vlaneseq
    %v1477 = vshrl.u32 %v1476, 7
    %v1478 = vsub.s32 0, %v1477
    %v1479 = vrot.slane %v1474, %v1478
    %1481 = vmatprep.subr.mxu0 0.0
    %1482 = vmatpush1.msra.mxu0 %v1458
    %1483 = vmatprep.subr.mxu0 0.0
    %1484 = vmatpush1.msra.mxu0 %v1459
    %1485 = vmatprep.subr.mxu0 0.0
    %1486 = vmatpush1.msra.mxu0 %v1460
    %1487 = vmatprep.subr.mxu0 0.0
    %1488 = vmatpush1.msra.mxu0 %v1461
    %1489 = vmatprep.subr.mxu0 0.0
    %1490 = vmatpush1.msra.mxu0 %v1462
    %1491 = vmatprep.subr.mxu0 0.0
    %1492 = vmatpush1.msra.mxu0 %v1463
    %1493 = vmatprep.subr.mxu0 0.0
    %1494 = vmatpush1.msra.mxu0 %v1464
    %1495 = vmatprep.subr.mxu0 0.0
    %1496 = vmatpush1.msra.mxu0 %v1465
    %1497 = vmatprep.subr.mxu0 0.0
    %1498 = vmatpush1.msra.mxu0 %v1466
    %1499 = vmatprep.subr.mxu0 0.0
    %1500 = vmatpush1.msra.mxu0 %v1467
    %1501 = vmatprep.subr.mxu0 0.0
    %1502 = vmatpush1.msra.mxu0 %v1468
    %1503 = vmatprep.subr.mxu0 0.0
    %1504 = vmatpush1.msra.mxu0 %v1469
    %1505 = vmatprep.subr.mxu0 0.0
    %1506 = vmatpush1.msra.mxu0 %v1470
    %1507 = vmatprep.subr.mxu0 0.0
    %1508 = vmatpush1.msra.mxu0 %v1471
    %1509 = vmatprep.subr.mxu0 0.0
    %1510 = vmatpush1.msra.mxu0 %v1472
    %1511 = vmatprep.subr.mxu0 0.0
    %1512 = vmatpush1.msra.mxu0 %v1473
    %1513 = vmatprep.subr.mxu0 0.0
    %1514 = vmatpush1.msra.mxu0 0.0
    %1515 = vmatprep.subr.mxu0 0.0
    %1516 = vmatpush1.msra.mxu0 0.0
    %1517 = vmatprep.subr.mxu0 0.0
    %1518 = vmatpush1.msra.mxu0 0.0
    %1519 = vmatprep.subr.mxu0 0.0
    %1520 = vmatpush1.msra.mxu0 0.0
    %1521 = vmatprep.subr.mxu0 0.0
    %1522 = vmatpush1.msra.mxu0 0.0
    %1523 = vmatprep.subr.mxu0 0.0
    %1524 = vmatpush1.msra.mxu0 0.0
    %1525 = vmatprep.subr.mxu0 0.0
    %1526 = vmatpush1.msra.mxu0 0.0
    %1527 = vmatprep.subr.mxu0 0.0
    %1528 = vmatpush1.msra.mxu0 0.0
    %1529 = vmatprep.subr.mxu0 0.0
    %1530 = vmatpush1.msra.mxu0 0.0
    %1531 = vmatprep.subr.mxu0 0.0
    %1532 = vmatpush1.msra.mxu0 0.0
    %1533 = vmatprep.subr.mxu0 0.0
    %1534 = vmatpush1.msra.mxu0 0.0
    %1535 = vmatprep.subr.mxu0 0.0
    %1536 = vmatpush1.msra.mxu0 0.0
    %1537 = vmatprep.subr.mxu0 0.0
    %1538 = vmatpush1.msra.mxu0 0.0
    %1539 = vmatprep.subr.mxu0 0.0
    %1540 = vmatpush1.msra.mxu0 0.0
    %1541 = vmatprep.subr.mxu0 0.0
    %1542 = vmatpush1.msra.mxu0 0.0
    %1543 = vmatprep.subr.mxu0 0.0
    %1544 = vmatpush1.msra.mxu0 0.0
    %1545 = vmatprep.mubr.f32.mxu0 0.0
    %1546 = vmatmul.mubr.f32.gmra.mrb[0].mxu0 %v1456
    %v1547 = vpop.f32.mrb[0].mxu0
    %v1548 = vadd.f32 %v1479, %v1547
    %v1549 = vpop.f32.mrb[0].mxu0
    %1550 = vmatprep.mubr.f32.mxu0 0.0
    %1551 = vmatmul.mubr.f32.gmra.mrb[0].mxu0 %v1457
    %v1552 = vpop.f32.mrb[0].mxu0
    %v1553 = vadd.f32 %v1479, %v1552
    %v1554 = vpop.f32.mrb[0].mxu0
    %1555 = vdwg.mxu0
    %v1556 = vadd.f32 %v1362, %v1548
    %v1557 = vadd.f32 %v1363, %v1553
    %v1558 = vld [vmem:[%s11] sm:$0x1]
    %v1559 = vld [vmem:[%s12] sm:$0x1]
    %v1560 = vsel %vm78, %v1556, 0.0
    %1561 = vadd.xlane.f32.xlu0 %v1560
    %v1562 = vpop.xlane.xlu0 %1561
    %v1563 = vsel %vm78, %v1557, 0.0
    %1564 = vadd.xlane.f32.xlu0 %v1563
    %v1565 = vpop.xlane.xlu0 %1564
    %v1566 = vmul.f32 %v1562, %v1327
    %v1567 = vmul.f32 %v1565, %v1327
    %v1568 = vsub.f32 %v1556, %v1566
    %v1569 = vsub.f32 %v1557, %v1567
    %v1570 = vmul.f32 %v1568, %v1568
    %v1571 = vmul.f32 %v1569, %v1569
    %v1572 = vsel %vm78, %v1570, 0.0
    %1573 = vadd.xlane.f32.xlu0 %v1572
    %v1574 = vpop.xlane.xlu0 %1573
    %v1575 = vsel %vm78, %v1571, 0.0
    %1576 = vadd.xlane.f32.xlu0 %v1575
    %v1577 = vpop.xlane.xlu0 %1576
    %v1578 = vmul.f32 %v1574, %v1327
    %v1579 = vmul.f32 %v1577, %v1327
    %v1580 = vadd.f32 %v1578, 1e-05
    %v1581 = vadd.f32 %v1579, 1e-05
    %v1582 = vrsqrt.pop %v1580
    %v1583 = vrsqrt.pop %v1581
    %v1584 = vmul.f32 %v1568, %v1582
    %v1585 = vmul.f32 %v1569, %v1583
    %v1587 = vlaneseq
    %v1588 = vshrl.u32 %v1587, 7
    %v1589 = vsub.s32 0, %v1588
    %v1590 = vrot.slane %v1558, %v1589
    %v1592 = vmul.f32 %v1584, %v1590
    %v1593 = vmul.f32 %v1585, %v1590
    %v1595 = vlaneseq
    %v1596 = vshrl.u32 %v1595, 7
    %v1597 = vsub.s32 0, %v1596
    %v1598 = vrot.slane %v1559, %v1597
    %v1600 = vadd.f32 %v1592, %v1598
    %v1601 = vadd.f32 %v1593, %v1598
    %s1602 = scalar_lea.vmem %s2, 32
    %v1603 = vld [vmem:[%s1602] sm:$0xff]
    %v1604 = vld [vmem:[%s1602 + $0x8] sm:$0xff]
    %v1605 = vld [vmem:[%s1602 + $0x10] sm:$0xff]
    %v1606 = vld [vmem:[%s1602 + $0x18] sm:$0xff]
    %v1608 = vsel %vm78, %v1600, 0
    %v1611 = vsel %vm78, %v1601, 0
    %1613 = vmatprep.subr.mxu0 0.0
    %1614 = vmatpush1.msra.mxu0 %v1603
    %1615 = vmatprep.subr.mxu0 0.0
    %1616 = vmatpush1.msra.mxu0 %v1604
    %1617 = vmatprep.subr.mxu0 0.0
    %1618 = vmatpush1.msra.mxu0 %v1605
    %1619 = vmatprep.subr.mxu0 0.0
    %1620 = vmatpush1.msra.mxu0 %v1606
    %1621 = vmatprep.subr.mxu0 0.0
    %1622 = vmatpush1.msra.mxu0 0.0
    %1623 = vmatprep.subr.mxu0 0.0
    %1624 = vmatpush1.msra.mxu0 0.0
    %1625 = vmatprep.subr.mxu0 0.0
    %1626 = vmatpush1.msra.mxu0 0.0
    %1627 = vmatprep.subr.mxu0 0.0
    %1628 = vmatpush1.msra.mxu0 0.0
    %1629 = vmatprep.subr.mxu0 0.0
    %1630 = vmatpush1.msra.mxu0 0.0
    %1631 = vmatprep.subr.mxu0 0.0
    %1632 = vmatpush1.msra.mxu0 0.0
    %1633 = vmatprep.subr.mxu0 0.0
    %1634 = vmatpush1.msra.mxu0 0.0
    %1635 = vmatprep.subr.mxu0 0.0
    %1636 = vmatpush1.msra.mxu0 0.0
    %1637 = vmatprep.subr.mxu0 0.0
    %1638 = vmatpush1.msra.mxu0 0.0
    %1639 = vmatprep.subr.mxu0 0.0
    %1640 = vmatpush1.msra.mxu0 0.0
    %1641 = vmatprep.subr.mxu0 0.0
    %1642 = vmatpush1.msra.mxu0 0.0
    %1643 = vmatprep.subr.mxu0 0.0
    %1644 = vmatpush1.msra.mxu0 0.0
    %1645 = vmatprep.subr.mxu0 0.0
    %1646 = vmatpush1.msra.mxu0 0.0
    %1647 = vmatprep.subr.mxu0 0.0
    %1648 = vmatpush1.msra.mxu0 0.0
    %1649 = vmatprep.subr.mxu0 0.0
    %1650 = vmatpush1.msra.mxu0 0.0
    %1651 = vmatprep.subr.mxu0 0.0
    %1652 = vmatpush1.msra.mxu0 0.0
    %1653 = vmatprep.subr.mxu0 0.0
    %1654 = vmatpush1.msra.mxu0 0.0
    %1655 = vmatprep.subr.mxu0 0.0
    %1656 = vmatpush1.msra.mxu0 0.0
    %1657 = vmatprep.subr.mxu0 0.0
    %1658 = vmatpush1.msra.mxu0 0.0
    %1659 = vmatprep.subr.mxu0 0.0
    %1660 = vmatpush1.msra.mxu0 0.0
    %1661 = vmatprep.subr.mxu0 0.0
    %1662 = vmatpush1.msra.mxu0 0.0
    %1663 = vmatprep.subr.mxu0 0.0
    %1664 = vmatpush1.msra.mxu0 0.0
    %1665 = vmatprep.subr.mxu0 0.0
    %1666 = vmatpush1.msra.mxu0 0.0
    %1667 = vmatprep.subr.mxu0 0.0
    %1668 = vmatpush1.msra.mxu0 0.0
    %1669 = vmatprep.subr.mxu0 0.0
    %1670 = vmatpush1.msra.mxu0 0.0
    %1671 = vmatprep.subr.mxu0 0.0
    %1672 = vmatpush1.msra.mxu0 0.0
    %1673 = vmatprep.subr.mxu0 0.0
    %1674 = vmatpush1.msra.mxu0 0.0
    %1675 = vmatprep.subr.mxu0 0.0
    %1676 = vmatpush1.msra.mxu0 0.0
    %1677 = vmatprep.mubr.f32.mxu0 0.0
    %1678 = vmatmul.mubr.f32.gmra.mrb[0].mxu0 %v1608
    %v1679 = vpop.f32.mrb[0].mxu0
    %v1680 = vadd.f32 0.0, %v1679
    %v1681 = vpop.f32.mrb[0].mxu0
    %1682 = vmatprep.mubr.f32.mxu0 0.0
    %1683 = vmatmul.mubr.f32.gmra.mrb[0].mxu0 %v1611
    %v1684 = vpop.f32.mrb[0].mxu0
    %v1685 = vadd.f32 0.0, %v1684
    %v1686 = vpop.f32.mrb[0].mxu0
    %1687 = vdwg.mxu0
    %s1688 = scalar_lea.vmem %s3, 32
    %v1689 = vld [vmem:[%s1688] sm:$0xff]
    %v1690 = vld [vmem:[%s1688 + $0x8] sm:$0xff]
    %v1691 = vld [vmem:[%s1688 + $0x10] sm:$0xff]
    %v1692 = vld [vmem:[%s1688 + $0x18] sm:$0xff]
    %1695 = vrot.lane.b32.xlu0 %v1680, 96
    %v1696 = vpop.permute.xlu0 %1695
    %1697 = vrot.lane.b32.xlu0 %v1685, 96
    %v1698 = vpop.permute.xlu0 %1697
    %v1699 = vsel %vm170, %v1680, 0
    %v1701 = vsel %vm170, %v1685, 0
    %v1703 = vsel %vm170, %v1696, 0
    %v1705 = vsel %vm170, %v1698, 0
    %1707 = vmatprep.subr.mxu0 0.0
    %1708 = vmatpush1.xpose.msra.mxu0 %v1703
    %1709 = vmatprep.subr.mxu0 0.0
    %1710 = vmatpush1.xpose.msra.mxu0 %v1705
    %1711 = vmatprep.subr.mxu0 0.0
    %1712 = vmatpush1.xpose.msra.mxu0 0.0
    %1713 = vmatprep.subr.mxu0 0.0
    %1714 = vmatpush1.xpose.msra.mxu0 0.0
    %1715 = vmatprep.subr.mxu0 0.0
    %1716 = vmatpush1.xpose.msra.mxu0 0.0
    %1717 = vmatprep.subr.mxu0 0.0
    %1718 = vmatpush1.xpose.msra.mxu0 0.0
    %1719 = vmatprep.subr.mxu0 0.0
    %1720 = vmatpush1.xpose.msra.mxu0 0.0
    %1721 = vmatprep.subr.mxu0 0.0
    %1722 = vmatpush1.xpose.msra.mxu0 0.0
    %1723 = vmatprep.subr.mxu0 0.0
    %1724 = vmatpush1.xpose.msra.mxu0 0.0
    %1725 = vmatprep.subr.mxu0 0.0
    %1726 = vmatpush1.xpose.msra.mxu0 0.0
    %1727 = vmatprep.subr.mxu0 0.0
    %1728 = vmatpush1.xpose.msra.mxu0 0.0
    %1729 = vmatprep.subr.mxu0 0.0
    %1730 = vmatpush1.xpose.msra.mxu0 0.0
    %1731 = vmatprep.subr.mxu0 0.0
    %1732 = vmatpush1.xpose.msra.mxu0 0.0
    %1733 = vmatprep.subr.mxu0 0.0
    %1734 = vmatpush1.xpose.msra.mxu0 0.0
    %1735 = vmatprep.subr.mxu0 0.0
    %1736 = vmatpush1.xpose.msra.mxu0 0.0
    %1737 = vmatprep.subr.mxu0 0.0
    %1738 = vmatpush1.xpose.msra.mxu0 0.0
    %1739 = vmatprep.subr.mxu0 0.0
    %1740 = vmatpush1.xpose.msra.mxu0 0.0
    %1741 = vmatprep.subr.mxu0 0.0
    %1742 = vmatpush1.xpose.msra.mxu0 0.0
    %1743 = vmatprep.subr.mxu0 0.0
    %1744 = vmatpush1.xpose.msra.mxu0 0.0
    %1745 = vmatprep.subr.mxu0 0.0
    %1746 = vmatpush1.xpose.msra.mxu0 0.0
    %1747 = vmatprep.subr.mxu0 0.0
    %1748 = vmatpush1.xpose.msra.mxu0 0.0
    %1749 = vmatprep.subr.mxu0 0.0
    %1750 = vmatpush1.xpose.msra.mxu0 0.0
    %1751 = vmatprep.subr.mxu0 0.0
    %1752 = vmatpush1.xpose.msra.mxu0 0.0
    %1753 = vmatprep.subr.mxu0 0.0
    %1754 = vmatpush1.xpose.msra.mxu0 0.0
    %1755 = vmatprep.subr.mxu0 0.0
    %1756 = vmatpush1.xpose.msra.mxu0 0.0
    %1757 = vmatprep.subr.mxu0 0.0
    %1758 = vmatpush1.xpose.msra.mxu0 0.0
    %1759 = vmatprep.subr.mxu0 0.0
    %1760 = vmatpush1.xpose.msra.mxu0 0.0
    %1761 = vmatprep.subr.mxu0 0.0
    %1762 = vmatpush1.xpose.msra.mxu0 0.0
    %1763 = vmatprep.subr.mxu0 0.0
    %1764 = vmatpush1.xpose.msra.mxu0 0.0
    %1765 = vmatprep.subr.mxu0 0.0
    %1766 = vmatpush1.xpose.msra.mxu0 0.0
    %1767 = vmatprep.subr.mxu0 0.0
    %1768 = vmatpush1.xpose.msra.mxu0 0.0
    %1769 = vmatprep.subr.mxu0 0.0
    %1770 = vmatpush1.xpose.msra.mxu0 0.0
    %1771 = vmatprep.mubr.f32.mxu0 0.0
    %1772 = vmatmul.mubr.f32.gmra.mrb[0].mxu0 %v1699
    %v1773 = vpop.f32.mrb[0].mxu0
    %v1774 = vadd.f32 0.0, %v1773
    %v1775 = vpop.f32.mrb[0].mxu0
    %1776 = vmatprep.mubr.f32.mxu0 0.0
    %1777 = vmatmul.mubr.f32.gmra.mrb[0].mxu0 %v1701
    %v1778 = vpop.f32.mrb[0].mxu0
    %v1779 = vadd.f32 0.0, %v1778
    %v1780 = vpop.f32.mrb[0].mxu0
    %1781 = vdwg.mxu0
    %v1782 = vmul.f32 %v1774, 0.35355338
    %v1783 = vmul.f32 %v1779, 0.35355338
    %v1784 = vadd.f32 %v1782, %v72
    %v1785 = vadd.f32 %v1783, %v73
    %v1786 = vsel %vm258, %v1784, -inf
    %1787 = vmax.xlane.f32.xlu0 %v1786
    %v1788 = vpop.xlane.xlu0 %1787
    %v1789 = vsel %vm258, %v1785, -inf
    %1790 = vmax.xlane.f32.xlu0 %v1789
    %v1791 = vpop.xlane.xlu0 %1790
    %v1792 = vsub.f32 %v1784, %v1788
    %v1793 = vsub.f32 %v1785, %v1791
    %v1794 = vmul.f32 %v1792, 1.442695
    %v1795 = vpow.pop %v1794
    %v1796 = vmul.f32 %v1793, 1.442695
    %v1797 = vpow.pop %v1796
    %v1798 = vsel %vm258, %v1795, 0.0
    %1799 = vadd.xlane.f32.xlu0 %v1798
    %v1800 = vpop.xlane.xlu0 %1799
    %v1801 = vsel %vm258, %v1797, 0.0
    %1802 = vadd.xlane.f32.xlu0 %v1801
    %v1803 = vpop.xlane.xlu0 %1802
    %v1804 = vrcp.pop %v1800
    %v1805 = vrcp.pop %v1803
    %v1806 = vmul.f32 %v1795, %v1804
    %v1807 = vmul.f32 %v1797, %v1805
    %1808 = vrot.lane.b32.xlu0 %v1680, 64
    %v1809 = vpop.permute.xlu0 %1808
    %1810 = vrot.lane.b32.xlu0 %v1685, 64
    %v1811 = vpop.permute.xlu0 %1810
    %v1815 = vsel %vm258, %v1806, 0
    %v1818 = vsel %vm258, %v1807, 0
    %1820 = vmatprep.subr.mxu0 0.0
    %1821 = vmatpush1.msra.mxu0 %v1809
    %1822 = vmatprep.subr.mxu0 0.0
    %1823 = vmatpush1.msra.mxu0 %v1811
    %1824 = vmatprep.subr.mxu0 0.0
    %1825 = vmatpush1.msra.mxu0 0.0
    %1826 = vmatprep.subr.mxu0 0.0
    %1827 = vmatpush1.msra.mxu0 0.0
    %1828 = vmatprep.subr.mxu0 0.0
    %1829 = vmatpush1.msra.mxu0 0.0
    %1830 = vmatprep.subr.mxu0 0.0
    %1831 = vmatpush1.msra.mxu0 0.0
    %1832 = vmatprep.subr.mxu0 0.0
    %1833 = vmatpush1.msra.mxu0 0.0
    %1834 = vmatprep.subr.mxu0 0.0
    %1835 = vmatpush1.msra.mxu0 0.0
    %1836 = vmatprep.subr.mxu0 0.0
    %1837 = vmatpush1.msra.mxu0 0.0
    %1838 = vmatprep.subr.mxu0 0.0
    %1839 = vmatpush1.msra.mxu0 0.0
    %1840 = vmatprep.subr.mxu0 0.0
    %1841 = vmatpush1.msra.mxu0 0.0
    %1842 = vmatprep.subr.mxu0 0.0
    %1843 = vmatpush1.msra.mxu0 0.0
    %1844 = vmatprep.subr.mxu0 0.0
    %1845 = vmatpush1.msra.mxu0 0.0
    %1846 = vmatprep.subr.mxu0 0.0
    %1847 = vmatpush1.msra.mxu0 0.0
    %1848 = vmatprep.subr.mxu0 0.0
    %1849 = vmatpush1.msra.mxu0 0.0
    %1850 = vmatprep.subr.mxu0 0.0
    %1851 = vmatpush1.msra.mxu0 0.0
    %1852 = vmatprep.subr.mxu0 0.0
    %1853 = vmatpush1.msra.mxu0 0.0
    %1854 = vmatprep.subr.mxu0 0.0
    %1855 = vmatpush1.msra.mxu0 0.0
    %1856 = vmatprep.subr.mxu0 0.0
    %1857 = vmatpush1.msra.mxu0 0.0
    %1858 = vmatprep.subr.mxu0 0.0
    %1859 = vmatpush1.msra.mxu0 0.0
    %1860 = vmatprep.subr.mxu0 0.0
    %1861 = vmatpush1.msra.mxu0 0.0
    %1862 = vmatprep.subr.mxu0 0.0
    %1863 = vmatpush1.msra.mxu0 0.0
    %1864 = vmatprep.subr.mxu0 0.0
    %1865 = vmatpush1.msra.mxu0 0.0
    %1866 = vmatprep.subr.mxu0 0.0
    %1867 = vmatpush1.msra.mxu0 0.0
    %1868 = vmatprep.subr.mxu0 0.0
    %1869 = vmatpush1.msra.mxu0 0.0
    %1870 = vmatprep.subr.mxu0 0.0
    %1871 = vmatpush1.msra.mxu0 0.0
    %1872 = vmatprep.subr.mxu0 0.0
    %1873 = vmatpush1.msra.mxu0 0.0
    %1874 = vmatprep.subr.mxu0 0.0
    %1875 = vmatpush1.msra.mxu0 0.0
    %1876 = vmatprep.subr.mxu0 0.0
    %1877 = vmatpush1.msra.mxu0 0.0
    %1878 = vmatprep.subr.mxu0 0.0
    %1879 = vmatpush1.msra.mxu0 0.0
    %1880 = vmatprep.subr.mxu0 0.0
    %1881 = vmatpush1.msra.mxu0 0.0
    %1882 = vmatprep.subr.mxu0 0.0
    %1883 = vmatpush1.msra.mxu0 0.0
    %1884 = vmatprep.mubr.f32.mxu0 0.0
    %1885 = vmatmul.mubr.f32.gmra.mrb[0].mxu0 %v1815
    %v1886 = vpop.f32.mrb[0].mxu0
    %v1887 = vadd.f32 0.0, %v1886
    %v1888 = vpop.f32.mrb[0].mxu0
    %1889 = vmatprep.mubr.f32.mxu0 0.0
    %1890 = vmatmul.mubr.f32.gmra.mrb[0].mxu0 %v1818
    %v1891 = vpop.f32.mrb[0].mxu0
    %v1892 = vadd.f32 0.0, %v1891
    %v1893 = vpop.f32.mrb[0].mxu0
    %1894 = vdwg.mxu0
    %1895 = vrot.lane.b32.xlu0 %v1680, 120
    %v1896 = vpop.permute.xlu0 %1895
    %1897 = vrot.lane.b32.xlu0 %v1685, 120
    %v1898 = vpop.permute.xlu0 %1897
    %1899 = vrot.lane.b32.xlu0 %v1680, 88
    %v1900 = vpop.permute.xlu0 %1899
    %1901 = vrot.lane.b32.xlu0 %v1685, 88
    %v1902 = vpop.permute.xlu0 %1901
    %v1903 = vsel %vm170, %v1896, 0
    %v1905 = vsel %vm170, %v1898, 0
    %v1907 = vsel %vm170, %v1900, 0
    %v1909 = vsel %vm170, %v1902, 0
    %1911 = vmatprep.subr.mxu0 0.0
    %1912 = vmatpush1.xpose.msra.mxu0 %v1907
    %1913 = vmatprep.subr.mxu0 0.0
    %1914 = vmatpush1.xpose.msra.mxu0 %v1909
    %1915 = vmatprep.subr.mxu0 0.0
    %1916 = vmatpush1.xpose.msra.mxu0 0.0
    %1917 = vmatprep.subr.mxu0 0.0
    %1918 = vmatpush1.xpose.msra.mxu0 0.0
    %1919 = vmatprep.subr.mxu0 0.0
    %1920 = vmatpush1.xpose.msra.mxu0 0.0
    %1921 = vmatprep.subr.mxu0 0.0
    %1922 = vmatpush1.xpose.msra.mxu0 0.0
    %1923 = vmatprep.subr.mxu0 0.0
    %1924 = vmatpush1.xpose.msra.mxu0 0.0
    %1925 = vmatprep.subr.mxu0 0.0
    %1926 = vmatpush1.xpose.msra.mxu0 0.0
    %1927 = vmatprep.subr.mxu0 0.0
    %1928 = vmatpush1.xpose.msra.mxu0 0.0
    %1929 = vmatprep.subr.mxu0 0.0
    %1930 = vmatpush1.xpose.msra.mxu0 0.0
    %1931 = vmatprep.subr.mxu0 0.0
    %1932 = vmatpush1.xpose.msra.mxu0 0.0
    %1933 = vmatprep.subr.mxu0 0.0
    %1934 = vmatpush1.xpose.msra.mxu0 0.0
    %1935 = vmatprep.subr.mxu0 0.0
    %1936 = vmatpush1.xpose.msra.mxu0 0.0
    %1937 = vmatprep.subr.mxu0 0.0
    %1938 = vmatpush1.xpose.msra.mxu0 0.0
    %1939 = vmatprep.subr.mxu0 0.0
    %1940 = vmatpush1.xpose.msra.mxu0 0.0
    %1941 = vmatprep.subr.mxu0 0.0
    %1942 = vmatpush1.xpose.msra.mxu0 0.0
    %1943 = vmatprep.subr.mxu0 0.0
    %1944 = vmatpush1.xpose.msra.mxu0 0.0
    %1945 = vmatprep.subr.mxu0 0.0
    %1946 = vmatpush1.xpose.msra.mxu0 0.0
    %1947 = vmatprep.subr.mxu0 0.0
    %1948 = vmatpush1.xpose.msra.mxu0 0.0
    %1949 = vmatprep.subr.mxu0 0.0
    %1950 = vmatpush1.xpose.msra.mxu0 0.0
    %1951 = vmatprep.subr.mxu0 0.0
    %1952 = vmatpush1.xpose.msra.mxu0 0.0
    %1953 = vmatprep.subr.mxu0 0.0
    %1954 = vmatpush1.xpose.msra.mxu0 0.0
    %1955 = vmatprep.subr.mxu0 0.0
    %1956 = vmatpush1.xpose.msra.mxu0 0.0
    %1957 = vmatprep.subr.mxu0 0.0
    %1958 = vmatpush1.xpose.msra.mxu0 0.0
    %1959 = vmatprep.subr.mxu0 0.0
    %1960 = vmatpush1.xpose.msra.mxu0 0.0
    %1961 = vmatprep.subr.mxu0 0.0
    %1962 = vmatpush1.xpose.msra.mxu0 0.0
    %1963 = vmatprep.subr.mxu0 0.0
    %1964 = vmatpush1.xpose.msra.mxu0 0.0
    %1965 = vmatprep.subr.mxu0 0.0
    %1966 = vmatpush1.xpose.msra.mxu0 0.0
    %1967 = vmatprep.subr.mxu0 0.0
    %1968 = vmatpush1.xpose.msra.mxu0 0.0
    %1969 = vmatprep.subr.mxu0 0.0
    %1970 = vmatpush1.xpose.msra.mxu0 0.0
    %1971 = vmatprep.subr.mxu0 0.0
    %1972 = vmatpush1.xpose.msra.mxu0 0.0
    %1973 = vmatprep.subr.mxu0 0.0
    %1974 = vmatpush1.xpose.msra.mxu0 0.0
    %1975 = vmatprep.mubr.f32.mxu0 0.0
    %1976 = vmatmul.mubr.f32.gmra.mrb[0].mxu0 %v1903
    %v1977 = vpop.f32.mrb[0].mxu0
    %v1978 = vadd.f32 0.0, %v1977
    %v1979 = vpop.f32.mrb[0].mxu0
    %1980 = vmatprep.mubr.f32.mxu0 0.0
    %1981 = vmatmul.mubr.f32.gmra.mrb[0].mxu0 %v1905
    %v1982 = vpop.f32.mrb[0].mxu0
    %v1983 = vadd.f32 0.0, %v1982
    %v1984 = vpop.f32.mrb[0].mxu0
    %1985 = vdwg.mxu0
    %v1986 = vmul.f32 %v1978, 0.35355338
    %v1987 = vmul.f32 %v1983, 0.35355338
    %v1988 = vadd.f32 %v1986, %v72
    %v1989 = vadd.f32 %v1987, %v73
    %v1990 = vsel %vm258, %v1988, -inf
    %1991 = vmax.xlane.f32.xlu0 %v1990
    %v1992 = vpop.xlane.xlu0 %1991
    %v1993 = vsel %vm258, %v1989, -inf
    %1994 = vmax.xlane.f32.xlu0 %v1993
    %v1995 = vpop.xlane.xlu0 %1994
    %v1996 = vsub.f32 %v1988, %v1992
    %v1997 = vsub.f32 %v1989, %v1995
    %v1998 = vmul.f32 %v1996, 1.442695
    %v1999 = vpow.pop %v1998
    %v2000 = vmul.f32 %v1997, 1.442695
    %v2001 = vpow.pop %v2000
    %v2002 = vsel %vm258, %v1999, 0.0
    %2003 = vadd.xlane.f32.xlu0 %v2002
    %v2004 = vpop.xlane.xlu0 %2003
    %v2005 = vsel %vm258, %v2001, 0.0
    %2006 = vadd.xlane.f32.xlu0 %v2005
    %v2007 = vpop.xlane.xlu0 %2006
    %v2008 = vrcp.pop %v2004
    %v2009 = vrcp.pop %v2007
    %v2010 = vmul.f32 %v1999, %v2008
    %v2011 = vmul.f32 %v2001, %v2009
    %2012 = vrot.lane.b32.xlu0 %v1680, 56
    %v2013 = vpop.permute.xlu0 %2012
    %2014 = vrot.lane.b32.xlu0 %v1685, 56
    %v2015 = vpop.permute.xlu0 %2014
    %v2019 = vsel %vm258, %v2010, 0
    %v2022 = vsel %vm258, %v2011, 0
    %2024 = vmatprep.subr.mxu0 0.0
    %2025 = vmatpush1.msra.mxu0 %v2013
    %2026 = vmatprep.subr.mxu0 0.0
    %2027 = vmatpush1.msra.mxu0 %v2015
    %2028 = vmatprep.subr.mxu0 0.0
    %2029 = vmatpush1.msra.mxu0 0.0
    %2030 = vmatprep.subr.mxu0 0.0
    %2031 = vmatpush1.msra.mxu0 0.0
    %2032 = vmatprep.subr.mxu0 0.0
    %2033 = vmatpush1.msra.mxu0 0.0
    %2034 = vmatprep.subr.mxu0 0.0
    %2035 = vmatpush1.msra.mxu0 0.0
    %2036 = vmatprep.subr.mxu0 0.0
    %2037 = vmatpush1.msra.mxu0 0.0
    %2038 = vmatprep.subr.mxu0 0.0
    %2039 = vmatpush1.msra.mxu0 0.0
    %2040 = vmatprep.subr.mxu0 0.0
    %2041 = vmatpush1.msra.mxu0 0.0
    %2042 = vmatprep.subr.mxu0 0.0
    %2043 = vmatpush1.msra.mxu0 0.0
    %2044 = vmatprep.subr.mxu0 0.0
    %2045 = vmatpush1.msra.mxu0 0.0
    %2046 = vmatprep.subr.mxu0 0.0
    %2047 = vmatpush1.msra.mxu0 0.0
    %2048 = vmatprep.subr.mxu0 0.0
    %2049 = vmatpush1.msra.mxu0 0.0
    %2050 = vmatprep.subr.mxu0 0.0
    %2051 = vmatpush1.msra.mxu0 0.0
    %2052 = vmatprep.subr.mxu0 0.0
    %2053 = vmatpush1.msra.mxu0 0.0
    %2054 = vmatprep.subr.mxu0 0.0
    %2055 = vmatpush1.msra.mxu0 0.0
    %2056 = vmatprep.subr.mxu0 0.0
    %2057 = vmatpush1.msra.mxu0 0.0
    %2058 = vmatprep.subr.mxu0 0.0
    %2059 = vmatpush1.msra.mxu0 0.0
    %2060 = vmatprep.subr.mxu0 0.0
    %2061 = vmatpush1.msra.mxu0 0.0
    %2062 = vmatprep.subr.mxu0 0.0
    %2063 = vmatpush1.msra.mxu0 0.0
    %2064 = vmatprep.subr.mxu0 0.0
    %2065 = vmatpush1.msra.mxu0 0.0
    %2066 = vmatprep.subr.mxu0 0.0
    %2067 = vmatpush1.msra.mxu0 0.0
    %2068 = vmatprep.subr.mxu0 0.0
    %2069 = vmatpush1.msra.mxu0 0.0
    %2070 = vmatprep.subr.mxu0 0.0
    %2071 = vmatpush1.msra.mxu0 0.0
    %2072 = vmatprep.subr.mxu0 0.0
    %2073 = vmatpush1.msra.mxu0 0.0
    %2074 = vmatprep.subr.mxu0 0.0
    %2075 = vmatpush1.msra.mxu0 0.0
    %2076 = vmatprep.subr.mxu0 0.0
    %2077 = vmatpush1.msra.mxu0 0.0
    %2078 = vmatprep.subr.mxu0 0.0
    %2079 = vmatpush1.msra.mxu0 0.0
    %2080 = vmatprep.subr.mxu0 0.0
    %2081 = vmatpush1.msra.mxu0 0.0
    %2082 = vmatprep.subr.mxu0 0.0
    %2083 = vmatpush1.msra.mxu0 0.0
    %2084 = vmatprep.subr.mxu0 0.0
    %2085 = vmatpush1.msra.mxu0 0.0
    %2086 = vmatprep.subr.mxu0 0.0
    %2087 = vmatpush1.msra.mxu0 0.0
    %2088 = vmatprep.mubr.f32.mxu0 0.0
    %2089 = vmatmul.mubr.f32.gmra.mrb[0].mxu0 %v2019
    %v2090 = vpop.f32.mrb[0].mxu0
    %v2091 = vadd.f32 0.0, %v2090
    %v2092 = vpop.f32.mrb[0].mxu0
    %2093 = vmatprep.mubr.f32.mxu0 0.0
    %2094 = vmatmul.mubr.f32.gmra.mrb[0].mxu0 %v2022
    %v2095 = vpop.f32.mrb[0].mxu0
    %v2096 = vadd.f32 0.0, %v2095
    %v2097 = vpop.f32.mrb[0].mxu0
    %2098 = vdwg.mxu0
    %v2100 = vsel %vm170, %v2091, 0
    %v2103 = vsel %vm170, %v2096, 0
    %2105 = vmatprep.subr.mxu0 0.0
    %2106 = vmatpush1.msra.mxu0 %v1690
    %2107 = vmatprep.subr.mxu0 0.0
    %2108 = vmatpush1.msra.mxu0 0.0
    %2109 = vmatprep.subr.mxu0 0.0
    %2110 = vmatpush1.msra.mxu0 0.0
    %2111 = vmatprep.subr.mxu0 0.0
    %2112 = vmatpush1.msra.mxu0 0.0
    %2113 = vmatprep.subr.mxu0 0.0
    %2114 = vmatpush1.msra.mxu0 0.0
    %2115 = vmatprep.subr.mxu0 0.0
    %2116 = vmatpush1.msra.mxu0 0.0
    %2117 = vmatprep.subr.mxu0 0.0
    %2118 = vmatpush1.msra.mxu0 0.0
    %2119 = vmatprep.subr.mxu0 0.0
    %2120 = vmatpush1.msra.mxu0 0.0
    %2121 = vmatprep.subr.mxu0 0.0
    %2122 = vmatpush1.msra.mxu0 0.0
    %2123 = vmatprep.subr.mxu0 0.0
    %2124 = vmatpush1.msra.mxu0 0.0
    %2125 = vmatprep.subr.mxu0 0.0
    %2126 = vmatpush1.msra.mxu0 0.0
    %2127 = vmatprep.subr.mxu0 0.0
    %2128 = vmatpush1.msra.mxu0 0.0
    %2129 = vmatprep.subr.mxu0 0.0
    %2130 = vmatpush1.msra.mxu0 0.0
    %2131 = vmatprep.subr.mxu0 0.0
    %2132 = vmatpush1.msra.mxu0 0.0
    %2133 = vmatprep.subr.mxu0 0.0
    %2134 = vmatpush1.msra.mxu0 0.0
    %2135 = vmatprep.subr.mxu0 0.0
    %2136 = vmatpush1.msra.mxu0 0.0
    %2137 = vmatprep.subr.mxu0 0.0
    %2138 = vmatpush1.msra.mxu0 0.0
    %2139 = vmatprep.subr.mxu0 0.0
    %2140 = vmatpush1.msra.mxu0 0.0
    %2141 = vmatprep.subr.mxu0 0.0
    %2142 = vmatpush1.msra.mxu0 0.0
    %2143 = vmatprep.subr.mxu0 0.0
    %2144 = vmatpush1.msra.mxu0 0.0
    %2145 = vmatprep.subr.mxu0 0.0
    %2146 = vmatpush1.msra.mxu0 0.0
    %2147 = vmatprep.subr.mxu0 0.0
    %2148 = vmatpush1.msra.mxu0 0.0
    %2149 = vmatprep.subr.mxu0 0.0
    %2150 = vmatpush1.msra.mxu0 0.0
    %2151 = vmatprep.subr.mxu0 0.0
    %2152 = vmatpush1.msra.mxu0 0.0
    %2153 = vmatprep.subr.mxu0 0.0
    %2154 = vmatpush1.msra.mxu0 0.0
    %2155 = vmatprep.subr.mxu0 0.0
    %2156 = vmatpush1.msra.mxu0 0.0
    %2157 = vmatprep.subr.mxu0 0.0
    %2158 = vmatpush1.msra.mxu0 0.0
    %2159 = vmatprep.subr.mxu0 0.0
    %2160 = vmatpush1.msra.mxu0 0.0
    %2161 = vmatprep.subr.mxu0 0.0
    %2162 = vmatpush1.msra.mxu0 0.0
    %2163 = vmatprep.subr.mxu0 0.0
    %2164 = vmatpush1.msra.mxu0 0.0
    %2165 = vmatprep.subr.mxu0 0.0
    %2166 = vmatpush1.msra.mxu0 0.0
    %2167 = vmatprep.subr.mxu0 0.0
    %2168 = vmatpush1.msra.mxu0 0.0
    %2169 = vmatprep.mubr.f32.mxu0 0.0
    %2170 = vmatmul.mubr.f32.gmra.mrb[0].mxu0 %v2100
    %v2171 = vpop.f32.mrb[0].mxu0
    %v2172 = vadd.f32 0.0, %v2171
    %v2173 = vpop.f32.mrb[0].mxu0
    %2174 = vmatprep.mubr.f32.mxu0 0.0
    %2175 = vmatmul.mubr.f32.gmra.mrb[0].mxu0 %v2103
    %v2176 = vpop.f32.mrb[0].mxu0
    %v2177 = vadd.f32 0.0, %v2176
    %v2178 = vpop.f32.mrb[0].mxu0
    %2179 = vdwg.mxu0
    %v2181 = vsel %vm170, %v1887, 0
    %v2184 = vsel %vm170, %v1892, 0
    %2186 = vmatprep.subr.mxu0 0.0
    %2187 = vmatpush1.msra.mxu0 %v1689
    %2188 = vmatprep.subr.mxu0 0.0
    %2189 = vmatpush1.msra.mxu0 0.0
    %2190 = vmatprep.subr.mxu0 0.0
    %2191 = vmatpush1.msra.mxu0 0.0
    %2192 = vmatprep.subr.mxu0 0.0
    %2193 = vmatpush1.msra.mxu0 0.0
    %2194 = vmatprep.subr.mxu0 0.0
    %2195 = vmatpush1.msra.mxu0 0.0
    %2196 = vmatprep.subr.mxu0 0.0
    %2197 = vmatpush1.msra.mxu0 0.0
    %2198 = vmatprep.subr.mxu0 0.0
    %2199 = vmatpush1.msra.mxu0 0.0
    %2200 = vmatprep.subr.mxu0 0.0
    %2201 = vmatpush1.msra.mxu0 0.0
    %2202 = vmatprep.subr.mxu0 0.0
    %2203 = vmatpush1.msra.mxu0 0.0
    %2204 = vmatprep.subr.mxu0 0.0
    %2205 = vmatpush1.msra.mxu0 0.0
    %2206 = vmatprep.subr.mxu0 0.0
    %2207 = vmatpush1.msra.mxu0 0.0
    %2208 = vmatprep.subr.mxu0 0.0
    %2209 = vmatpush1.msra.mxu0 0.0
    %2210 = vmatprep.subr.mxu0 0.0
    %2211 = vmatpush1.msra.mxu0 0.0
    %2212 = vmatprep.subr.mxu0 0.0
    %2213 = vmatpush1.msra.mxu0 0.0
    %2214 = vmatprep.subr.mxu0 0.0
    %2215 = vmatpush1.msra.mxu0 0.0
    %2216 = vmatprep.subr.mxu0 0.0
    %2217 = vmatpush1.msra.mxu0 0.0
    %2218 = vmatprep.subr.mxu0 0.0
    %2219 = vmatpush1.msra.mxu0 0.0
    %2220 = vmatprep.subr.mxu0 0.0
    %2221 = vmatpush1.msra.mxu0 0.0
    %2222 = vmatprep.subr.mxu0 0.0
    %2223 = vmatpush1.msra.mxu0 0.0
    %2224 = vmatprep.subr.mxu0 0.0
    %2225 = vmatpush1.msra.mxu0 0.0
    %2226 = vmatprep.subr.mxu0 0.0
    %2227 = vmatpush1.msra.mxu0 0.0
    %2228 = vmatprep.subr.mxu0 0.0
    %2229 = vmatpush1.msra.mxu0 0.0
    %2230 = vmatprep.subr.mxu0 0.0
    %2231 = vmatpush1.msra.mxu0 0.0
    %2232 = vmatprep.subr.mxu0 0.0
    %2233 = vmatpush1.msra.mxu0 0.0
    %2234 = vmatprep.subr.mxu0 0.0
    %2235 = vmatpush1.msra.mxu0 0.0
    %2236 = vmatprep.subr.mxu0 0.0
    %2237 = vmatpush1.msra.mxu0 0.0
    %2238 = vmatprep.subr.mxu0 0.0
    %2239 = vmatpush1.msra.mxu0 0.0
    %2240 = vmatprep.subr.mxu0 0.0
    %2241 = vmatpush1.msra.mxu0 0.0
    %2242 = vmatprep.subr.mxu0 0.0
    %2243 = vmatpush1.msra.mxu0 0.0
    %2244 = vmatprep.subr.mxu0 0.0
    %2245 = vmatpush1.msra.mxu0 0.0
    %2246 = vmatprep.subr.mxu0 0.0
    %2247 = vmatpush1.msra.mxu0 0.0
    %2248 = vmatprep.subr.mxu0 0.0
    %2249 = vmatpush1.msra.mxu0 0.0
    %2250 = vmatprep.mubr.f32.mxu0 0.0
    %2251 = vmatmul.mubr.f32.gmra.mrb[0].mxu0 %v2181
    %v2252 = vpop.f32.mrb[0].mxu0
    %v2253 = vadd.f32 %v2172, %v2252
    %v2254 = vpop.f32.mrb[0].mxu0
    %2255 = vmatprep.mubr.f32.mxu0 0.0
    %2256 = vmatmul.mubr.f32.gmra.mrb[0].mxu0 %v2184
    %v2257 = vpop.f32.mrb[0].mxu0
    %v2258 = vadd.f32 %v2177, %v2257
    %v2259 = vpop.f32.mrb[0].mxu0
    %2260 = vdwg.mxu0
    %2261 = vrot.lane.b32.xlu0 %v1680, 112
    %v2262 = vpop.permute.xlu0 %2261
    %2263 = vrot.lane.b32.xlu0 %v1685, 112
    %v2264 = vpop.permute.xlu0 %2263
    %2265 = vrot.lane.b32.xlu0 %v1680, 80
    %v2266 = vpop.permute.xlu0 %2265
    %2267 = vrot.lane.b32.xlu0 %v1685, 80
    %v2268 = vpop.permute.xlu0 %2267
    %v2269 = vsel %vm170, %v2262, 0
    %v2271 = vsel %vm170, %v2264, 0
    %v2273 = vsel %vm170, %v2266, 0
    %v2275 = vsel %vm170, %v2268, 0
    %2277 = vmatprep.subr.mxu0 0.0
    %2278 = vmatpush1.xpose.msra.mxu0 %v2273
    %2279 = vmatprep.subr.mxu0 0.0
    %2280 = vmatpush1.xpose.msra.mxu0 %v2275
    %2281 = vmatprep.subr.mxu0 0.0
    %2282 = vmatpush1.xpose.msra.mxu0 0.0
    %2283 = vmatprep.subr.mxu0 0.0
    %2284 = vmatpush1.xpose.msra.mxu0 0.0
    %2285 = vmatprep.subr.mxu0 0.0
    %2286 = vmatpush1.xpose.msra.mxu0 0.0
    %2287 = vmatprep.subr.mxu0 0.0
    %2288 = vmatpush1.xpose.msra.mxu0 0.0
    %2289 = vmatprep.subr.mxu0 0.0
    %2290 = vmatpush1.xpose.msra.mxu0 0.0
    %2291 = vmatprep.subr.mxu0 0.0
    %2292 = vmatpush1.xpose.msra.mxu0 0.0
    %2293 = vmatprep.subr.mxu0 0.0
    %2294 = vmatpush1.xpose.msra.mxu0 0.0
    %2295 = vmatprep.subr.mxu0 0.0
    %2296 = vmatpush1.xpose.msra.mxu0 0.0
    %2297 = vmatprep.subr.mxu0 0.0
    %2298 = vmatpush1.xpose.msra.mxu0 0.0
    %2299 = vmatprep.subr.mxu0 0.0
    %2300 = vmatpush1.xpose.msra.mxu0 0.0
    %2301 = vmatprep.subr.mxu0 0.0
    %2302 = vmatpush1.xpose.msra.mxu0 0.0
    %2303 = vmatprep.subr.mxu0 0.0
    %2304 = vmatpush1.xpose.msra.mxu0 0.0
    %2305 = vmatprep.subr.mxu0 0.0
    %2306 = vmatpush1.xpose.msra.mxu0 0.0
    %2307 = vmatprep.subr.mxu0 0.0
    %2308 = vmatpush1.xpose.msra.mxu0 0.0
    %2309 = vmatprep.subr.mxu0 0.0
    %2310 = vmatpush1.xpose.msra.mxu0 0.0
    %2311 = vmatprep.subr.mxu0 0.0
    %2312 = vmatpush1.xpose.msra.mxu0 0.0
    %2313 = vmatprep.subr.mxu0 0.0
    %2314 = vmatpush1.xpose.msra.mxu0 0.0
    %2315 = vmatprep.subr.mxu0 0.0
    %2316 = vmatpush1.xpose.msra.mxu0 0.0
    %2317 = vmatprep.subr.mxu0 0.0
    %2318 = vmatpush1.xpose.msra.mxu0 0.0
    %2319 = vmatprep.subr.mxu0 0.0
    %2320 = vmatpush1.xpose.msra.mxu0 0.0
    %2321 = vmatprep.subr.mxu0 0.0
    %2322 = vmatpush1.xpose.msra.mxu0 0.0
    %2323 = vmatprep.subr.mxu0 0.0
    %2324 = vmatpush1.xpose.msra.mxu0 0.0
    %2325 = vmatprep.subr.mxu0 0.0
    %2326 = vmatpush1.xpose.msra.mxu0 0.0
    %2327 = vmatprep.subr.mxu0 0.0
    %2328 = vmatpush1.xpose.msra.mxu0 0.0
    %2329 = vmatprep.subr.mxu0 0.0
    %2330 = vmatpush1.xpose.msra.mxu0 0.0
    %2331 = vmatprep.subr.mxu0 0.0
    %2332 = vmatpush1.xpose.msra.mxu0 0.0
    %2333 = vmatprep.subr.mxu0 0.0
    %2334 = vmatpush1.xpose.msra.mxu0 0.0
    %2335 = vmatprep.subr.mxu0 0.0
    %2336 = vmatpush1.xpose.msra.mxu0 0.0
    %2337 = vmatprep.subr.mxu0 0.0
    %2338 = vmatpush1.xpose.msra.mxu0 0.0
    %2339 = vmatprep.subr.mxu0 0.0
    %2340 = vmatpush1.xpose.msra.mxu0 0.0
    %2341 = vmatprep.mubr.f32.mxu0 0.0
    %2342 = vmatmul.mubr.f32.gmra.mrb[0].mxu0 %v2269
    %v2343 = vpop.f32.mrb[0].mxu0
    %v2344 = vadd.f32 0.0, %v2343
    %v2345 = vpop.f32.mrb[0].mxu0
    %2346 = vmatprep.mubr.f32.mxu0 0.0
    %2347 = vmatmul.mubr.f32.gmra.mrb[0].mxu0 %v2271
    %v2348 = vpop.f32.mrb[0].mxu0
    %v2349 = vadd.f32 0.0, %v2348
    %v2350 = vpop.f32.mrb[0].mxu0
    %2351 = vdwg.mxu0
    %v2352 = vmul.f32 %v2344, 0.35355338
    %v2353 = vmul.f32 %v2349, 0.35355338
    %v2354 = vadd.f32 %v2352, %v72
    %v2355 = vadd.f32 %v2353, %v73
    %v2356 = vsel %vm258, %v2354, -inf
    %2357 = vmax.xlane.f32.xlu0 %v2356
    %v2358 = vpop.xlane.xlu0 %2357
    %v2359 = vsel %vm258, %v2355, -inf
    %2360 = vmax.xlane.f32.xlu0 %v2359
    %v2361 = vpop.xlane.xlu0 %2360
    %v2362 = vsub.f32 %v2354, %v2358
    %v2363 = vsub.f32 %v2355, %v2361
    %v2364 = vmul.f32 %v2362, 1.442695
    %v2365 = vpow.pop %v2364
    %v2366 = vmul.f32 %v2363, 1.442695
    %v2367 = vpow.pop %v2366
    %v2368 = vsel %vm258, %v2365, 0.0
    %2369 = vadd.xlane.f32.xlu0 %v2368
    %v2370 = vpop.xlane.xlu0 %2369
    %v2371 = vsel %vm258, %v2367, 0.0
    %2372 = vadd.xlane.f32.xlu0 %v2371
    %v2373 = vpop.xlane.xlu0 %2372
    %v2374 = vrcp.pop %v2370
    %v2375 = vrcp.pop %v2373
    %v2376 = vmul.f32 %v2365, %v2374
    %v2377 = vmul.f32 %v2367, %v2375
    %2378 = vrot.lane.b32.xlu0 %v1680, 48
    %v2379 = vpop.permute.xlu0 %2378
    %2380 = vrot.lane.b32.xlu0 %v1685, 48
    %v2381 = vpop.permute.xlu0 %2380
    %v2385 = vsel %vm258, %v2376, 0
    %v2388 = vsel %vm258, %v2377, 0
    %2390 = vmatprep.subr.mxu0 0.0
    %2391 = vmatpush1.msra.mxu0 %v2379
    %2392 = vmatprep.subr.mxu0 0.0
    %2393 = vmatpush1.msra.mxu0 %v2381
    %2394 = vmatprep.subr.mxu0 0.0
    %2395 = vmatpush1.msra.mxu0 0.0
    %2396 = vmatprep.subr.mxu0 0.0
    %2397 = vmatpush1.msra.mxu0 0.0
    %2398 = vmatprep.subr.mxu0 0.0
    %2399 = vmatpush1.msra.mxu0 0.0
    %2400 = vmatprep.subr.mxu0 0.0
    %2401 = vmatpush1.msra.mxu0 0.0
    %2402 = vmatprep.subr.mxu0 0.0
    %2403 = vmatpush1.msra.mxu0 0.0
    %2404 = vmatprep.subr.mxu0 0.0
    %2405 = vmatpush1.msra.mxu0 0.0
    %2406 = vmatprep.subr.mxu0 0.0
    %2407 = vmatpush1.msra.mxu0 0.0
    %2408 = vmatprep.subr.mxu0 0.0
    %2409 = vmatpush1.msra.mxu0 0.0
    %2410 = vmatprep.subr.mxu0 0.0
    %2411 = vmatpush1.msra.mxu0 0.0
    %2412 = vmatprep.subr.mxu0 0.0
    %2413 = vmatpush1.msra.mxu0 0.0
    %2414 = vmatprep.subr.mxu0 0.0
    %2415 = vmatpush1.msra.mxu0 0.0
    %2416 = vmatprep.subr.mxu0 0.0
    %2417 = vmatpush1.msra.mxu0 0.0
    %2418 = vmatprep.subr.mxu0 0.0
    %2419 = vmatpush1.msra.mxu0 0.0
    %2420 = vmatprep.subr.mxu0 0.0
    %2421 = vmatpush1.msra.mxu0 0.0
    %2422 = vmatprep.subr.mxu0 0.0
    %2423 = vmatpush1.msra.mxu0 0.0
    %2424 = vmatprep.subr.mxu0 0.0
    %2425 = vmatpush1.msra.mxu0 0.0
    %2426 = vmatprep.subr.mxu0 0.0
    %2427 = vmatpush1.msra.mxu0 0.0
    %2428 = vmatprep.subr.mxu0 0.0
    %2429 = vmatpush1.msra.mxu0 0.0
    %2430 = vmatprep.subr.mxu0 0.0
    %2431 = vmatpush1.msra.mxu0 0.0
    %2432 = vmatprep.subr.mxu0 0.0
    %2433 = vmatpush1.msra.mxu0 0.0
    %2434 = vmatprep.subr.mxu0 0.0
    %2435 = vmatpush1.msra.mxu0 0.0
    %2436 = vmatprep.subr.mxu0 0.0
    %2437 = vmatpush1.msra.mxu0 0.0
    %2438 = vmatprep.subr.mxu0 0.0
    %2439 = vmatpush1.msra.mxu0 0.0
    %2440 = vmatprep.subr.mxu0 0.0
    %2441 = vmatpush1.msra.mxu0 0.0
    %2442 = vmatprep.subr.mxu0 0.0
    %2443 = vmatpush1.msra.mxu0 0.0
    %2444 = vmatprep.subr.mxu0 0.0
    %2445 = vmatpush1.msra.mxu0 0.0
    %2446 = vmatprep.subr.mxu0 0.0
    %2447 = vmatpush1.msra.mxu0 0.0
    %2448 = vmatprep.subr.mxu0 0.0
    %2449 = vmatpush1.msra.mxu0 0.0
    %2450 = vmatprep.subr.mxu0 0.0
    %2451 = vmatpush1.msra.mxu0 0.0
    %2452 = vmatprep.subr.mxu0 0.0
    %2453 = vmatpush1.msra.mxu0 0.0
    %2454 = vmatprep.mubr.f32.mxu0 0.0
    %2455 = vmatmul.mubr.f32.gmra.mrb[0].mxu0 %v2385
    %v2456 = vpop.f32.mrb[0].mxu0
    %v2457 = vadd.f32 0.0, %v2456
    %v2458 = vpop.f32.mrb[0].mxu0
    %2459 = vmatprep.mubr.f32.mxu0 0.0
    %2460 = vmatmul.mubr.f32.gmra.mrb[0].mxu0 %v2388
    %v2461 = vpop.f32.mrb[0].mxu0
    %v2462 = vadd.f32 0.0, %v2461
    %v2463 = vpop.f32.mrb[0].mxu0
    %2464 = vdwg.mxu0
    %v2466 = vsel %vm170, %v2457, 0
    %v2469 = vsel %vm170, %v2462, 0
    %2471 = vmatprep.subr.mxu0 0.0
    %2472 = vmatpush1.msra.mxu0 %v1691
    %2473 = vmatprep.subr.mxu0 0.0
    %2474 = vmatpush1.msra.mxu0 0.0
    %2475 = vmatprep.subr.mxu0 0.0
    %2476 = vmatpush1.msra.mxu0 0.0
    %2477 = vmatprep.subr.mxu0 0.0
    %2478 = vmatpush1.msra.mxu0 0.0
    %2479 = vmatprep.subr.mxu0 0.0
    %2480 = vmatpush1.msra.mxu0 0.0
    %2481 = vmatprep.subr.mxu0 0.0
    %2482 = vmatpush1.msra.mxu0 0.0
    %2483 = vmatprep.subr.mxu0 0.0
    %2484 = vmatpush1.msra.mxu0 0.0
    %2485 = vmatprep.subr.mxu0 0.0
    %2486 = vmatpush1.msra.mxu0 0.0
    %2487 = vmatprep.subr.mxu0 0.0
    %2488 = vmatpush1.msra.mxu0 0.0
    %2489 = vmatprep.subr.mxu0 0.0
    %2490 = vmatpush1.msra.mxu0 0.0
    %2491 = vmatprep.subr.mxu0 0.0
    %2492 = vmatpush1.msra.mxu0 0.0
    %2493 = vmatprep.subr.mxu0 0.0
    %2494 = vmatpush1.msra.mxu0 0.0
    %2495 = vmatprep.subr.mxu0 0.0
    %2496 = vmatpush1.msra.mxu0 0.0
    %2497 = vmatprep.subr.mxu0 0.0
    %2498 = vmatpush1.msra.mxu0 0.0
    %2499 = vmatprep.subr.mxu0 0.0
    %2500 = vmatpush1.msra.mxu0 0.0
    %2501 = vmatprep.subr.mxu0 0.0
    %2502 = vmatpush1.msra.mxu0 0.0
    %2503 = vmatprep.subr.mxu0 0.0
    %2504 = vmatpush1.msra.mxu0 0.0
    %2505 = vmatprep.subr.mxu0 0.0
    %2506 = vmatpush1.msra.mxu0 0.0
    %2507 = vmatprep.subr.mxu0 0.0
    %2508 = vmatpush1.msra.mxu0 0.0
    %2509 = vmatprep.subr.mxu0 0.0
    %2510 = vmatpush1.msra.mxu0 0.0
    %2511 = vmatprep.subr.mxu0 0.0
    %2512 = vmatpush1.msra.mxu0 0.0
    %2513 = vmatprep.subr.mxu0 0.0
    %2514 = vmatpush1.msra.mxu0 0.0
    %2515 = vmatprep.subr.mxu0 0.0
    %2516 = vmatpush1.msra.mxu0 0.0
    %2517 = vmatprep.subr.mxu0 0.0
    %2518 = vmatpush1.msra.mxu0 0.0
    %2519 = vmatprep.subr.mxu0 0.0
    %2520 = vmatpush1.msra.mxu0 0.0
    %2521 = vmatprep.subr.mxu0 0.0
    %2522 = vmatpush1.msra.mxu0 0.0
    %2523 = vmatprep.subr.mxu0 0.0
    %2524 = vmatpush1.msra.mxu0 0.0
    %2525 = vmatprep.subr.mxu0 0.0
    %2526 = vmatpush1.msra.mxu0 0.0
    %2527 = vmatprep.subr.mxu0 0.0
    %2528 = vmatpush1.msra.mxu0 0.0
    %2529 = vmatprep.subr.mxu0 0.0
    %2530 = vmatpush1.msra.mxu0 0.0
    %2531 = vmatprep.subr.mxu0 0.0
    %2532 = vmatpush1.msra.mxu0 0.0
    %2533 = vmatprep.subr.mxu0 0.0
    %2534 = vmatpush1.msra.mxu0 0.0
    %2535 = vmatprep.mubr.f32.mxu0 0.0
    %2536 = vmatmul.mubr.f32.gmra.mrb[0].mxu0 %v2466
    %v2537 = vpop.f32.mrb[0].mxu0
    %v2538 = vadd.f32 0.0, %v2537
    %v2539 = vpop.f32.mrb[0].mxu0
    %2540 = vmatprep.mubr.f32.mxu0 0.0
    %2541 = vmatmul.mubr.f32.gmra.mrb[0].mxu0 %v2469
    %v2542 = vpop.f32.mrb[0].mxu0
    %v2543 = vadd.f32 0.0, %v2542
    %v2544 = vpop.f32.mrb[0].mxu0
    %2545 = vdwg.mxu0
    %v2546 = vadd.f32 %v2253, %v2538
    %v2547 = vadd.f32 %v2258, %v2543
    %2548 = vrot.lane.b32.xlu0 %v1680, 104
    %v2549 = vpop.permute.xlu0 %2548
    %2550 = vrot.lane.b32.xlu0 %v1685, 104
    %v2551 = vpop.permute.xlu0 %2550
    %2552 = vrot.lane.b32.xlu0 %v1680, 72
    %v2553 = vpop.permute.xlu0 %2552
    %2554 = vrot.lane.b32.xlu0 %v1685, 72
    %v2555 = vpop.permute.xlu0 %2554
    %v2556 = vsel %vm170, %v2549, 0
    %v2558 = vsel %vm170, %v2551, 0
    %v2560 = vsel %vm170, %v2553, 0
    %v2562 = vsel %vm170, %v2555, 0
    %2564 = vmatprep.subr.mxu0 0.0
    %2565 = vmatpush1.xpose.msra.mxu0 %v2560
    %2566 = vmatprep.subr.mxu0 0.0
    %2567 = vmatpush1.xpose.msra.mxu0 %v2562
    %2568 = vmatprep.subr.mxu0 0.0
    %2569 = vmatpush1.xpose.msra.mxu0 0.0
    %2570 = vmatprep.subr.mxu0 0.0
    %2571 = vmatpush1.xpose.msra.mxu0 0.0
    %2572 = vmatprep.subr.mxu0 0.0
    %2573 = vmatpush1.xpose.msra.mxu0 0.0
    %2574 = vmatprep.subr.mxu0 0.0
    %2575 = vmatpush1.xpose.msra.mxu0 0.0
    %2576 = vmatprep.subr.mxu0 0.0
    %2577 = vmatpush1.xpose.msra.mxu0 0.0
    %2578 = vmatprep.subr.mxu0 0.0
    %2579 = vmatpush1.xpose.msra.mxu0 0.0
    %2580 = vmatprep.subr.mxu0 0.0
    %2581 = vmatpush1.xpose.msra.mxu0 0.0
    %2582 = vmatprep.subr.mxu0 0.0
    %2583 = vmatpush1.xpose.msra.mxu0 0.0
    %2584 = vmatprep.subr.mxu0 0.0
    %2585 = vmatpush1.xpose.msra.mxu0 0.0
    %2586 = vmatprep.subr.mxu0 0.0
    %2587 = vmatpush1.xpose.msra.mxu0 0.0
    %2588 = vmatprep.subr.mxu0 0.0
    %2589 = vmatpush1.xpose.msra.mxu0 0.0
    %2590 = vmatprep.subr.mxu0 0.0
    %2591 = vmatpush1.xpose.msra.mxu0 0.0
    %2592 = vmatprep.subr.mxu0 0.0
    %2593 = vmatpush1.xpose.msra.mxu0 0.0
    %2594 = vmatprep.subr.mxu0 0.0
    %2595 = vmatpush1.xpose.msra.mxu0 0.0
    %2596 = vmatprep.subr.mxu0 0.0
    %2597 = vmatpush1.xpose.msra.mxu0 0.0
    %2598 = vmatprep.subr.mxu0 0.0
    %2599 = vmatpush1.xpose.msra.mxu0 0.0
    %2600 = vmatprep.subr.mxu0 0.0
    %2601 = vmatpush1.xpose.msra.mxu0 0.0
    %2602 = vmatprep.subr.mxu0 0.0
    %2603 = vmatpush1.xpose.msra.mxu0 0.0
    %2604 = vmatprep.subr.mxu0 0.0
    %2605 = vmatpush1.xpose.msra.mxu0 0.0
    %2606 = vmatprep.subr.mxu0 0.0
    %2607 = vmatpush1.xpose.msra.mxu0 0.0
    %2608 = vmatprep.subr.mxu0 0.0
    %2609 = vmatpush1.xpose.msra.mxu0 0.0
    %2610 = vmatprep.subr.mxu0 0.0
    %2611 = vmatpush1.xpose.msra.mxu0 0.0
    %2612 = vmatprep.subr.mxu0 0.0
    %2613 = vmatpush1.xpose.msra.mxu0 0.0
    %2614 = vmatprep.subr.mxu0 0.0
    %2615 = vmatpush1.xpose.msra.mxu0 0.0
    %2616 = vmatprep.subr.mxu0 0.0
    %2617 = vmatpush1.xpose.msra.mxu0 0.0
    %2618 = vmatprep.subr.mxu0 0.0
    %2619 = vmatpush1.xpose.msra.mxu0 0.0
    %2620 = vmatprep.subr.mxu0 0.0
    %2621 = vmatpush1.xpose.msra.mxu0 0.0
    %2622 = vmatprep.subr.mxu0 0.0
    %2623 = vmatpush1.xpose.msra.mxu0 0.0
    %2624 = vmatprep.subr.mxu0 0.0
    %2625 = vmatpush1.xpose.msra.mxu0 0.0
    %2626 = vmatprep.subr.mxu0 0.0
    %2627 = vmatpush1.xpose.msra.mxu0 0.0
    %2628 = vmatprep.mubr.f32.mxu0 0.0
    %2629 = vmatmul.mubr.f32.gmra.mrb[0].mxu0 %v2556
    %v2630 = vpop.f32.mrb[0].mxu0
    %v2631 = vadd.f32 0.0, %v2630
    %v2632 = vpop.f32.mrb[0].mxu0
    %2633 = vmatprep.mubr.f32.mxu0 0.0
    %2634 = vmatmul.mubr.f32.gmra.mrb[0].mxu0 %v2558
    %v2635 = vpop.f32.mrb[0].mxu0
    %v2636 = vadd.f32 0.0, %v2635
    %v2637 = vpop.f32.mrb[0].mxu0
    %2638 = vdwg.mxu0
    %v2639 = vmul.f32 %v2631, 0.35355338
    %v2640 = vmul.f32 %v2636, 0.35355338
    %v2641 = vadd.f32 %v2639, %v72
    %v2642 = vadd.f32 %v2640, %v73
    %v2643 = vsel %vm258, %v2641, -inf
    %2644 = vmax.xlane.f32.xlu0 %v2643
    %v2645 = vpop.xlane.xlu0 %2644
    %v2646 = vsel %vm258, %v2642, -inf
    %2647 = vmax.xlane.f32.xlu0 %v2646
    %v2648 = vpop.xlane.xlu0 %2647
    %v2649 = vsub.f32 %v2641, %v2645
    %v2650 = vsub.f32 %v2642, %v2648
    %v2651 = vmul.f32 %v2649, 1.442695
    %v2652 = vpow.pop %v2651
    %v2653 = vmul.f32 %v2650, 1.442695
    %v2654 = vpow.pop %v2653
    %v2655 = vsel %vm258, %v2652, 0.0
    %2656 = vadd.xlane.f32.xlu0 %v2655
    %v2657 = vpop.xlane.xlu0 %2656
    %v2658 = vsel %vm258, %v2654, 0.0
    %2659 = vadd.xlane.f32.xlu0 %v2658
    %v2660 = vpop.xlane.xlu0 %2659
    %v2661 = vrcp.pop %v2657
    %v2662 = vrcp.pop %v2660
    %v2663 = vmul.f32 %v2652, %v2661
    %v2664 = vmul.f32 %v2654, %v2662
    %2665 = vrot.lane.b32.xlu0 %v1680, 40
    %v2666 = vpop.permute.xlu0 %2665
    %2667 = vrot.lane.b32.xlu0 %v1685, 40
    %v2668 = vpop.permute.xlu0 %2667
    %v2672 = vsel %vm258, %v2663, 0
    %v2675 = vsel %vm258, %v2664, 0
    %2677 = vmatprep.subr.mxu0 0.0
    %2678 = vmatpush1.msra.mxu0 %v2666
    %2679 = vmatprep.subr.mxu0 0.0
    %2680 = vmatpush1.msra.mxu0 %v2668
    %2681 = vmatprep.subr.mxu0 0.0
    %2682 = vmatpush1.msra.mxu0 0.0
    %2683 = vmatprep.subr.mxu0 0.0
    %2684 = vmatpush1.msra.mxu0 0.0
    %2685 = vmatprep.subr.mxu0 0.0
    %2686 = vmatpush1.msra.mxu0 0.0
    %2687 = vmatprep.subr.mxu0 0.0
    %2688 = vmatpush1.msra.mxu0 0.0
    %2689 = vmatprep.subr.mxu0 0.0
    %2690 = vmatpush1.msra.mxu0 0.0
    %2691 = vmatprep.subr.mxu0 0.0
    %2692 = vmatpush1.msra.mxu0 0.0
    %2693 = vmatprep.subr.mxu0 0.0
    %2694 = vmatpush1.msra.mxu0 0.0
    %2695 = vmatprep.subr.mxu0 0.0
    %2696 = vmatpush1.msra.mxu0 0.0
    %2697 = vmatprep.subr.mxu0 0.0
    %2698 = vmatpush1.msra.mxu0 0.0
    %2699 = vmatprep.subr.mxu0 0.0
    %2700 = vmatpush1.msra.mxu0 0.0
    %2701 = vmatprep.subr.mxu0 0.0
    %2702 = vmatpush1.msra.mxu0 0.0
    %2703 = vmatprep.subr.mxu0 0.0
    %2704 = vmatpush1.msra.mxu0 0.0
    %2705 = vmatprep.subr.mxu0 0.0
    %2706 = vmatpush1.msra.mxu0 0.0
    %2707 = vmatprep.subr.mxu0 0.0
    %2708 = vmatpush1.msra.mxu0 0.0
    %2709 = vmatprep.subr.mxu0 0.0
    %2710 = vmatpush1.msra.mxu0 0.0
    %2711 = vmatprep.subr.mxu0 0.0
    %2712 = vmatpush1.msra.mxu0 0.0
    %2713 = vmatprep.subr.mxu0 0.0
    %2714 = vmatpush1.msra.mxu0 0.0
    %2715 = vmatprep.subr.mxu0 0.0
    %2716 = vmatpush1.msra.mxu0 0.0
    %2717 = vmatprep.subr.mxu0 0.0
    %2718 = vmatpush1.msra.mxu0 0.0
    %2719 = vmatprep.subr.mxu0 0.0
    %2720 = vmatpush1.msra.mxu0 0.0
    %2721 = vmatprep.subr.mxu0 0.0
    %2722 = vmatpush1.msra.mxu0 0.0
    %2723 = vmatprep.subr.mxu0 0.0
    %2724 = vmatpush1.msra.mxu0 0.0
    %2725 = vmatprep.subr.mxu0 0.0
    %2726 = vmatpush1.msra.mxu0 0.0
    %2727 = vmatprep.subr.mxu0 0.0
    %2728 = vmatpush1.msra.mxu0 0.0
    %2729 = vmatprep.subr.mxu0 0.0
    %2730 = vmatpush1.msra.mxu0 0.0
    %2731 = vmatprep.subr.mxu0 0.0
    %2732 = vmatpush1.msra.mxu0 0.0
    %2733 = vmatprep.subr.mxu0 0.0
    %2734 = vmatpush1.msra.mxu0 0.0
    %2735 = vmatprep.subr.mxu0 0.0
    %2736 = vmatpush1.msra.mxu0 0.0
    %2737 = vmatprep.subr.mxu0 0.0
    %2738 = vmatpush1.msra.mxu0 0.0
    %2739 = vmatprep.subr.mxu0 0.0
    %2740 = vmatpush1.msra.mxu0 0.0
    %2741 = vmatprep.mubr.f32.mxu0 0.0
    %2742 = vmatmul.mubr.f32.gmra.mrb[0].mxu0 %v2672
    %v2743 = vpop.f32.mrb[0].mxu0
    %v2744 = vadd.f32 0.0, %v2743
    %v2745 = vpop.f32.mrb[0].mxu0
    %2746 = vmatprep.mubr.f32.mxu0 0.0
    %2747 = vmatmul.mubr.f32.gmra.mrb[0].mxu0 %v2675
    %v2748 = vpop.f32.mrb[0].mxu0
    %v2749 = vadd.f32 0.0, %v2748
    %v2750 = vpop.f32.mrb[0].mxu0
    %2751 = vdwg.mxu0
    %v2753 = vsel %vm170, %v2744, 0
    %v2756 = vsel %vm170, %v2749, 0
    %2758 = vmatprep.subr.mxu0 0.0
    %2759 = vmatpush1.msra.mxu0 %v1692
    %2760 = vmatprep.subr.mxu0 0.0
    %2761 = vmatpush1.msra.mxu0 0.0
    %2762 = vmatprep.subr.mxu0 0.0
    %2763 = vmatpush1.msra.mxu0 0.0
    %2764 = vmatprep.subr.mxu0 0.0
    %2765 = vmatpush1.msra.mxu0 0.0
    %2766 = vmatprep.subr.mxu0 0.0
    %2767 = vmatpush1.msra.mxu0 0.0
    %2768 = vmatprep.subr.mxu0 0.0
    %2769 = vmatpush1.msra.mxu0 0.0
    %2770 = vmatprep.subr.mxu0 0.0
    %2771 = vmatpush1.msra.mxu0 0.0
    %2772 = vmatprep.subr.mxu0 0.0
    %2773 = vmatpush1.msra.mxu0 0.0
    %2774 = vmatprep.subr.mxu0 0.0
    %2775 = vmatpush1.msra.mxu0 0.0
    %2776 = vmatprep.subr.mxu0 0.0
    %2777 = vmatpush1.msra.mxu0 0.0
    %2778 = vmatprep.subr.mxu0 0.0
    %2779 = vmatpush1.msra.mxu0 0.0
    %2780 = vmatprep.subr.mxu0 0.0
    %2781 = vmatpush1.msra.mxu0 0.0
    %2782 = vmatprep.subr.mxu0 0.0
    %2783 = vmatpush1.msra.mxu0 0.0
    %2784 = vmatprep.subr.mxu0 0.0
    %2785 = vmatpush1.msra.mxu0 0.0
    %2786 = vmatprep.subr.mxu0 0.0
    %2787 = vmatpush1.msra.mxu0 0.0
    %2788 = vmatprep.subr.mxu0 0.0
    %2789 = vmatpush1.msra.mxu0 0.0
    %2790 = vmatprep.subr.mxu0 0.0
    %2791 = vmatpush1.msra.mxu0 0.0
    %2792 = vmatprep.subr.mxu0 0.0
    %2793 = vmatpush1.msra.mxu0 0.0
    %2794 = vmatprep.subr.mxu0 0.0
    %2795 = vmatpush1.msra.mxu0 0.0
    %2796 = vmatprep.subr.mxu0 0.0
    %2797 = vmatpush1.msra.mxu0 0.0
    %2798 = vmatprep.subr.mxu0 0.0
    %2799 = vmatpush1.msra.mxu0 0.0
    %2800 = vmatprep.subr.mxu0 0.0
    %2801 = vmatpush1.msra.mxu0 0.0
    %2802 = vmatprep.subr.mxu0 0.0
    %2803 = vmatpush1.msra.mxu0 0.0
    %2804 = vmatprep.subr.mxu0 0.0
    %2805 = vmatpush1.msra.mxu0 0.0
    %2806 = vmatprep.subr.mxu0 0.0
    %2807 = vmatpush1.msra.mxu0 0.0
    %2808 = vmatprep.subr.mxu0 0.0
    %2809 = vmatpush1.msra.mxu0 0.0
    %2810 = vmatprep.subr.mxu0 0.0
    %2811 = vmatpush1.msra.mxu0 0.0
    %2812 = vmatprep.subr.mxu0 0.0
    %2813 = vmatpush1.msra.mxu0 0.0
    %2814 = vmatprep.subr.mxu0 0.0
    %2815 = vmatpush1.msra.mxu0 0.0
    %2816 = vmatprep.subr.mxu0 0.0
    %2817 = vmatpush1.msra.mxu0 0.0
    %2818 = vmatprep.subr.mxu0 0.0
    %2819 = vmatpush1.msra.mxu0 0.0
    %2820 = vmatprep.subr.mxu0 0.0
    %2821 = vmatpush1.msra.mxu0 0.0
    %2822 = vmatprep.mubr.f32.mxu0 0.0
    %2823 = vmatmul.mubr.f32.gmra.mrb[0].mxu0 %v2753
    %v2824 = vpop.f32.mrb[0].mxu0
    %v2825 = vadd.f32 0.0, %v2824
    %v2826 = vpop.f32.mrb[0].mxu0
    %2827 = vmatprep.mubr.f32.mxu0 0.0
    %2828 = vmatmul.mubr.f32.gmra.mrb[0].mxu0 %v2756
    %v2829 = vpop.f32.mrb[0].mxu0
    %v2830 = vadd.f32 0.0, %v2829
    %v2831 = vpop.f32.mrb[0].mxu0
    %2832 = vdwg.mxu0
    %v2833 = vadd.f32 %v2546, %v2825
    %v2834 = vadd.f32 %v2547, %v2830
    %s2835 = scalar_lea.vmem %s4, 1
    %v2836 = vld [vmem:[%s2835] sm:$0x1]
    %v2838 = vlaneseq
    %v2839 = vshrl.u32 %v2838, 7
    %v2840 = vsub.s32 0, %v2839
    %v2841 = vrot.slane %v2836, %v2840
    %v2843 = vadd.f32 %v2833, %v2841
    %v2844 = vadd.f32 %v2834, %v2841
    %v2845 = vadd.f32 %v1600, %v2843
    %v2846 = vadd.f32 %v1601, %v2844
    %s2847 = scalar_lea.vmem %s5, 1
    %v2848 = vld [vmem:[%s2847] sm:$0x1]
    %s2849 = scalar_lea.vmem %s6, 1
    %v2850 = vld [vmem:[%s2849] sm:$0x1]
    %v2851 = vsel %vm78, %v2845, 0.0
    %2852 = vadd.xlane.f32.xlu0 %v2851
    %v2853 = vpop.xlane.xlu0 %2852
    %v2854 = vsel %vm78, %v2846, 0.0
    %2855 = vadd.xlane.f32.xlu0 %v2854
    %v2856 = vpop.xlane.xlu0 %2855
    %v2857 = vmul.f32 %v2853, %v1327
    %v2858 = vmul.f32 %v2856, %v1327
    %v2859 = vsub.f32 %v2845, %v2857
    %v2860 = vsub.f32 %v2846, %v2858
    %v2861 = vmul.f32 %v2859, %v2859
    %v2862 = vmul.f32 %v2860, %v2860
    %v2863 = vsel %vm78, %v2861, 0.0
    %2864 = vadd.xlane.f32.xlu0 %v2863
    %v2865 = vpop.xlane.xlu0 %2864
    %v2866 = vsel %vm78, %v2862, 0.0
    %2867 = vadd.xlane.f32.xlu0 %v2866
    %v2868 = vpop.xlane.xlu0 %2867
    %v2869 = vmul.f32 %v2865, %v1327
    %v2870 = vmul.f32 %v2868, %v1327
    %v2871 = vadd.f32 %v2869, 1e-05
    %v2872 = vadd.f32 %v2870, 1e-05
    %v2873 = vrsqrt.pop %v2871
    %v2874 = vrsqrt.pop %v2872
    %v2875 = vmul.f32 %v2859, %v2873
    %v2876 = vmul.f32 %v2860, %v2874
    %v2878 = vlaneseq
    %v2879 = vshrl.u32 %v2878, 7
    %v2880 = vsub.s32 0, %v2879
    %v2881 = vrot.slane %v2848, %v2880
    %v2883 = vmul.f32 %v2875, %v2881
    %v2884 = vmul.f32 %v2876, %v2881
    %v2886 = vlaneseq
    %v2887 = vshrl.u32 %v2886, 7
    %v2888 = vsub.s32 0, %v2887
    %v2889 = vrot.slane %v2850, %v2888
    %v2891 = vadd.f32 %v2883, %v2889
    %v2892 = vadd.f32 %v2884, %v2889
    %s2893 = scalar_lea.vmem %s7, 32
    %v2894 = vld [vmem:[%s2893] sm:$0xff]
    %v2895 = vld [vmem:[%s2893 + $0x8] sm:$0xff]
    %v2896 = vld [vmem:[%s2893 + $0x10] sm:$0xff]
    %v2897 = vld [vmem:[%s2893 + $0x18] sm:$0xff]
    %s2898 = scalar_lea.vmem %s8, 1
    %v2899 = vld [vmem:[%s2898] sm:$0x1]
    %v2901 = vlaneseq
    %v2902 = vshrl.u32 %v2901, 7
    %v2903 = vsub.s32 0, %v2902
    %v2904 = vrot.slane %v2899, %v2903
    %v2907 = vsel %vm78, %v2891, 0
    %v2910 = vsel %vm78, %v2892, 0
    %2912 = vmatprep.subr.mxu0 0.0
    %2913 = vmatpush1.msra.mxu0 %v2894
    %2914 = vmatprep.subr.mxu0 0.0
    %2915 = vmatpush1.msra.mxu0 %v2895
    %2916 = vmatprep.subr.mxu0 0.0
    %2917 = vmatpush1.msra.mxu0 %v2896
    %2918 = vmatprep.subr.mxu0 0.0
    %2919 = vmatpush1.msra.mxu0 %v2897
    %2920 = vmatprep.subr.mxu0 0.0
    %2921 = vmatpush1.msra.mxu0 0.0
    %2922 = vmatprep.subr.mxu0 0.0
    %2923 = vmatpush1.msra.mxu0 0.0
    %2924 = vmatprep.subr.mxu0 0.0
    %2925 = vmatpush1.msra.mxu0 0.0
    %2926 = vmatprep.subr.mxu0 0.0
    %2927 = vmatpush1.msra.mxu0 0.0
    %2928 = vmatprep.subr.mxu0 0.0
    %2929 = vmatpush1.msra.mxu0 0.0
    %2930 = vmatprep.subr.mxu0 0.0
    %2931 = vmatpush1.msra.mxu0 0.0
    %2932 = vmatprep.subr.mxu0 0.0
    %2933 = vmatpush1.msra.mxu0 0.0
    %2934 = vmatprep.subr.mxu0 0.0
    %2935 = vmatpush1.msra.mxu0 0.0
    %2936 = vmatprep.subr.mxu0 0.0
    %2937 = vmatpush1.msra.mxu0 0.0
    %2938 = vmatprep.subr.mxu0 0.0
    %2939 = vmatpush1.msra.mxu0 0.0
    %2940 = vmatprep.subr.mxu0 0.0
    %2941 = vmatpush1.msra.mxu0 0.0
    %2942 = vmatprep.subr.mxu0 0.0
    %2943 = vmatpush1.msra.mxu0 0.0
    %2944 = vmatprep.subr.mxu0 0.0
    %2945 = vmatpush1.msra.mxu0 0.0
    %2946 = vmatprep.subr.mxu0 0.0
    %2947 = vmatpush1.msra.mxu0 0.0
    %2948 = vmatprep.subr.mxu0 0.0
    %2949 = vmatpush1.msra.mxu0 0.0
    %2950 = vmatprep.subr.mxu0 0.0
    %2951 = vmatpush1.msra.mxu0 0.0
    %2952 = vmatprep.subr.mxu0 0.0
    %2953 = vmatpush1.msra.mxu0 0.0
    %2954 = vmatprep.subr.mxu0 0.0
    %2955 = vmatpush1.msra.mxu0 0.0
    %2956 = vmatprep.subr.mxu0 0.0
    %2957 = vmatpush1.msra.mxu0 0.0
    %2958 = vmatprep.subr.mxu0 0.0
    %2959 = vmatpush1.msra.mxu0 0.0
    %2960 = vmatprep.subr.mxu0 0.0
    %2961 = vmatpush1.msra.mxu0 0.0
    %2962 = vmatprep.subr.mxu0 0.0
    %2963 = vmatpush1.msra.mxu0 0.0
    %2964 = vmatprep.subr.mxu0 0.0
    %2965 = vmatpush1.msra.mxu0 0.0
    %2966 = vmatprep.subr.mxu0 0.0
    %2967 = vmatpush1.msra.mxu0 0.0
    %2968 = vmatprep.subr.mxu0 0.0
    %2969 = vmatpush1.msra.mxu0 0.0
    %2970 = vmatprep.subr.mxu0 0.0
    %2971 = vmatpush1.msra.mxu0 0.0
    %2972 = vmatprep.subr.mxu0 0.0
    %2973 = vmatpush1.msra.mxu0 0.0
    %2974 = vmatprep.subr.mxu0 0.0
    %2975 = vmatpush1.msra.mxu0 0.0
    %2976 = vmatprep.mubr.f32.mxu0 0.0
    %2977 = vmatmul.mubr.f32.gmra.mrb[0].mxu0 %v2907
    %v2978 = vpop.f32.mrb[0].mxu0
    %v2979 = vadd.f32 %v2904, %v2978
    %v2980 = vpop.f32.mrb[0].mxu0
    %2981 = vmatprep.mubr.f32.mxu0 0.0
    %2982 = vmatmul.mubr.f32.gmra.mrb[0].mxu0 %v2910
    %v2983 = vpop.f32.mrb[0].mxu0
    %v2984 = vadd.f32 %v2904, %v2983
    %v2985 = vpop.f32.mrb[0].mxu0
    %2986 = vdwg.mxu0
    %v2987 = vmax.f32 %v2979, 0.0
    %v2988 = vmax.f32 %v2984, 0.0
    %s2989 = scalar_lea.vmem [#allocation2], 128
    %v2990 = vld [vmem:[%s2989] sm:$0xff]
    %v2991 = vld [vmem:[%s2989 + $0x8] sm:$0xff]
    %v2992 = vld [vmem:[%s2989 + $0x10] sm:$0xff]
    %v2993 = vld [vmem:[%s2989 + $0x18] sm:$0xff]
    %v2994 = vld [vmem:[%s2989 + $0x20] sm:$0xff]
    %v2995 = vld [vmem:[%s2989 + $0x28] sm:$0xff]
    %v2996 = vld [vmem:[%s2989 + $0x30] sm:$0xff]
    %v2997 = vld [vmem:[%s2989 + $0x38] sm:$0xff]
    %v2998 = vld [vmem:[%s2989 + $0x40] sm:$0xff]
    %v2999 = vld [vmem:[%s2989 + $0x48] sm:$0xff]
    %v3000 = vld [vmem:[%s2989 + $0x50] sm:$0xff]
    %v3001 = vld [vmem:[%s2989 + $0x58] sm:$0xff]
    %v3002 = vld [vmem:[%s2989 + $0x60] sm:$0xff]
    %v3003 = vld [vmem:[%s2989 + $0x68] sm:$0xff]
    %v3004 = vld [vmem:[%s2989 + $0x70] sm:$0xff]
    %v3005 = vld [vmem:[%s2989 + $0x78] sm:$0xff]
    %s3006 = scalar_lea.vmem %s10, 1
    %v3007 = vld [vmem:[%s3006] sm:$0x1]
    %v3009 = vlaneseq
    %v3010 = vshrl.u32 %v3009, 7
    %v3011 = vsub.s32 0, %v3010
    %v3012 = vrot.slane %v3007, %v3011
    %3014 = vmatprep.subr.mxu0 0.0
    %3015 = vmatpush1.msra.mxu0 %v2990
    %3016 = vmatprep.subr.mxu0 0.0
    %3017 = vmatpush1.msra.mxu0 %v2991
    %3018 = vmatprep.subr.mxu0 0.0
    %3019 = vmatpush1.msra.mxu0 %v2992
    %3020 = vmatprep.subr.mxu0 0.0
    %3021 = vmatpush1.msra.mxu0 %v2993
    %3022 = vmatprep.subr.mxu0 0.0
    %3023 = vmatpush1.msra.mxu0 %v2994
    %3024 = vmatprep.subr.mxu0 0.0
    %3025 = vmatpush1.msra.mxu0 %v2995
    %3026 = vmatprep.subr.mxu0 0.0
    %3027 = vmatpush1.msra.mxu0 %v2996
    %3028 = vmatprep.subr.mxu0 0.0
    %3029 = vmatpush1.msra.mxu0 %v2997
    %3030 = vmatprep.subr.mxu0 0.0
    %3031 = vmatpush1.msra.mxu0 %v2998
    %3032 = vmatprep.subr.mxu0 0.0
    %3033 = vmatpush1.msra.mxu0 %v2999
    %3034 = vmatprep.subr.mxu0 0.0
    %3035 = vmatpush1.msra.mxu0 %v3000
    %3036 = vmatprep.subr.mxu0 0.0
    %3037 = vmatpush1.msra.mxu0 %v3001
    %3038 = vmatprep.subr.mxu0 0.0
    %3039 = vmatpush1.msra.mxu0 %v3002
    %3040 = vmatprep.subr.mxu0 0.0
    %3041 = vmatpush1.msra.mxu0 %v3003
    %3042 = vmatprep.subr.mxu0 0.0
    %3043 = vmatpush1.msra.mxu0 %v3004
    %3044 = vmatprep.subr.mxu0 0.0
    %3045 = vmatpush1.msra.mxu0 %v3005
    %3046 = vmatprep.subr.mxu0 0.0
    %3047 = vmatpush1.msra.mxu0 0.0
    %3048 = vmatprep.subr.mxu0 0.0
    %3049 = vmatpush1.msra.mxu0 0.0
    %3050 = vmatprep.subr.mxu0 0.0
    %3051 = vmatpush1.msra.mxu0 0.0
    %3052 = vmatprep.subr.mxu0 0.0
    %3053 = vmatpush1.msra.mxu0 0.0
    %3054 = vmatprep.subr.mxu0 0.0
    %3055 = vmatpush1.msra.mxu0 0.0
    %3056 = vmatprep.subr.mxu0 0.0
    %3057 = vmatpush1.msra.mxu0 0.0
    %3058 = vmatprep.subr.mxu0 0.0
    %3059 = vmatpush1.msra.mxu0 0.0
    %3060 = vmatprep.subr.mxu0 0.0
    %3061 = vmatpush1.msra.mxu0 0.0
    %3062 = vmatprep.subr.mxu0 0.0
    %3063 = vmatpush1.msra.mxu0 0.0
    %3064 = vmatprep.subr.mxu0 0.0
    %3065 = vmatpush1.msra.mxu0 0.0
    %3066 = vmatprep.subr.mxu0 0.0
    %3067 = vmatpush1.msra.mxu0 0.0
    %3068 = vmatprep.subr.mxu0 0.0
    %3069 = vmatpush1.msra.mxu0 0.0
    %3070 = vmatprep.subr.mxu0 0.0
    %3071 = vmatpush1.msra.mxu0 0.0
    %3072 = vmatprep.subr.mxu0 0.0
    %3073 = vmatpush1.msra.mxu0 0.0
    %3074 = vmatprep.subr.mxu0 0.0
    %3075 = vmatpush1.msra.mxu0 0.0
    %3076 = vmatprep.subr.mxu0 0.0
    %3077 = vmatpush1.msra.mxu0 0.0
    %3078 = vmatprep.mubr.f32.mxu0 0.0
    %3079 = vmatmul.mubr.f32.gmra.mrb[0].mxu0 %v2987
    %v3080 = vpop.f32.mrb[0].mxu0
    %v3081 = vadd.f32 %v3012, %v3080
    %v3082 = vpop.f32.mrb[0].mxu0
    %3083 = vmatprep.mubr.f32.mxu0 0.0
    %3084 = vmatmul.mubr.f32.gmra.mrb[0].mxu0 %v2988
    %v3085 = vpop.f32.mrb[0].mxu0
    %v3086 = vadd.f32 %v3012, %v3085
    %v3087 = vpop.f32.mrb[0].mxu0
    %3088 = vdwg.mxu0
    %v3089 = vadd.f32 %v2891, %v3081
    %v3090 = vadd.f32 %v2892, %v3086
    %s3091 = scalar_lea.vmem %s11, 1
    %v3092 = vld [vmem:[%s3091] sm:$0x1]
    %s3093 = scalar_lea.vmem %s12, 1
    %v3094 = vld [vmem:[%s3093] sm:$0x1]
    %v3095 = vsel %vm78, %v3089, 0.0
    %3096 = vadd.xlane.f32.xlu0 %v3095
    %v3097 = vpop.xlane.xlu0 %3096
    %v3098 = vsel %vm78, %v3090, 0.0
    %3099 = vadd.xlane.f32.xlu0 %v3098
    %v3100 = vpop.xlane.xlu0 %3099
    %v3101 = vmul.f32 %v3097, %v1327
    %v3102 = vmul.f32 %v3100, %v1327
    %v3103 = vsub.f32 %v3089, %v3101
    %v3104 = vsub.f32 %v3090, %v3102
    %v3105 = vmul.f32 %v3103, %v3103
    %v3106 = vmul.f32 %v3104, %v3104
    %v3107 = vsel %vm78, %v3105, 0.0
    %3108 = vadd.xlane.f32.xlu0 %v3107
    %v3109 = vpop.xlane.xlu0 %3108
    %v3110 = vsel %vm78, %v3106, 0.0
    %3111 = vadd.xlane.f32.xlu0 %v3110
    %v3112 = vpop.xlane.xlu0 %3111
    %v3113 = vmul.f32 %v3109, %v1327
    %v3114 = vmul.f32 %v3112, %v1327
    %v3115 = vadd.f32 %v3113, 1e-05
    %v3116 = vadd.f32 %v3114, 1e-05
    %v3117 = vrsqrt.pop %v3115
    %v3118 = vrsqrt.pop %v3116
    %v3119 = vmul.f32 %v3103, %v3117
    %v3120 = vmul.f32 %v3104, %v3118
    %v3122 = vlaneseq
    %v3123 = vshrl.u32 %v3122, 7
    %v3124 = vsub.s32 0, %v3123
    %v3125 = vrot.slane %v3092, %v3124
    %v3127 = vmul.f32 %v3119, %v3125
    %v3128 = vmul.f32 %v3120, %v3125
    %v3130 = vlaneseq
    %v3131 = vshrl.u32 %v3130, 7
    %v3132 = vsub.s32 0, %v3131
    %v3133 = vrot.slane %v3094, %v3132
    %v3135 = vadd.f32 %v3127, %v3133
    %v3136 = vadd.f32 %v3128, %v3133
    %v3137 = vld [vmem:[%s13] sm:$0x1]
    %v3138 = vld [vmem:[%s14] sm:$0x1]
    %v3139 = vsel %vm78, %v3135, 0.0
    %3140 = vadd.xlane.f32.xlu0 %v3139
    %v3141 = vpop.xlane.xlu0 %3140
    %v3142 = vsel %vm78, %v3136, 0.0
    %3143 = vadd.xlane.f32.xlu0 %v3142
    %v3144 = vpop.xlane.xlu0 %3143
    %v3145 = vmul.f32 %v3141, %v1327
    %v3146 = vmul.f32 %v3144, %v1327
    %v3147 = vsub.f32 %v3135, %v3145
    %v3148 = vsub.f32 %v3136, %v3146
    %v3149 = vmul.f32 %v3147, %v3147
    %v3150 = vmul.f32 %v3148, %v3148
    %v3151 = vsel %vm78, %v3149, 0.0
    %3152 = vadd.xlane.f32.xlu0 %v3151
    %v3153 = vpop.xlane.xlu0 %3152
    %v3154 = vsel %vm78, %v3150, 0.0
    %3155 = vadd.xlane.f32.xlu0 %v3154
    %v3156 = vpop.xlane.xlu0 %3155
    %v3157 = vmul.f32 %v3153, %v1327
    %v3158 = vmul.f32 %v3156, %v1327
    %v3159 = vadd.f32 %v3157, 1e-05
    %v3160 = vadd.f32 %v3158, 1e-05
    %v3161 = vrsqrt.pop %v3159
    %v3162 = vrsqrt.pop %v3160
    %v3163 = vmul.f32 %v3147, %v3161
    %v3164 = vmul.f32 %v3148, %v3162
    %v3166 = vlaneseq
    %v3167 = vshrl.u32 %v3166, 7
    %v3168 = vsub.s32 0, %v3167
    %v3169 = vrot.slane %v3137, %v3168
    %v3171 = vmul.f32 %v3163, %v3169
    %v3172 = vmul.f32 %v3164, %v3169
    %v3174 = vlaneseq
    %v3175 = vshrl.u32 %v3174, 7
    %v3176 = vsub.s32 0, %v3175
    %v3177 = vrot.slane %v3138, %v3176
    %v3179 = vadd.f32 %v3171, %v3177
    %v3180 = vadd.f32 %v3172, %v3177
    %v3181 = vld [vmem:[%s15] sm:$0xff]
    %v3182 = vld [vmem:[%s15 + $0x8] sm:$0xff]
    %v3183 = vld [vmem:[%s15 + $0x10] sm:$0xff]
    %v3184 = vld [vmem:[%s15 + $0x18] sm:$0xff]
    %v3185 = vld [vmem:[%s16] sm:$0x1]
    %v3187 = vlaneseq
    %v3188 = vshrl.u32 %v3187, 7
    %v3189 = vsub.s32 0, %v3188
    %v3190 = vrot.slane %v3185, %v3189
    %v3193 = vsel %vm78, %v3179, 0
    %v3196 = vsel %vm78, %v3180, 0
    %3198 = vmatprep.subr.mxu0 0.0
    %3199 = vmatpush1.msra.mxu0 %v3181
    %3200 = vmatprep.subr.mxu0 0.0
    %3201 = vmatpush1.msra.mxu0 %v3182
    %3202 = vmatprep.subr.mxu0 0.0
    %3203 = vmatpush1.msra.mxu0 %v3183
    %3204 = vmatprep.subr.mxu0 0.0
    %3205 = vmatpush1.msra.mxu0 %v3184
    %3206 = vmatprep.subr.mxu0 0.0
    %3207 = vmatpush1.msra.mxu0 0.0
    %3208 = vmatprep.subr.mxu0 0.0
    %3209 = vmatpush1.msra.mxu0 0.0
    %3210 = vmatprep.subr.mxu0 0.0
    %3211 = vmatpush1.msra.mxu0 0.0
    %3212 = vmatprep.subr.mxu0 0.0
    %3213 = vmatpush1.msra.mxu0 0.0
    %3214 = vmatprep.subr.mxu0 0.0
    %3215 = vmatpush1.msra.mxu0 0.0
    %3216 = vmatprep.subr.mxu0 0.0
    %3217 = vmatpush1.msra.mxu0 0.0
    %3218 = vmatprep.subr.mxu0 0.0
    %3219 = vmatpush1.msra.mxu0 0.0
    %3220 = vmatprep.subr.mxu0 0.0
    %3221 = vmatpush1.msra.mxu0 0.0
    %3222 = vmatprep.subr.mxu0 0.0
    %3223 = vmatpush1.msra.mxu0 0.0
    %3224 = vmatprep.subr.mxu0 0.0
    %3225 = vmatpush1.msra.mxu0 0.0
    %3226 = vmatprep.subr.mxu0 0.0
    %3227 = vmatpush1.msra.mxu0 0.0
    %3228 = vmatprep.subr.mxu0 0.0
    %3229 = vmatpush1.msra.mxu0 0.0
    %3230 = vmatprep.subr.mxu0 0.0
    %3231 = vmatpush1.msra.mxu0 0.0
    %3232 = vmatprep.subr.mxu0 0.0
    %3233 = vmatpush1.msra.mxu0 0.0
    %3234 = vmatprep.subr.mxu0 0.0
    %3235 = vmatpush1.msra.mxu0 0.0
    %3236 = vmatprep.subr.mxu0 0.0
    %3237 = vmatpush1.msra.mxu0 0.0
    %3238 = vmatprep.subr.mxu0 0.0
    %3239 = vmatpush1.msra.mxu0 0.0
    %3240 = vmatprep.subr.mxu0 0.0
    %3241 = vmatpush1.msra.mxu0 0.0
    %3242 = vmatprep.subr.mxu0 0.0
    %3243 = vmatpush1.msra.mxu0 0.0
    %3244 = vmatprep.subr.mxu0 0.0
    %3245 = vmatpush1.msra.mxu0 0.0
    %3246 = vmatprep.subr.mxu0 0.0
    %3247 = vmatpush1.msra.mxu0 0.0
    %3248 = vmatprep.subr.mxu0 0.0
    %3249 = vmatpush1.msra.mxu0 0.0
    %3250 = vmatprep.subr.mxu0 0.0
    %3251 = vmatpush1.msra.mxu0 0.0
    %3252 = vmatprep.subr.mxu0 0.0
    %3253 = vmatpush1.msra.mxu0 0.0
    %3254 = vmatprep.subr.mxu0 0.0
    %3255 = vmatpush1.msra.mxu0 0.0
    %3256 = vmatprep.subr.mxu0 0.0
    %3257 = vmatpush1.msra.mxu0 0.0
    %3258 = vmatprep.subr.mxu0 0.0
    %3259 = vmatpush1.msra.mxu0 0.0
    %3260 = vmatprep.subr.mxu0 0.0
    %3261 = vmatpush1.msra.mxu0 0.0
    %3262 = vmatprep.mubr.f32.mxu0 0.0
    %3263 = vmatmul.mubr.f32.gmra.mrb[0].mxu0 %v3193
    %v3264 = vpop.f32.mrb[0].mxu0
    %v3265 = vadd.f32 %v3190, %v3264
    %v3266 = vpop.f32.mrb[0].mxu0
    %3267 = vmatprep.mubr.f32.mxu0 0.0
    %3268 = vmatmul.mubr.f32.gmra.mrb[0].mxu0 %v3196
    %v3269 = vpop.f32.mrb[0].mxu0
    %v3270 = vadd.f32 %v3190, %v3269
    %v3271 = vpop.f32.mrb[0].mxu0
    %3272 = vdwg.mxu0
    %3273 = vst [vmem:[%s17] sm:$0xff] %v3265
    %3274 = vst [vmem:[%s17 + $0x8] sm:$0xff] %v3270
    // Predicated region
    $region74: #{gpt_forward.1} parent=1 // pred_check
      _
    $region75: #{gpt_forward.1} parent=1 // pred_check_branch
      %3276 = sbr.rel (0) target = $region77
    $region76: #{gpt_forward.1} parent=1 // pred_region
      _
    $region77: #{gpt_forward.1} parent=1 // pred_fallthru
      _
    // Predicated region
    $region78: #{gpt_forward.1} parent=1 // pred_check
      _
    $region79: #{gpt_forward.1} parent=1 // pred_check_branch
      %3278 = sbr.rel (0) target = $region81
    $region80: #{gpt_forward.1} parent=1 // pred_region
      _
    $region81: #{gpt_forward.1} parent=1 // pred_fallthru
      _
    %3279 = vsyncpa [#allocation3], 1

</llo_original>
